<compile_context>
chip_gen: v6e
topology: v6e:2x2x1
jax: 0.10.0
libtpu: 0.0.40
codegen_flags: <defaults>
</compile_context>

<pallas_src>
import jax
import jax.numpy as jnp
from jax.experimental import pallas as pl
from jax.experimental.pallas import tpu as pltpu

NORM_EPS = 1e-5

# Sublane offset at which the padded interior is stored: a multiple of 8 so the
# f32 interior store is tile-aligned; the left halo column lives at _PAD_OFF-1.
_PAD_OFF = 8


# ----------------------------------------------------------------------------
# Fused MHCA kernel: pad -> im2col -> (grouped 3x3 conv as one matmul)
#                    -> BN -> ReLU -> 1x1 projection
# ----------------------------------------------------------------------------
def _mhca_kernel(x_ref, wg_ref, scale_ref, bias_ref, wproj_ref, out_ref,
                 xpad_ref, slab_ref):
    H, W, C = x_ref.shape

    # --- in-kernel zero padding (no separate XLA pad pass through HBM) ---
    xpad_ref[...] = jnp.zeros_like(xpad_ref)
    xpad_ref[1:H + 1, _PAD_OFF:_PAD_OFF + W, :] = x_ref[...]

    # --- im2col: 9 shifted windows written ONCE into a K-concatenated slab.
    # Each store covers full sublanes at a lane offset that is a multiple of C
    # (unmasked); the (H, W) -> H*W merge is layout-free since W % 8 == 0.
    for k in range(9):                                    # unrolled at trace time
        dy, dx = k // 3, k % 3
        col0 = _PAD_OFF - 1 + dx
        win = xpad_ref[dy:dy + H, col0:col0 + W, :]
        slab_ref[:, k * C:(k + 1) * C] = (
            win.reshape(H * W, C).astype(jnp.bfloat16))

    # --- grouped 3x3 conv == one (H*W, 9C) x (9C, C) bf16 matmul, f32 accum ---
    acc = jnp.dot(slab_ref[...], wg_ref[...], preferred_element_type=jnp.float32)

    # --- BatchNorm (folded running stats) + ReLU, in f32 ---
    h = jnp.maximum(acc * scale_ref[0, :] + bias_ref[0, :], 0.0)

    # --- 1x1 projection ---
    out_ref[...] = jnp.dot(h.astype(jnp.bfloat16), wproj_ref[...],
                           preferred_element_type=jnp.float32)


@jax.jit
def mhca_forward(x, params):
    """MHCA forward.  x: (B, H, W, C) or (H, W, C) — NHWC, exactly what the
    PyTorch module receives before its internal permute(0,3,1,2).
    Returns NCHW (B, C, H, W), matching the reference module."""
    if x.ndim == 3:
        x = x[None]                                        # torch: x.unsqueeze(0)
    B, H, W, C = x.shape
    assert W % 8 == 0 and (H * W) % 8 == 0, "spatial dims must respect (8,128) tiling"

    out_flat = pl.pallas_call(
        _mhca_kernel,
        out_shape=jax.ShapeDtypeStruct((B, H * W, C), jnp.float32),
        grid=(B,),
        in_specs=[
            pl.BlockSpec((None, H, W, C), lambda b: (b, 0, 0, 0)),
            pl.BlockSpec((9 * C, C), lambda b: (0, 0)),
            pl.BlockSpec((1, C), lambda b: (0, 0)),
            pl.BlockSpec((1, C), lambda b: (0, 0)),
            pl.BlockSpec((C, C), lambda b: (0, 0)),
        ],
        out_specs=pl.BlockSpec((None, H * W, C), lambda b: (b, 0, 0)),
        scratch_shapes=[
            pltpu.VMEM((H + 2, W + 2 * _PAD_OFF, C), jnp.float32),   # padded input
            pltpu.VMEM((H * W, 9 * C), jnp.bfloat16),                # im2col slab
        ],
        compiler_params=pltpu.CompilerParams(
            dimension_semantics=("parallel",)),
    )(x, params["wg"], params["scale"], params["bias"], params["wproj"])

    # Lane-dense kernel output (B, H*W, C) -> NCHW, as the PyTorch module returns.
    return jnp.transpose(out_flat.reshape(B, H, W, C), (0, 3, 1, 2))


# ----------------------------------------------------------------------------
# Parameter construction (deterministic) — raw PyTorch form + kernel-ready form
# ----------------------------------------------------------------------------
def init_mhca_params(key, out_channels, head_dim):
    C, hd = out_channels, head_dim
    assert C % hd == 0
    groups = C // hd
    ks = jax.random.split(key, 6)

    # Raw parameters (PyTorch shapes).
    w_conv = 0.1 * jax.random.normal(ks[0], (C, hd, 3, 3), jnp.float32)   # (O, I/g, kH, kW)
    gamma = 1.0 + 0.1 * jax.random.normal(ks[1], (C,), jnp.float32)
    beta = 0.1 * jax.random.normal(ks[2], (C,), jnp.float32)
    mean = 0.1 * jax.random.normal(ks[3], (C,), jnp.float32)
    var = jax.random.uniform(ks[4], (C,), jnp.float32, minval=0.5, maxval=1.5)
    w_proj = 0.1 * jax.random.normal(ks[5], (C, C, 1, 1), jnp.float32)    # (O, I, 1, 1)
    raw = dict(w_conv=w_conv, gamma=gamma, beta=beta, mean=mean, var=var,
               w_proj=w_proj, groups=groups)

    # Kernel-ready parameters.
    scale = gamma / jnp.sqrt(var + NORM_EPS)               # folded BN: y = x*scale + bias
    bias = beta - mean * scale
    # Block-diagonal dense grouped-conv weight, im2col K order = tap*C + ci,
    # pre-cast once to bf16 (halves weight DMA; f32 accumulation in-kernel).
    # TODO(synk): for very large C/head_dim ratios a per-group (9, g, hd, hd)
    # layout would avoid shipping the zero blocks; dense is fine at these sizes.
    wbig = jnp.zeros((9, C, C), jnp.float32)
    for g in range(groups):
        blk = jnp.transpose(w_conv[g * hd:(g + 1) * hd], (2, 3, 1, 0))    # (kH,kW,ci,co)
        wbig = wbig.at[:, g * hd:(g + 1) * hd, g * hd:(g + 1) * hd].set(
            blk.reshape(9, hd, hd))
    params = {
        "wg": wbig.reshape(9 * C, C).astype(jnp.bfloat16),
        "wproj": jnp.transpose(w_proj[:, :, 0, 0]).astype(jnp.bfloat16),
        "scale": scale.reshape(1, C),
        "bias": bias.reshape(1, C),
    }
    return params, raw


# ----------------------------------------------------------------------------
# Pure-JAX reference (matches the PyTorch module with inference BN)
# ----------------------------------------------------------------------------
def mhca_reference(x, raw):
    if x.ndim == 3:
        x = x[None]
    xc = jnp.transpose(x, (0, 3, 1, 2))                    # permute(0, 3, 1, 2)
    out = jax.lax.conv_general_dilated(
        xc, raw["w_conv"], window_strides=(1, 1), padding=((1, 1), (1, 1)),
        dimension_numbers=("NCHW", "OIHW", "NCHW"),
        feature_group_count=raw["groups"])
    inv = (raw["gamma"] / jnp.sqrt(raw["var"] + NORM_EPS))[None, :, None, None]
    out = (out - raw["mean"][None, :, None, None]) * inv + raw["beta"][None, :, None, None]
    out = jnp.maximum(out, 0.0)
    out = jax.lax.conv_general_dilated(
        out, raw["w_proj"], window_strides=(1, 1), padding=((0, 0), (0, 0)),
        dimension_numbers=("NCHW", "OIHW", "NCHW"))
    return out


if __name__ == "__main__":
    key = jax.random.PRNGKey(0)
    k_x, k_p = jax.random.split(key)

    # Small but lane-dense shapes: C = 128 puts channels exactly on the 128-lane
    # axis (unmasked stores on every TPU generation); head_dim = 32 as in NextViT
    # -> 4 groups.
    B, H, W = 2, 16, 16
    out_channels, head_dim = 128, 32

    x = jax.random.normal(k_x, (B, H, W, out_channels), jnp.float32)   # NHWC input
    params, raw = init_mhca_params(k_p, out_channels, head_dim)

    out = mhca_forward(x, params)
    jax.block_until_ready(out)
    assert out.shape == (B, out_channels, H, W)

    ref = mhca_reference(x, raw)
    max_err = float(jnp.max(jnp.abs(out - ref)))
    assert max_err < 0.2, f"numerical mismatch vs reference: max abs err {max_err}"
    print("KERNEL_OK")
</pallas_src>

<mosaic_0001>
module attributes {stable_mosaic.version = 11 : i64} {
  func.func @_mhca_kernel(%arg0: i32, %arg1: memref<1x16x16x128xf32, #tpu.memory_space<vmem>>, %arg2: memref<1152x128xbf16, #tpu.memory_space<vmem>>, %arg3: memref<1x128xf32, #tpu.memory_space<vmem>>, %arg4: memref<1x128xf32, #tpu.memory_space<vmem>>, %arg5: memref<128x128xbf16, #tpu.memory_space<vmem>>, %arg6: memref<1x256x128xf32, #tpu.memory_space<vmem>>, %arg7: memref<18x32x128xf32, #tpu.memory_space<vmem>>, %arg8: memref<256x1152xbf16, #tpu.memory_space<vmem>>) attributes {dimension_semantics = [#tpu.dimension_semantics<parallel>], iteration_bounds = array<i64: 2>, scalar_prefetch = 0 : i64, scratch_operands = 2 : i64, tpu.core_type = #tpu.core_type<tc>, window_params = [{transform_indices = @transform_0, window_bounds = array<i64: 1, 16, 16, 128>}, {pipeline_mode = #tpu.pipeline_mode<synchronous>, transform_indices = @transform_1, window_bounds = array<i64: 1152, 128>}, {pipeline_mode = #tpu.pipeline_mode<synchronous>, transform_indices = @transform_2, window_bounds = array<i64: 1, 128>}, {pipeline_mode = #tpu.pipeline_mode<synchronous>, transform_indices = @transform_3, window_bounds = array<i64: 1, 128>}, {pipeline_mode = #tpu.pipeline_mode<synchronous>, transform_indices = @transform_4, window_bounds = array<i64: 128, 128>}, {transform_indices = @transform_5, window_bounds = array<i64: 1, 256, 128>}]} {
    %cst = arith.constant 0.000000e+00 : f32
    %0 = vector.broadcast %cst : f32 to vector<18x32x128xf32>
    %c0 = arith.constant 0 : index
    %c0_0 = arith.constant 0 : index
    %c0_1 = arith.constant 0 : index
    %1 = vector.load %arg7[%c0, %c0_0, %c0_1] : memref<18x32x128xf32, #tpu.memory_space<vmem>>, vector<18x32x128xf32>
    tpu.vector_store %arg7[%c0, %c0_0, %c0_1], %0 {strides = array<i32>} : memref<18x32x128xf32, #tpu.memory_space<vmem>>, vector<18x32x128xf32>,
    %c0_2 = arith.constant 0 : index
    %c0_3 = arith.constant 0 : index
    %c0_4 = arith.constant 0 : index
    %c0_5 = arith.constant 0 : index
    %2 = vector.load %arg1[%c0_2, %c0_3, %c0_4, %c0_5] : memref<1x16x16x128xf32, #tpu.memory_space<vmem>>, vector<1x16x16x128xf32>
    %3 = vector.shape_cast %2 : vector<1x16x16x128xf32> to vector<16x16x128xf32>
    %c1 = arith.constant 1 : index
    %c8 = arith.constant 8 : index
    %c0_6 = arith.constant 0 : index
    %4 = vector.load %arg7[%c1, %c8, %c0_6] : memref<18x32x128xf32, #tpu.memory_space<vmem>>, vector<16x16x128xf32>
    tpu.vector_store %arg7[%c1, %c8, %c0_6], %3 {strides = array<i32>} : memref<18x32x128xf32, #tpu.memory_space<vmem>>, vector<16x16x128xf32>,
    %c0_7 = arith.constant 0 : index
    %c7 = arith.constant 7 : index
    %c0_8 = arith.constant 0 : index
    %5 = vector.load %arg7[%c0_7, %c7, %c0_8] : memref<18x32x128xf32, #tpu.memory_space<vmem>>, vector<16x16x128xf32>
    %6 = vector.shape_cast %5 : vector<16x16x128xf32> to vector<256x128xf32>
    %7 = arith.truncf %6 : vector<256x128xf32> to vector<256x128xbf16>
    %c0_9 = arith.constant 0 : index
    %c0_10 = arith.constant 0 : index
    %8 = vector.load %arg8[%c0_9, %c0_10] : memref<256x1152xbf16, #tpu.memory_space<vmem>>, vector<256x128xbf16>
    tpu.vector_store %arg8[%c0_9, %c0_10], %7 {strides = array<i32>} : memref<256x1152xbf16, #tpu.memory_space<vmem>>, vector<256x128xbf16>,
    %c0_11 = arith.constant 0 : index
    %c8_12 = arith.constant 8 : index
    %c0_13 = arith.constant 0 : index
    %9 = vector.load %arg7[%c0_11, %c8_12, %c0_13] : memref<18x32x128xf32, #tpu.memory_space<vmem>>, vector<16x16x128xf32>
    %10 = vector.shape_cast %9 : vector<16x16x128xf32> to vector<256x128xf32>
    %11 = arith.truncf %10 : vector<256x128xf32> to vector<256x128xbf16>
    %c0_14 = arith.constant 0 : index
    %c128 = arith.constant 128 : index
    %12 = vector.load %arg8[%c0_14, %c128] : memref<256x1152xbf16, #tpu.memory_space<vmem>>, vector<256x128xbf16>
    tpu.vector_store %arg8[%c0_14, %c128], %11 {strides = array<i32>} : memref<256x1152xbf16, #tpu.memory_space<vmem>>, vector<256x128xbf16>,
    %c0_15 = arith.constant 0 : index
    %c9 = arith.constant 9 : index
    %c0_16 = arith.constant 0 : index
    %13 = vector.load %arg7[%c0_15, %c9, %c0_16] : memref<18x32x128xf32, #tpu.memory_space<vmem>>, vector<16x16x128xf32>
    %14 = vector.shape_cast %13 : vector<16x16x128xf32> to vector<256x128xf32>
    %15 = arith.truncf %14 : vector<256x128xf32> to vector<256x128xbf16>
    %c0_17 = arith.constant 0 : index
    %c256 = arith.constant 256 : index
    %16 = vector.load %arg8[%c0_17, %c256] : memref<256x1152xbf16, #tpu.memory_space<vmem>>, vector<256x128xbf16>
    tpu.vector_store %arg8[%c0_17, %c256], %15 {strides = array<i32>} : memref<256x1152xbf16, #tpu.memory_space<vmem>>, vector<256x128xbf16>,
    %c1_18 = arith.constant 1 : index
    %c7_19 = arith.constant 7 : index
    %c0_20 = arith.constant 0 : index
    %17 = vector.load %arg7[%c1_18, %c7_19, %c0_20] : memref<18x32x128xf32, #tpu.memory_space<vmem>>, vector<16x16x128xf32>
    %18 = vector.shape_cast %17 : vector<16x16x128xf32> to vector<256x128xf32>
    %19 = arith.truncf %18 : vector<256x128xf32> to vector<256x128xbf16>
    %c0_21 = arith.constant 0 : index
    %c384 = arith.constant 384 : index
    %20 = vector.load %arg8[%c0_21, %c384] : memref<256x1152xbf16, #tpu.memory_space<vmem>>, vector<256x128xbf16>
    tpu.vector_store %arg8[%c0_21, %c384], %19 {strides = array<i32>} : memref<256x1152xbf16, #tpu.memory_space<vmem>>, vector<256x128xbf16>,
    %c1_22 = arith.constant 1 : index
    %c8_23 = arith.constant 8 : index
    %c0_24 = arith.constant 0 : index
    %21 = vector.load %arg7[%c1_22, %c8_23, %c0_24] : memref<18x32x128xf32, #tpu.memory_space<vmem>>, vector<16x16x128xf32>
    %22 = vector.shape_cast %21 : vector<16x16x128xf32> to vector<256x128xf32>
    %23 = arith.truncf %22 : vector<256x128xf32> to vector<256x128xbf16>
    %c0_25 = arith.constant 0 : index
    %c512 = arith.constant 512 : index
    %24 = vector.load %arg8[%c0_25, %c512] : memref<256x1152xbf16, #tpu.memory_space<vmem>>, vector<256x128xbf16>
    tpu.vector_store %arg8[%c0_25, %c512], %23 {strides = array<i32>} : memref<256x1152xbf16, #tpu.memory_space<vmem>>, vector<256x128xbf16>,
    %c1_26 = arith.constant 1 : index
    %c9_27 = arith.constant 9 : index
    %c0_28 = arith.constant 0 : index
    %25 = vector.load %arg7[%c1_26, %c9_27, %c0_28] : memref<18x32x128xf32, #tpu.memory_space<vmem>>, vector<16x16x128xf32>
    %26 = vector.shape_cast %25 : vector<16x16x128xf32> to vector<256x128xf32>
    %27 = arith.truncf %26 : vector<256x128xf32> to vector<256x128xbf16>
    %c0_29 = arith.constant 0 : index
    %c640 = arith.constant 640 : index
    %28 = vector.load %arg8[%c0_29, %c640] : memref<256x1152xbf16, #tpu.memory_space<vmem>>, vector<256x128xbf16>
    tpu.vector_store %arg8[%c0_29, %c640], %27 {strides = array<i32>} : memref<256x1152xbf16, #tpu.memory_space<vmem>>, vector<256x128xbf16>,
    %c2 = arith.constant 2 : index
    %c7_30 = arith.constant 7 : index
    %c0_31 = arith.constant 0 : index
    %29 = vector.load %arg7[%c2, %c7_30, %c0_31] : memref<18x32x128xf32, #tpu.memory_space<vmem>>, vector<16x16x128xf32>
    %30 = vector.shape_cast %29 : vector<16x16x128xf32> to vector<256x128xf32>
    %31 = arith.truncf %30 : vector<256x128xf32> to vector<256x128xbf16>
    %c0_32 = arith.constant 0 : index
    %c768 = arith.constant 768 : index
    %32 = vector.load %arg8[%c0_32, %c768] : memref<256x1152xbf16, #tpu.memory_space<vmem>>, vector<256x128xbf16>
    tpu.vector_store %arg8[%c0_32, %c768], %31 {strides = array<i32>} : memref<256x1152xbf16, #tpu.memory_space<vmem>>, vector<256x128xbf16>,
    %c2_33 = arith.constant 2 : index
    %c8_34 = arith.constant 8 : index
    %c0_35 = arith.constant 0 : index
    %33 = vector.load %arg7[%c2_33, %c8_34, %c0_35] : memref<18x32x128xf32, #tpu.memory_space<vmem>>, vector<16x16x128xf32>
    %34 = vector.shape_cast %33 : vector<16x16x128xf32> to vector<256x128xf32>
    %35 = arith.truncf %34 : vector<256x128xf32> to vector<256x128xbf16>
    %c0_36 = arith.constant 0 : index
    %c896 = arith.constant 896 : index
    %36 = vector.load %arg8[%c0_36, %c896] : memref<256x1152xbf16, #tpu.memory_space<vmem>>, vector<256x128xbf16>
    tpu.vector_store %arg8[%c0_36, %c896], %35 {strides = array<i32>} : memref<256x1152xbf16, #tpu.memory_space<vmem>>, vector<256x128xbf16>,
    %c2_37 = arith.constant 2 : index
    %c9_38 = arith.constant 9 : index
    %c0_39 = arith.constant 0 : index
    %37 = vector.load %arg7[%c2_37, %c9_38, %c0_39] : memref<18x32x128xf32, #tpu.memory_space<vmem>>, vector<16x16x128xf32>
    %38 = vector.shape_cast %37 : vector<16x16x128xf32> to vector<256x128xf32>
    %39 = arith.truncf %38 : vector<256x128xf32> to vector<256x128xbf16>
    %c0_40 = arith.constant 0 : index
    %c1024 = arith.constant 1024 : index
    %40 = vector.load %arg8[%c0_40, %c1024] : memref<256x1152xbf16, #tpu.memory_space<vmem>>, vector<256x128xbf16>
    tpu.vector_store %arg8[%c0_40, %c1024], %39 {strides = array<i32>} : memref<256x1152xbf16, #tpu.memory_space<vmem>>, vector<256x128xbf16>,
    %c0_41 = arith.constant 0 : index
    %c0_42 = arith.constant 0 : index
    %41 = vector.load %arg8[%c0_41, %c0_42] : memref<256x1152xbf16, #tpu.memory_space<vmem>>, vector<256x1152xbf16>
    %c0_43 = arith.constant 0 : index
    %c0_44 = arith.constant 0 : index
    %42 = vector.load %arg2[%c0_43, %c0_44] : memref<1152x128xbf16, #tpu.memory_space<vmem>>, vector<1152x128xbf16>
    %cst_45 = arith.constant dense<0.000000e+00> : vector<256x128xf32>
    %43 = tpu.matmul %41, %42, %cst_45 {dimension_numbers = #tpu.dot_dimension_numbers<[1], [0], [0], [1], [0, 0, 1, 1], [], []>} : vector<256x1152xbf16>, vector<1152x128xbf16>, vector<256x128xf32> -> vector<256x128xf32>
    %c0_46 = arith.constant 0 : index
    %c0_47 = arith.constant 0 : index
    %44 = vector.load %arg3[%c0_46, %c0_47] : memref<1x128xf32, #tpu.memory_space<vmem>>, vector<1x128xf32>
    %45 = vector.shape_cast %44 : vector<1x128xf32> to vector<128xf32>
    %46 = vector.shape_cast %45 : vector<128xf32> to vector<1x128xf32>
    %47 = vector.broadcast %46 : vector<1x128xf32> to vector<256x128xf32>
    %48 = arith.mulf %43, %47 : vector<256x128xf32>
    %c0_48 = arith.constant 0 : index
    %c0_49 = arith.constant 0 : index
    %49 = vector.load %arg4[%c0_48, %c0_49] : memref<1x128xf32, #tpu.memory_space<vmem>>, vector<1x128xf32>
    %50 = vector.shape_cast %49 : vector<1x128xf32> to vector<128xf32>
    %51 = vector.shape_cast %50 : vector<128xf32> to vector<1x128xf32>
    %52 = vector.broadcast %51 : vector<1x128xf32> to vector<256x128xf32>
    %53 = arith.addf %48, %52 : vector<256x128xf32>
    %cst_50 = arith.constant 0.000000e+00 : f32
    %54 = vector.broadcast %cst_50 : f32 to vector<256x128xf32>
    %55 = arith.maximumf %53, %54 : vector<256x128xf32>
    %56 = arith.truncf %55 : vector<256x128xf32> to vector<256x128xbf16>
    %c0_51 = arith.constant 0 : index
    %c0_52 = arith.constant 0 : index
    %57 = vector.load %arg5[%c0_51, %c0_52] : memref<128x128xbf16, #tpu.memory_space<vmem>>, vector<128x128xbf16>
    %cst_53 = arith.constant dense<0.000000e+00> : vector<256x128xf32>
    %58 = tpu.matmul %56, %57, %cst_53 {dimension_numbers = #tpu.dot_dimension_numbers<[1], [0], [0], [1], [0, 0, 1, 1], [], []>} : vector<256x128xbf16>, vector<128x128xbf16>, vector<256x128xf32> -> vector<256x128xf32>
    %c0_54 = arith.constant 0 : index
    %c0_55 = arith.constant 0 : index
    %c0_56 = arith.constant 0 : index
    %59 = vector.load %arg6[%c0_54, %c0_55, %c0_56] : memref<1x256x128xf32, #tpu.memory_space<vmem>>, vector<1x256x128xf32>
    %60 = vector.shape_cast %59 : vector<1x256x128xf32> to vector<256x128xf32>
    %61 = vector.shape_cast %58 : vector<256x128xf32> to vector<1x256x128xf32>
    tpu.vector_store %arg6[%c0_54, %c0_55, %c0_56], %61 {strides = array<i32>} : memref<1x256x128xf32, #tpu.memory_space<vmem>>, vector<1x256x128xf32>,
    return
  }
  func.func @transform_0(%arg0: i32) -> (i32, i32, i32, i32) {
    %c0_i32 = arith.constant 0 : i32
    %c0_i32_0 = arith.constant 0 : i32
    %c0_i32_1 = arith.constant 0 : i32
    %c0_i32_2 = arith.constant 0 : i32
    return %arg0, %c0_i32, %c0_i32_0, %c0_i32_1 : i32, i32, i32, i32
  }
  func.func @transform_1(%arg0: i32) -> (i32, i32) {
    %c0_i32 = arith.constant 0 : i32
    %c0_i32_0 = arith.constant 0 : i32
    %c0_i32_1 = arith.constant 0 : i32
    return %c0_i32, %c0_i32_0 : i32, i32
  }
  func.func @transform_2(%arg0: i32) -> (i32, i32) {
    %c0_i32 = arith.constant 0 : i32
    %c0_i32_0 = arith.constant 0 : i32
    %c0_i32_1 = arith.constant 0 : i32
    return %c0_i32, %c0_i32_0 : i32, i32
  }
  func.func @transform_3(%arg0: i32) -> (i32, i32) {
    %c0_i32 = arith.constant 0 : i32
    %c0_i32_0 = arith.constant 0 : i32
    %c0_i32_1 = arith.constant 0 : i32
    return %c0_i32, %c0_i32_0 : i32, i32
  }
  func.func @transform_4(%arg0: i32) -> (i32, i32) {
    %c0_i32 = arith.constant 0 : i32
    %c0_i32_0 = arith.constant 0 : i32
    %c0_i32_1 = arith.constant 0 : i32
    return %c0_i32, %c0_i32_0 : i32, i32
  }
  func.func @transform_5(%arg0: i32) -> (i32, i32, i32) {
    %c0_i32 = arith.constant 0 : i32
    %c0_i32_0 = arith.constant 0 : i32
    %c0_i32_1 = arith.constant 0 : i32
    return %arg0, %c0_i32, %c0_i32_0 : i32, i32, i32
  }
}

</mosaic_0001>

<llo_original>
// kernel: mhca_forward.1
$region0: #{mhca_forward.1}
  #allocation0 [shape = 'u32[]', space=smem, size = 0x4, offset = 0x4, fixed_abs, tag = 'smem constant byte address 0x4 - core index']
  #allocation1 [shape = 'u32[144,128]{1,0:T(1,128)}', space=vmem, size = 0x12000, scoped, tag = 'internal scratch']
  #allocation2 [shape = 'f32[18,32,128]{2,1,0:T(8,128)}', space=vmem, size = 0x48000, scoped, tag = 'scratch operand']
  #allocation3 [shape = 'bf16[256,1152]{1,0:T(8,128)(2,1)}', space=vmem, size = 0x90000, scoped, tag = 'scratch operand']
  %s0 = inlined_call_operand.hbm [shape: f32[2,16,16,128], index: 0, kind: input, shape index: {}]
  %s1 = inlined_call_operand.hbm [shape: bf16[1152,128], index: 1, kind: input, shape index: {}]
  %s2 = inlined_call_operand.vmem [shape: f32[1,128], index: 2, kind: input, shape index: {}]
  %s3 = inlined_call_operand.hbm [shape: f32[1,128], index: 3, kind: input, shape index: {}]
  %s4 = inlined_call_operand.hbm [shape: bf16[128,128], index: 4, kind: input, shape index: {}]
  %s5 = inlined_call_operand.hbm [shape: f32[2,256,128], index: 5, kind: output, shape index: {}]
  %s6 = sld [smem:[#allocation0]]
  $region69: #{mhca_forward.1} parent=0
    _
  %s8 = ssub.s32 1, %s6
  %s9 = scalar_select 0, %s8, %s6
  $region1: #{mhca_forward.1} parent=0
    #allocation4 [shape = 'u8[262144]{0}', space=vmem, size = 0x40000, scoped, tag = 'input window, operand 0']
    #allocation5 [shape = 's32[2]{0}', space=sflag, size = 0x8, scoped, tag = 'scoped memory for mhca_forward.1']
    #allocation6 [shape = 's32[2]{0}', space=sflag, size = 0x8, scoped, tag = 'scoped memory for mhca_forward.1']
    #allocation7 [shape = 'u8[294912]{0}', space=vmem, size = 0x48000, scoped, tag = 'input window, operand 1, single buffered']
    #allocation8 [shape = 's32[1]{0}', space=sflag, size = 0x4, scoped, tag = 'scoped memory for mhca_forward.1']
    #allocation9 [shape = 'u8[512]{0}', space=vmem, size = 0x400, scoped, tag = 'input window, operand 3, single buffered']
    #allocation10 [shape = 'u8[32768]{0}', space=vmem, size = 0x8000, scoped, tag = 'input window, operand 4, single buffered']
    #allocation11 [shape = 's32[1]{0}', space=sflag, size = 0x4, scoped, tag = 'scoped memory for mhca_forward.1']
    #allocation12 [shape = 'u8[262144]{0}', space=vmem, size = 0x40000, scoped, tag = 'output window, operand 0']
    %10 = vsyncpa [#allocation5], 0
    %s11 = scalar_lea.sflag [#allocation5], 1
    %12 = vsyncpa %s11, 0
    %13 = vsyncpa [#allocation8], 0
    %14 = vsyncpa [#allocation11], 0
    %15 = vsyncpa [#allocation6], 0
    %s16 = scalar_lea.sflag [#allocation6], 1
    %17 = vsyncpa %s16, 0
    loop: start=0, step=1, limit=4
    $region2: #{mhca_forward.1} parent=1 // loop_pre_header
      _
    $region3: #{mhca_forward.1} parent=1 // loop_header
      %s19 = sphi 0, %s23
      %p20 = scmp.ge.s32.totalorder %s19, 4
      %s29 = sphi 0, %s31
      %s32 = sphi 0, %s29
      %s33 = sphi 0, %s32
      %s49 = sphi 0, %s33
      %s53 = sphi 0, %s53
      %s55 = sphi 0, %s53
      %s56 = sphi 0, %s55
      %s70 = sphi 0, %s56
      %s74 = sphi 0, %s74
      %s76 = sphi 0, %s74
      %s77 = sphi 0, %s76
      %s91 = sphi 0, %s77
      %s95 = sphi 0, %s95
      %s97 = sphi 0, %s95
      %s98 = sphi 0, %s97
      %s112 = sphi 0, %s98
      %s116 = sphi 0, %s116
      %s118 = sphi 0, %s116
      %s119 = sphi 0, %s118
      %s133 = sphi 0, %s119
      %s139 = sphi 0, %s141
      %s142 = sphi 0, %s139
      %s143 = sphi 0, %s142
      %s159 = sphi 0, %s143
    $region4: #{mhca_forward.1} parent=1 // loop_header_branch
      %22 = sbr.rel (%p20) target = $region8
    $region5: #{mhca_forward.1} parent=1 // loop_body
      %s24 = ssub.s32 %s19, 1
      %s25 = ssub.s32 %s19, 2
      %s26 = sadd.s32 %s19, 1
      %s27 = ssub.s32 %s19, %s26
      %p28 = scmp.eq.s32.totalorder %s27, 0
      %s30 = sadd.s32 %s29, 1
      %s31 = scalar_select %p28, %s29, %s30
      %p34 = pneg %p28
      %p35 = scmp.eq.s32.totalorder %s19, 1
      %p36 = por %p34, %p35
      %p37 = scmp.ne.s32.totalorder %s29, %s32
      %p38 = scmp.eq.s32.totalorder %s19, 0
      %p39 = por %p37, %p38
      %p40 = scmp.ne.s32.totalorder %s29, %s32
      %p41 = scmp.eq.s32.totalorder %s24, 1
      %p42 = por %p40, %p41
      %p43 = scmp.ne.s32.totalorder %s32, %s33
      %p44 = scmp.eq.s32.totalorder %s24, 0
      %p45 = por %p43, %p44
      %p46 = scmp.ne.s32.totalorder %s32, %s33
      %p47 = scmp.eq.s32.totalorder %s25, 1
      %p48 = por %p46, %p47
      %p50 = scmp.ne.s32.totalorder %s33, %s49
      %p51 = scmp.eq.s32.totalorder %s25, 0
      %p52 = por %p50, %p51
      %s54 = sadd.s32 %s53, 1
      %p57 = scmp.eq.s32.totalorder %s19, 1
      %p58 = scmp.ne.s32.totalorder %s53, %s55
      %p59 = scmp.eq.s32.totalorder %s19, 0
      %p60 = por %p58, %p59
      %p61 = scmp.ne.s32.totalorder %s53, %s55
      %p62 = scmp.eq.s32.totalorder %s24, 1
      %p63 = por %p61, %p62
      %p64 = scmp.ne.s32.totalorder %s55, %s56
      %p65 = scmp.eq.s32.totalorder %s24, 0
      %p66 = por %p64, %p65
      %p67 = scmp.ne.s32.totalorder %s55, %s56
      %p68 = scmp.eq.s32.totalorder %s25, 1
      %p69 = por %p67, %p68
      %p71 = scmp.ne.s32.totalorder %s56, %s70
      %p72 = scmp.eq.s32.totalorder %s25, 0
      %p73 = por %p71, %p72
      %s75 = sadd.s32 %s74, 1
      %p78 = scmp.eq.s32.totalorder %s19, 1
      %p79 = scmp.ne.s32.totalorder %s74, %s76
      %p80 = scmp.eq.s32.totalorder %s19, 0
      %p81 = por %p79, %p80
      %p82 = scmp.ne.s32.totalorder %s74, %s76
      %p83 = scmp.eq.s32.totalorder %s24, 1
      %p84 = por %p82, %p83
      %p85 = scmp.ne.s32.totalorder %s76, %s77
      %p86 = scmp.eq.s32.totalorder %s24, 0
      %p87 = por %p85, %p86
      %p88 = scmp.ne.s32.totalorder %s76, %s77
      %p89 = scmp.eq.s32.totalorder %s25, 1
      %p90 = por %p88, %p89
      %p92 = scmp.ne.s32.totalorder %s77, %s91
      %p93 = scmp.eq.s32.totalorder %s25, 0
      %p94 = por %p92, %p93
      %s96 = sadd.s32 %s95, 1
      %p99 = scmp.eq.s32.totalorder %s19, 1
      %p100 = scmp.ne.s32.totalorder %s95, %s97
      %p101 = scmp.eq.s32.totalorder %s19, 0
      %p102 = por %p100, %p101
      %p103 = scmp.ne.s32.totalorder %s95, %s97
      %p104 = scmp.eq.s32.totalorder %s24, 1
      %p105 = por %p103, %p104
      %p106 = scmp.ne.s32.totalorder %s97, %s98
      %p107 = scmp.eq.s32.totalorder %s24, 0
      %p108 = por %p106, %p107
      %p109 = scmp.ne.s32.totalorder %s97, %s98
      %p110 = scmp.eq.s32.totalorder %s25, 1
      %p111 = por %p109, %p110
      %p113 = scmp.ne.s32.totalorder %s98, %s112
      %p114 = scmp.eq.s32.totalorder %s25, 0
      %p115 = por %p113, %p114
      %s117 = sadd.s32 %s116, 1
      %p120 = scmp.eq.s32.totalorder %s19, 1
      %p121 = scmp.ne.s32.totalorder %s116, %s118
      %p122 = scmp.eq.s32.totalorder %s19, 0
      %p123 = por %p121, %p122
      %p124 = scmp.ne.s32.totalorder %s116, %s118
      %p125 = scmp.eq.s32.totalorder %s24, 1
      %p126 = por %p124, %p125
      %p127 = scmp.ne.s32.totalorder %s118, %s119
      %p128 = scmp.eq.s32.totalorder %s24, 0
      %p129 = por %p127, %p128
      %p130 = scmp.ne.s32.totalorder %s118, %s119
      %p131 = scmp.eq.s32.totalorder %s25, 1
      %p132 = por %p130, %p131
      %p134 = scmp.ne.s32.totalorder %s119, %s133
      %p135 = scmp.eq.s32.totalorder %s25, 0
      %p136 = por %p134, %p135
      %s137 = ssub.s32 %s19, %s26
      %p138 = scmp.eq.s32.totalorder %s137, 0
      %s140 = sadd.s32 %s139, 1
      %s141 = scalar_select %p138, %s139, %s140
      %p144 = pneg %p138
      %p145 = scmp.eq.s32.totalorder %s19, 1
      %p146 = por %p144, %p145
      %p147 = scmp.ne.s32.totalorder %s139, %s142
      %p148 = scmp.eq.s32.totalorder %s19, 0
      %p149 = por %p147, %p148
      %p150 = scmp.ne.s32.totalorder %s139, %s142
      %p151 = scmp.eq.s32.totalorder %s24, 1
      %p152 = por %p150, %p151
      %p153 = scmp.ne.s32.totalorder %s142, %s143
      %p154 = scmp.eq.s32.totalorder %s24, 0
      %p155 = por %p153, %p154
      %p156 = scmp.ne.s32.totalorder %s142, %s143
      %p157 = scmp.eq.s32.totalorder %s25, 1
      %p158 = por %p156, %p157
      %p160 = scmp.ne.s32.totalorder %s143, %s159
      %p161 = scmp.eq.s32.totalorder %s25, 0
      %p162 = por %p160, %p161
      %p163 = scmp.le.s32.totalorder 1, %s19
      %p164 = scmp.lt.s32.totalorder %s19, 3
      %p165 = pnand %p163, %p164
      %p166 = pneg %p165
      // Predicated region
      $region9: #{mhca_forward.1} parent=5 // pred_check
        _
      $region10: #{mhca_forward.1} parent=5 // pred_check_branch
        %168 = sbr.rel (%p165) target = $region12
      $region11: #{mhca_forward.1} parent=5 // pred_region
        %s169 = ssub.s32 %s19, 1
        // Predicated region
        $region13: #{mhca_forward.1} parent=11 // pred_check
          %p170 = pneg %p66
        $region14: #{mhca_forward.1} parent=11 // pred_check_branch
          %172 = sbr.rel (%p170) target = $region16
        $region15: #{mhca_forward.1} parent=11 // pred_region
          %s174 = ssub.s32 9216, 9216
          %175 = vsyncadd [#allocation8], %s174
          %s176 = sshll.u32 [#allocation7], 4
          %s177 = int_to_ptr.vmem [resolvable:$true] %s176
          %182 = dma.hbm_to_vmem [thread:$0]  %s1, 9216, %s177, [#allocation8], 64, 64, 4
        $region16: #{mhca_forward.1} parent=11 // pred_fallthru
          _
        // Predicated region
        $region17: #{mhca_forward.1} parent=11 // pred_check
          %p183 = pneg %p87
        $region18: #{mhca_forward.1} parent=11 // pred_check_branch
          %185 = sbr.rel (%p183) target = $region20
        $region19: #{mhca_forward.1} parent=11 // pred_region
          _
        $region20: #{mhca_forward.1} parent=11 // pred_fallthru
          _
        // Predicated region
        $region21: #{mhca_forward.1} parent=11 // pred_check
          %p186 = pneg %p108
        $region22: #{mhca_forward.1} parent=11 // pred_check_branch
          %188 = sbr.rel (%p186) target = $region24
        $region23: #{mhca_forward.1} parent=11 // pred_region
          %s190 = ssub.s32 16, 16
          %191 = vsyncadd [#allocation8], %s190
          %s193 = sshll.u32 [#allocation9], 4
          %s194 = int_to_ptr.vmem [resolvable:$true] %s193
          %196 = dma.hbm_to_vmem [thread:$0]  %s3, 16, %s194, [#allocation8]
        $region24: #{mhca_forward.1} parent=11 // pred_fallthru
          _
        // Predicated region
        $region25: #{mhca_forward.1} parent=11 // pred_check
          %p197 = pneg %p129
        $region26: #{mhca_forward.1} parent=11 // pred_check_branch
          %199 = sbr.rel (%p197) target = $region28
        $region27: #{mhca_forward.1} parent=11 // pred_region
          %s201 = ssub.s32 1024, 1024
          %202 = vsyncadd [#allocation11], %s201
          %s203 = sshll.u32 [#allocation10], 4
          %s204 = int_to_ptr.vmem [resolvable:$true] %s203
          %209 = dma.hbm_to_vmem [thread:$0]  %s4, 1024, %s204, [#allocation11], 64, 64, 4
        $region28: #{mhca_forward.1} parent=11 // pred_fallthru
          _
      $region12: #{mhca_forward.1} parent=5 // pred_fallthru
        _
      %p210 = scmp.lt.s32.totalorder %s19, 2
      // Predicated region
      $region29: #{mhca_forward.1} parent=5 // pred_check
        %p211 = pneg %p210
      $region30: #{mhca_forward.1} parent=5 // pred_check_branch
        %213 = sbr.rel (%p211) target = $region32
      $region31: #{mhca_forward.1} parent=5 // pred_region
        // Predicated region
        $region33: #{mhca_forward.1} parent=31 // pred_check
          %p214 = pneg %p39
        $region34: #{mhca_forward.1} parent=31 // pred_check_branch
          %216 = sbr.rel (%p214) target = $region36
        $region35: #{mhca_forward.1} parent=31 // pred_region
          %s217 = sand.u32 %s29, 1
          %s218 = scalar_lea.sflag [#allocation5], %s217
          %s219 = sand.u32 %s29, 1
          %s220 = smul.addr %s219, 256
          %s221 = scalar_lea.vmem [#allocation4], %s220
          %s223 = ssub.s32 4096, 4096
          %224 = vsyncadd %s218, %s223
          %s225 = smul.addr %s19, 32
          %s226 = smul.addr %s225, 128
          %s227 = scalar_lea.hbm %s0, %s226
          %s228 = sshll.u32 %s221, 4
          %s229 = int_to_ptr.vmem [resolvable:$true] %s228
          %234 = dma.hbm_to_vmem [thread:$0]  %s227, 4096, %s229, %s218, 128, 128, 8
        $region36: #{mhca_forward.1} parent=31 // pred_fallthru
          _
      $region32: #{mhca_forward.1} parent=5 // pred_fallthru
        _
      %p235 = scmp.le.s32.totalorder 1, %s19
      %p236 = scmp.lt.s32.totalorder %s19, 3
      %p237 = pnand %p235, %p236
      %p238 = pneg %p237
      // Predicated region
      $region37: #{mhca_forward.1} parent=5 // pred_check
        _
      $region38: #{mhca_forward.1} parent=5 // pred_check_branch
        %240 = sbr.rel (%p237) target = $region40
      $region39: #{mhca_forward.1} parent=5 // pred_region
        %s241 = ssub.s32 %s19, 1
        %s242 = sand.u32 %s32, 1
        %s243 = scalar_lea.sflag [#allocation5], %s242
        %s244 = sand.u32 %s32, 1
        %s245 = smul.addr %s244, 256
        %s246 = scalar_lea.vmem [#allocation4], %s245
        // Predicated region
        $region41: #{mhca_forward.1} parent=39 // pred_check
          %p247 = pneg %p45
        $region42: #{mhca_forward.1} parent=39 // pred_check_branch
          %249 = sbr.rel (%p247) target = $region44
        $region43: #{mhca_forward.1} parent=39 // pred_region
          %250 = dma.done %s243, 4096
        $region44: #{mhca_forward.1} parent=39 // pred_fallthru
          _
        // Predicated region
        $region45: #{mhca_forward.1} parent=39 // pred_check
          %p251 = pneg %p66
        $region46: #{mhca_forward.1} parent=39 // pred_check_branch
          %253 = sbr.rel (%p251) target = $region48
        $region47: #{mhca_forward.1} parent=39 // pred_region
          %254 = dma.done [#allocation8], 9216
        $region48: #{mhca_forward.1} parent=39 // pred_fallthru
          _
        // Predicated region
        $region49: #{mhca_forward.1} parent=39 // pred_check
          %p255 = pneg %p108
        $region50: #{mhca_forward.1} parent=39 // pred_check_branch
          %257 = sbr.rel (%p255) target = $region52
        $region51: #{mhca_forward.1} parent=39 // pred_region
          %258 = dma.done [#allocation8], 16
        $region52: #{mhca_forward.1} parent=39 // pred_fallthru
          _
        // Predicated region
        $region53: #{mhca_forward.1} parent=39 // pred_check
          %p259 = pneg %p129
        $region54: #{mhca_forward.1} parent=39 // pred_check_branch
          %261 = sbr.rel (%p259) target = $region56
        $region55: #{mhca_forward.1} parent=39 // pred_region
          %262 = dma.done [#allocation11], 1024
        $region56: #{mhca_forward.1} parent=39 // pred_fallthru
          _
        %s263 = sand.u32 %s32, 1
        %s264 = scalar_lea.sflag [#allocation5], %s263
        %s265 = sand.u32 %s32, 1
        %s266 = smul.addr %s265, 256
        %s267 = scalar_lea.vmem [#allocation4], %s266
        %p268 = pneg %p45
        %p269 = pneg %p42
        %p270 = pneg %p66
        %p271 = pneg %p63
        %p272 = pneg %p87
        %p273 = pneg %p84
        %p274 = pneg %p108
        %p275 = pneg %p105
        %p276 = pneg %p129
        %p277 = pneg %p126
        %p278 = pneg %p155
        %p279 = pneg %p152
        %s280 = sand.u32 %s142, 1
        %s281 = scalar_lea.sflag [#allocation6], %s280
        %s282 = sand.u32 %s142, 1
        %s283 = smul.addr %s282, 256
        %s284 = scalar_lea.vmem [#allocation12], %s283
        %286 = vst [vmem:[#allocation2] sm:$0xff] 0.0
        %287 = vst [vmem:[#allocation2 + $0x8] sm:$0xff] 0.0
        %288 = vst [vmem:[#allocation2 + $0x10] sm:$0xff] 0.0
        %289 = vst [vmem:[#allocation2 + $0x18] sm:$0xff] 0.0
        %290 = vst [vmem:[#allocation2 + $0x20] sm:$0xff] 0.0
        %291 = vst [vmem:[#allocation2 + $0x28] sm:$0xff] 0.0
        %292 = vst [vmem:[#allocation2 + $0x30] sm:$0xff] 0.0
        %293 = vst [vmem:[#allocation2 + $0x38] sm:$0xff] 0.0
        %294 = vst [vmem:[#allocation2 + $0x40] sm:$0xff] 0.0
        %295 = vst [vmem:[#allocation2 + $0x48] sm:$0xff] 0.0
        %296 = vst [vmem:[#allocation2 + $0x50] sm:$0xff] 0.0
        %297 = vst [vmem:[#allocation2 + $0x58] sm:$0xff] 0.0
        %298 = vst [vmem:[#allocation2 + $0x60] sm:$0xff] 0.0
        %299 = vst [vmem:[#allocation2 + $0x68] sm:$0xff] 0.0
        %300 = vst [vmem:[#allocation2 + $0x70] sm:$0xff] 0.0
        %301 = vst [vmem:[#allocation2 + $0x78] sm:$0xff] 0.0
        %302 = vst [vmem:[#allocation2 + $0x80] sm:$0xff] 0.0
        %303 = vst [vmem:[#allocation2 + $0x88] sm:$0xff] 0.0
        %304 = vst [vmem:[#allocation2 + $0x90] sm:$0xff] 0.0
        %305 = vst [vmem:[#allocation2 + $0x98] sm:$0xff] 0.0
        %306 = vst [vmem:[#allocation2 + $0xa0] sm:$0xff] 0.0
        %307 = vst [vmem:[#allocation2 + $0xa8] sm:$0xff] 0.0
        %308 = vst [vmem:[#allocation2 + $0xb0] sm:$0xff] 0.0
        %309 = vst [vmem:[#allocation2 + $0xb8] sm:$0xff] 0.0
        %310 = vst [vmem:[#allocation2 + $0xc0] sm:$0xff] 0.0
        %311 = vst [vmem:[#allocation2 + $0xc8] sm:$0xff] 0.0
        %312 = vst [vmem:[#allocation2 + $0xd0] sm:$0xff] 0.0
        %313 = vst [vmem:[#allocation2 + $0xd8] sm:$0xff] 0.0
        %314 = vst [vmem:[#allocation2 + $0xe0] sm:$0xff] 0.0
        %315 = vst [vmem:[#allocation2 + $0xe8] sm:$0xff] 0.0
        %316 = vst [vmem:[#allocation2 + $0xf0] sm:$0xff] 0.0
        %317 = vst [vmem:[#allocation2 + $0xf8] sm:$0xff] 0.0
        %318 = vst [vmem:[#allocation2 + $0x100] sm:$0xff] 0.0
        %319 = vst [vmem:[#allocation2 + $0x108] sm:$0xff] 0.0
        %320 = vst [vmem:[#allocation2 + $0x110] sm:$0xff] 0.0
        %321 = vst [vmem:[#allocation2 + $0x118] sm:$0xff] 0.0
        %322 = vst [vmem:[#allocation2 + $0x120] sm:$0xff] 0.0
        %323 = vst [vmem:[#allocation2 + $0x128] sm:$0xff] 0.0
        %324 = vst [vmem:[#allocation2 + $0x130] sm:$0xff] 0.0
        %325 = vst [vmem:[#allocation2 + $0x138] sm:$0xff] 0.0
        %326 = vst [vmem:[#allocation2 + $0x140] sm:$0xff] 0.0
        %327 = vst [vmem:[#allocation2 + $0x148] sm:$0xff] 0.0
        %328 = vst [vmem:[#allocation2 + $0x150] sm:$0xff] 0.0
        %329 = vst [vmem:[#allocation2 + $0x158] sm:$0xff] 0.0
        %330 = vst [vmem:[#allocation2 + $0x160] sm:$0xff] 0.0
        %331 = vst [vmem:[#allocation2 + $0x168] sm:$0xff] 0.0
        %332 = vst [vmem:[#allocation2 + $0x170] sm:$0xff] 0.0
        %333 = vst [vmem:[#allocation2 + $0x178] sm:$0xff] 0.0
        %334 = vst [vmem:[#allocation2 + $0x180] sm:$0xff] 0.0
        %335 = vst [vmem:[#allocation2 + $0x188] sm:$0xff] 0.0
        %336 = vst [vmem:[#allocation2 + $0x190] sm:$0xff] 0.0
        %337 = vst [vmem:[#allocation2 + $0x198] sm:$0xff] 0.0
        %338 = vst [vmem:[#allocation2 + $0x1a0] sm:$0xff] 0.0
        %339 = vst [vmem:[#allocation2 + $0x1a8] sm:$0xff] 0.0
        %340 = vst [vmem:[#allocation2 + $0x1b0] sm:$0xff] 0.0
        %341 = vst [vmem:[#allocation2 + $0x1b8] sm:$0xff] 0.0
        %342 = vst [vmem:[#allocation2 + $0x1c0] sm:$0xff] 0.0
        %343 = vst [vmem:[#allocation2 + $0x1c8] sm:$0xff] 0.0
        %344 = vst [vmem:[#allocation2 + $0x1d0] sm:$0xff] 0.0
        %345 = vst [vmem:[#allocation2 + $0x1d8] sm:$0xff] 0.0
        %346 = vst [vmem:[#allocation2 + $0x1e0] sm:$0xff] 0.0
        %347 = vst [vmem:[#allocation2 + $0x1e8] sm:$0xff] 0.0
        %348 = vst [vmem:[#allocation2 + $0x1f0] sm:$0xff] 0.0
        %349 = vst [vmem:[#allocation2 + $0x1f8] sm:$0xff] 0.0
        %350 = vst [vmem:[#allocation2 + $0x200] sm:$0xff] 0.0
        %351 = vst [vmem:[#allocation2 + $0x208] sm:$0xff] 0.0
        %352 = vst [vmem:[#allocation2 + $0x210] sm:$0xff] 0.0
        %353 = vst [vmem:[#allocation2 + $0x218] sm:$0xff] 0.0
        %354 = vst [vmem:[#allocation2 + $0x220] sm:$0xff] 0.0
        %355 = vst [vmem:[#allocation2 + $0x228] sm:$0xff] 0.0
        %356 = vst [vmem:[#allocation2 + $0x230] sm:$0xff] 0.0
        %357 = vst [vmem:[#allocation2 + $0x238] sm:$0xff] 0.0
        %v358 = vld [vmem:[%s246] sm:$0xff]
        %v359 = vld [vmem:[%s246 + $0x8] sm:$0xff]
        %v360 = vld [vmem:[%s246 + $0x10] sm:$0xff]
        %v361 = vld [vmem:[%s246 + $0x18] sm:$0xff]
        %v362 = vld [vmem:[%s246 + $0x20] sm:$0xff]
        %v363 = vld [vmem:[%s246 + $0x28] sm:$0xff]
        %v364 = vld [vmem:[%s246 + $0x30] sm:$0xff]
        %v365 = vld [vmem:[%s246 + $0x38] sm:$0xff]
        %v366 = vld [vmem:[%s246 + $0x40] sm:$0xff]
        %v367 = vld [vmem:[%s246 + $0x48] sm:$0xff]
        %v368 = vld [vmem:[%s246 + $0x50] sm:$0xff]
        %v369 = vld [vmem:[%s246 + $0x58] sm:$0xff]
        %v370 = vld [vmem:[%s246 + $0x60] sm:$0xff]
        %v371 = vld [vmem:[%s246 + $0x68] sm:$0xff]
        %v372 = vld [vmem:[%s246 + $0x70] sm:$0xff]
        %v373 = vld [vmem:[%s246 + $0x78] sm:$0xff]
        %v374 = vld [vmem:[%s246 + $0x80] sm:$0xff]
        %v375 = vld [vmem:[%s246 + $0x88] sm:$0xff]
        %v376 = vld [vmem:[%s246 + $0x90] sm:$0xff]
        %v377 = vld [vmem:[%s246 + $0x98] sm:$0xff]
        %v378 = vld [vmem:[%s246 + $0xa0] sm:$0xff]
        %v379 = vld [vmem:[%s246 + $0xa8] sm:$0xff]
        %v380 = vld [vmem:[%s246 + $0xb0] sm:$0xff]
        %v381 = vld [vmem:[%s246 + $0xb8] sm:$0xff]
        %v382 = vld [vmem:[%s246 + $0xc0] sm:$0xff]
        %v383 = vld [vmem:[%s246 + $0xc8] sm:$0xff]
        %v384 = vld [vmem:[%s246 + $0xd0] sm:$0xff]
        %v385 = vld [vmem:[%s246 + $0xd8] sm:$0xff]
        %v386 = vld [vmem:[%s246 + $0xe0] sm:$0xff]
        %v387 = vld [vmem:[%s246 + $0xe8] sm:$0xff]
        %v388 = vld [vmem:[%s246 + $0xf0] sm:$0xff]
        %v389 = vld [vmem:[%s246 + $0xf8] sm:$0xff]
        %s390 = scalar_lea.vmem [#allocation2], 32
        %391 = vst [vmem:[%s390 + $0x8] sm:$0xff] %v358
        %392 = vst [vmem:[%s390 + $0x10] sm:$0xff] %v359
        %393 = vst [vmem:[%s390 + $0x28] sm:$0xff] %v360
        %394 = vst [vmem:[%s390 + $0x30] sm:$0xff] %v361
        %395 = vst [vmem:[%s390 + $0x48] sm:$0xff] %v362
        %396 = vst [vmem:[%s390 + $0x50] sm:$0xff] %v363
        %397 = vst [vmem:[%s390 + $0x68] sm:$0xff] %v364
        %398 = vst [vmem:[%s390 + $0x70] sm:$0xff] %v365
        %399 = vst [vmem:[%s390 + $0x88] sm:$0xff] %v366
        %400 = vst [vmem:[%s390 + $0x90] sm:$0xff] %v367
        %401 = vst [vmem:[%s390 + $0xa8] sm:$0xff] %v368
        %402 = vst [vmem:[%s390 + $0xb0] sm:$0xff] %v369
        %403 = vst [vmem:[%s390 + $0xc8] sm:$0xff] %v370
        %404 = vst [vmem:[%s390 + $0xd0] sm:$0xff] %v371
        %405 = vst [vmem:[%s390 + $0xe8] sm:$0xff] %v372
        %406 = vst [vmem:[%s390 + $0xf0] sm:$0xff] %v373
        %407 = vst [vmem:[%s390 + $0x108] sm:$0xff] %v374
        %408 = vst [vmem:[%s390 + $0x110] sm:$0xff] %v375
        %409 = vst [vmem:[%s390 + $0x128] sm:$0xff] %v376
        %410 = vst [vmem:[%s390 + $0x130] sm:$0xff] %v377
        %411 = vst [vmem:[%s390 + $0x148] sm:$0xff] %v378
        %412 = vst [vmem:[%s390 + $0x150] sm:$0xff] %v379
        %413 = vst [vmem:[%s390 + $0x168] sm:$0xff] %v380
        %414 = vst [vmem:[%s390 + $0x170] sm:$0xff] %v381
        %415 = vst [vmem:[%s390 + $0x188] sm:$0xff] %v382
        %416 = vst [vmem:[%s390 + $0x190] sm:$0xff] %v383
        %417 = vst [vmem:[%s390 + $0x1a8] sm:$0xff] %v384
        %418 = vst [vmem:[%s390 + $0x1b0] sm:$0xff] %v385
        %419 = vst [vmem:[%s390 + $0x1c8] sm:$0xff] %v386
        %420 = vst [vmem:[%s390 + $0x1d0] sm:$0xff] %v387
        %421 = vst [vmem:[%s390 + $0x1e8] sm:$0xff] %v388
        %422 = vst [vmem:[%s390 + $0x1f0] sm:$0xff] %v389
        %v423 = vld [vmem:[#allocation2 + $0x7] sm:$0xff]
        %v424 = vld [vmem:[#allocation2 + $0xf] sm:$0xff]
        %v425 = vld [vmem:[#allocation2 + $0x27] sm:$0xff]
        %v426 = vld [vmem:[#allocation2 + $0x2f] sm:$0xff]
        %v427 = vld [vmem:[#allocation2 + $0x47] sm:$0xff]
        %v428 = vld [vmem:[#allocation2 + $0x4f] sm:$0xff]
        %v429 = vld [vmem:[#allocation2 + $0x67] sm:$0xff]
        %v430 = vld [vmem:[#allocation2 + $0x6f] sm:$0xff]
        %v431 = vld [vmem:[#allocation2 + $0x87] sm:$0xff]
        %v432 = vld [vmem:[#allocation2 + $0x8f] sm:$0xff]
        %v433 = vld [vmem:[#allocation2 + $0xa7] sm:$0xff]
        %v434 = vld [vmem:[#allocation2 + $0xaf] sm:$0xff]
        %v435 = vld [vmem:[#allocation2 + $0xc7] sm:$0xff]
        %v436 = vld [vmem:[#allocation2 + $0xcf] sm:$0xff]
        %v437 = vld [vmem:[#allocation2 + $0xe7] sm:$0xff]
        %v438 = vld [vmem:[#allocation2 + $0xef] sm:$0xff]
        %v439 = vld [vmem:[#allocation2 + $0x107] sm:$0xff]
        %v440 = vld [vmem:[#allocation2 + $0x10f] sm:$0xff]
        %v441 = vld [vmem:[#allocation2 + $0x127] sm:$0xff]
        %v442 = vld [vmem:[#allocation2 + $0x12f] sm:$0xff]
        %v443 = vld [vmem:[#allocation2 + $0x147] sm:$0xff]
        %v444 = vld [vmem:[#allocation2 + $0x14f] sm:$0xff]
        %v445 = vld [vmem:[#allocation2 + $0x167] sm:$0xff]
        %v446 = vld [vmem:[#allocation2 + $0x16f] sm:$0xff]
        %v447 = vld [vmem:[#allocation2 + $0x187] sm:$0xff]
        %v448 = vld [vmem:[#allocation2 + $0x18f] sm:$0xff]
        %v449 = vld [vmem:[#allocation2 + $0x1a7] sm:$0xff]
        %v450 = vld [vmem:[#allocation2 + $0x1af] sm:$0xff]
        %v451 = vld [vmem:[#allocation2 + $0x1c7] sm:$0xff]
        %v452 = vld [vmem:[#allocation2 + $0x1cf] sm:$0xff]
        %v453 = vld [vmem:[#allocation2 + $0x1e7] sm:$0xff]
        %v454 = vld [vmem:[#allocation2 + $0x1ef] sm:$0xff]
        %v455 = vpack.c.bf16 %v424, %v423
        %v456 = vpack.c.bf16 %v426, %v425
        %v457 = vpack.c.bf16 %v428, %v427
        %v458 = vpack.c.bf16 %v430, %v429
        %v459 = vpack.c.bf16 %v432, %v431
        %v460 = vpack.c.bf16 %v434, %v433
        %v461 = vpack.c.bf16 %v436, %v435
        %v462 = vpack.c.bf16 %v438, %v437
        %v463 = vpack.c.bf16 %v440, %v439
        %v464 = vpack.c.bf16 %v442, %v441
        %v465 = vpack.c.bf16 %v444, %v443
        %v466 = vpack.c.bf16 %v446, %v445
        %v467 = vpack.c.bf16 %v448, %v447
        %v468 = vpack.c.bf16 %v450, %v449
        %v469 = vpack.c.bf16 %v452, %v451
        %v470 = vpack.c.bf16 %v454, %v453
        %v487 = vunpack.c.l.b16 %v455
        %v488 = vunpack.c.h.b16 %v455
        %v489 = vunpack.c.l.b16 %v456
        %v490 = vunpack.c.h.b16 %v456
        %v491 = vunpack.c.l.b16 %v457
        %v492 = vunpack.c.h.b16 %v457
        %v493 = vunpack.c.l.b16 %v458
        %v494 = vunpack.c.h.b16 %v458
        %v495 = vunpack.c.l.b16 %v459
        %v496 = vunpack.c.h.b16 %v459
        %v497 = vunpack.c.l.b16 %v460
        %v498 = vunpack.c.h.b16 %v460
        %v499 = vunpack.c.l.b16 %v461
        %v500 = vunpack.c.h.b16 %v461
        %v501 = vunpack.c.l.b16 %v462
        %v502 = vunpack.c.h.b16 %v462
        %v503 = vunpack.c.l.b16 %v463
        %v504 = vunpack.c.h.b16 %v463
        %v505 = vunpack.c.l.b16 %v464
        %v506 = vunpack.c.h.b16 %v464
        %v507 = vunpack.c.l.b16 %v465
        %v508 = vunpack.c.h.b16 %v465
        %v509 = vunpack.c.l.b16 %v466
        %v510 = vunpack.c.h.b16 %v466
        %v511 = vunpack.c.l.b16 %v467
        %v512 = vunpack.c.h.b16 %v467
        %v513 = vunpack.c.l.b16 %v468
        %v514 = vunpack.c.h.b16 %v468
        %v515 = vunpack.c.l.b16 %v469
        %v516 = vunpack.c.h.b16 %v469
        %v517 = vunpack.c.l.b16 %v470
        %v518 = vunpack.c.h.b16 %v470
        %v519 = vpack.c.b16 %v487, %v487
        %v520 = vpack.c.b16 %v488, %v488
        %v521 = vpack.c.b16 %v489, %v489
        %v522 = vpack.c.b16 %v490, %v490
        %v523 = vpack.c.b16 %v491, %v491
        %v524 = vpack.c.b16 %v492, %v492
        %v525 = vpack.c.b16 %v493, %v493
        %v526 = vpack.c.b16 %v494, %v494
        %v527 = vpack.c.b16 %v495, %v495
        %v528 = vpack.c.b16 %v496, %v496
        %v529 = vpack.c.b16 %v497, %v497
        %v530 = vpack.c.b16 %v498, %v498
        %v531 = vpack.c.b16 %v499, %v499
        %v532 = vpack.c.b16 %v500, %v500
        %v533 = vpack.c.b16 %v501, %v501
        %v534 = vpack.c.b16 %v502, %v502
        %v535 = vpack.c.b16 %v503, %v503
        %v536 = vpack.c.b16 %v504, %v504
        %v537 = vpack.c.b16 %v505, %v505
        %v538 = vpack.c.b16 %v506, %v506
        %v539 = vpack.c.b16 %v507, %v507
        %v540 = vpack.c.b16 %v508, %v508
        %v541 = vpack.c.b16 %v509, %v509
        %v542 = vpack.c.b16 %v510, %v510
        %v543 = vpack.c.b16 %v511, %v511
        %v544 = vpack.c.b16 %v512, %v512
        %v545 = vpack.c.b16 %v513, %v513
        %v546 = vpack.c.b16 %v514, %v514
        %v547 = vpack.c.b16 %v515, %v515
        %v548 = vpack.c.b16 %v516, %v516
        %v549 = vpack.c.b16 %v517, %v517
        %v550 = vpack.c.b16 %v518, %v518
        %583 = vst [vmem:[#allocation3] sm:$0xf] %v519
        %584 = vst [vmem:[#allocation3 + $0x24] sm:$0xf] %v520
        %585 = vst [vmem:[#allocation3 + $0x48] sm:$0xf] %v521
        %586 = vst [vmem:[#allocation3 + $0x6c] sm:$0xf] %v522
        %587 = vst [vmem:[#allocation3 + $0x90] sm:$0xf] %v523
        %588 = vst [vmem:[#allocation3 + $0xb4] sm:$0xf] %v524
        %589 = vst [vmem:[#allocation3 + $0xd8] sm:$0xf] %v525
        %590 = vst [vmem:[#allocation3 + $0xfc] sm:$0xf] %v526
        %591 = vst [vmem:[#allocation3 + $0x120] sm:$0xf] %v527
        %592 = vst [vmem:[#allocation3 + $0x144] sm:$0xf] %v528
        %593 = vst [vmem:[#allocation3 + $0x168] sm:$0xf] %v529
        %594 = vst [vmem:[#allocation3 + $0x18c] sm:$0xf] %v530
        %595 = vst [vmem:[#allocation3 + $0x1b0] sm:$0xf] %v531
        %596 = vst [vmem:[#allocation3 + $0x1d4] sm:$0xf] %v532
        %597 = vst [vmem:[#allocation3 + $0x1f8] sm:$0xf] %v533
        %598 = vst [vmem:[#allocation3 + $0x21c] sm:$0xf] %v534
        %599 = vst [vmem:[#allocation3 + $0x240] sm:$0xf] %v535
        %600 = vst [vmem:[#allocation3 + $0x264] sm:$0xf] %v536
        %601 = vst [vmem:[#allocation3 + $0x288] sm:$0xf] %v537
        %602 = vst [vmem:[#allocation3 + $0x2ac] sm:$0xf] %v538
        %603 = vst [vmem:[#allocation3 + $0x2d0] sm:$0xf] %v539
        %604 = vst [vmem:[#allocation3 + $0x2f4] sm:$0xf] %v540
        %605 = vst [vmem:[#allocation3 + $0x318] sm:$0xf] %v541
        %606 = vst [vmem:[#allocation3 + $0x33c] sm:$0xf] %v542
        %607 = vst [vmem:[#allocation3 + $0x360] sm:$0xf] %v543
        %608 = vst [vmem:[#allocation3 + $0x384] sm:$0xf] %v544
        %609 = vst [vmem:[#allocation3 + $0x3a8] sm:$0xf] %v545
        %610 = vst [vmem:[#allocation3 + $0x3cc] sm:$0xf] %v546
        %611 = vst [vmem:[#allocation3 + $0x3f0] sm:$0xf] %v547
        %612 = vst [vmem:[#allocation3 + $0x414] sm:$0xf] %v548
        %613 = vst [vmem:[#allocation3 + $0x438] sm:$0xf] %v549
        %614 = vst [vmem:[#allocation3 + $0x45c] sm:$0xf] %v550
        %v615 = vld [vmem:[#allocation2 + $0x8] sm:$0xff]
        %v616 = vld [vmem:[#allocation2 + $0x10] sm:$0xff]
        %v617 = vld [vmem:[#allocation2 + $0x28] sm:$0xff]
        %v618 = vld [vmem:[#allocation2 + $0x30] sm:$0xff]
        %v619 = vld [vmem:[#allocation2 + $0x48] sm:$0xff]
        %v620 = vld [vmem:[#allocation2 + $0x50] sm:$0xff]
        %v621 = vld [vmem:[#allocation2 + $0x68] sm:$0xff]
        %v622 = vld [vmem:[#allocation2 + $0x70] sm:$0xff]
        %v623 = vld [vmem:[#allocation2 + $0x88] sm:$0xff]
        %v624 = vld [vmem:[#allocation2 + $0x90] sm:$0xff]
        %v625 = vld [vmem:[#allocation2 + $0xa8] sm:$0xff]
        %v626 = vld [vmem:[#allocation2 + $0xb0] sm:$0xff]
        %v627 = vld [vmem:[#allocation2 + $0xc8] sm:$0xff]
        %v628 = vld [vmem:[#allocation2 + $0xd0] sm:$0xff]
        %v629 = vld [vmem:[#allocation2 + $0xe8] sm:$0xff]
        %v630 = vld [vmem:[#allocation2 + $0xf0] sm:$0xff]
        %v631 = vld [vmem:[#allocation2 + $0x108] sm:$0xff]
        %v632 = vld [vmem:[#allocation2 + $0x110] sm:$0xff]
        %v633 = vld [vmem:[#allocation2 + $0x128] sm:$0xff]
        %v634 = vld [vmem:[#allocation2 + $0x130] sm:$0xff]
        %v635 = vld [vmem:[#allocation2 + $0x148] sm:$0xff]
        %v636 = vld [vmem:[#allocation2 + $0x150] sm:$0xff]
        %v637 = vld [vmem:[#allocation2 + $0x168] sm:$0xff]
        %v638 = vld [vmem:[#allocation2 + $0x170] sm:$0xff]
        %v639 = vld [vmem:[#allocation2 + $0x188] sm:$0xff]
        %v640 = vld [vmem:[#allocation2 + $0x190] sm:$0xff]
        %v641 = vld [vmem:[#allocation2 + $0x1a8] sm:$0xff]
        %v642 = vld [vmem:[#allocation2 + $0x1b0] sm:$0xff]
        %v643 = vld [vmem:[#allocation2 + $0x1c8] sm:$0xff]
        %v644 = vld [vmem:[#allocation2 + $0x1d0] sm:$0xff]
        %v645 = vld [vmem:[#allocation2 + $0x1e8] sm:$0xff]
        %v646 = vld [vmem:[#allocation2 + $0x1f0] sm:$0xff]
        %v647 = vpack.c.bf16 %v616, %v615
        %v648 = vpack.c.bf16 %v618, %v617
        %v649 = vpack.c.bf16 %v620, %v619
        %v650 = vpack.c.bf16 %v622, %v621
        %v651 = vpack.c.bf16 %v624, %v623
        %v652 = vpack.c.bf16 %v626, %v625
        %v653 = vpack.c.bf16 %v628, %v627
        %v654 = vpack.c.bf16 %v630, %v629
        %v655 = vpack.c.bf16 %v632, %v631
        %v656 = vpack.c.bf16 %v634, %v633
        %v657 = vpack.c.bf16 %v636, %v635
        %v658 = vpack.c.bf16 %v638, %v637
        %v659 = vpack.c.bf16 %v640, %v639
        %v660 = vpack.c.bf16 %v642, %v641
        %v661 = vpack.c.bf16 %v644, %v643
        %v662 = vpack.c.bf16 %v646, %v645
        %v679 = vunpack.c.l.b16 %v647
        %v680 = vunpack.c.h.b16 %v647
        %v681 = vunpack.c.l.b16 %v648
        %v682 = vunpack.c.h.b16 %v648
        %v683 = vunpack.c.l.b16 %v649
        %v684 = vunpack.c.h.b16 %v649
        %v685 = vunpack.c.l.b16 %v650
        %v686 = vunpack.c.h.b16 %v650
        %v687 = vunpack.c.l.b16 %v651
        %v688 = vunpack.c.h.b16 %v651
        %v689 = vunpack.c.l.b16 %v652
        %v690 = vunpack.c.h.b16 %v652
        %v691 = vunpack.c.l.b16 %v653
        %v692 = vunpack.c.h.b16 %v653
        %v693 = vunpack.c.l.b16 %v654
        %v694 = vunpack.c.h.b16 %v654
        %v695 = vunpack.c.l.b16 %v655
        %v696 = vunpack.c.h.b16 %v655
        %v697 = vunpack.c.l.b16 %v656
        %v698 = vunpack.c.h.b16 %v656
        %v699 = vunpack.c.l.b16 %v657
        %v700 = vunpack.c.h.b16 %v657
        %v701 = vunpack.c.l.b16 %v658
        %v702 = vunpack.c.h.b16 %v658
        %v703 = vunpack.c.l.b16 %v659
        %v704 = vunpack.c.h.b16 %v659
        %v705 = vunpack.c.l.b16 %v660
        %v706 = vunpack.c.h.b16 %v660
        %v707 = vunpack.c.l.b16 %v661
        %v708 = vunpack.c.h.b16 %v661
        %v709 = vunpack.c.l.b16 %v662
        %v710 = vunpack.c.h.b16 %v662
        %v711 = vpack.c.b16 %v679, %v679
        %v712 = vpack.c.b16 %v680, %v680
        %v713 = vpack.c.b16 %v681, %v681
        %v714 = vpack.c.b16 %v682, %v682
        %v715 = vpack.c.b16 %v683, %v683
        %v716 = vpack.c.b16 %v684, %v684
        %v717 = vpack.c.b16 %v685, %v685
        %v718 = vpack.c.b16 %v686, %v686
        %v719 = vpack.c.b16 %v687, %v687
        %v720 = vpack.c.b16 %v688, %v688
        %v721 = vpack.c.b16 %v689, %v689
        %v722 = vpack.c.b16 %v690, %v690
        %v723 = vpack.c.b16 %v691, %v691
        %v724 = vpack.c.b16 %v692, %v692
        %v725 = vpack.c.b16 %v693, %v693
        %v726 = vpack.c.b16 %v694, %v694
        %v727 = vpack.c.b16 %v695, %v695
        %v728 = vpack.c.b16 %v696, %v696
        %v729 = vpack.c.b16 %v697, %v697
        %v730 = vpack.c.b16 %v698, %v698
        %v731 = vpack.c.b16 %v699, %v699
        %v732 = vpack.c.b16 %v700, %v700
        %v733 = vpack.c.b16 %v701, %v701
        %v734 = vpack.c.b16 %v702, %v702
        %v735 = vpack.c.b16 %v703, %v703
        %v736 = vpack.c.b16 %v704, %v704
        %v737 = vpack.c.b16 %v705, %v705
        %v738 = vpack.c.b16 %v706, %v706
        %v739 = vpack.c.b16 %v707, %v707
        %v740 = vpack.c.b16 %v708, %v708
        %v741 = vpack.c.b16 %v709, %v709
        %v742 = vpack.c.b16 %v710, %v710
        %775 = vst [vmem:[#allocation3 + $0x4] sm:$0xf] %v711
        %776 = vst [vmem:[#allocation3 + $0x28] sm:$0xf] %v712
        %777 = vst [vmem:[#allocation3 + $0x4c] sm:$0xf] %v713
        %778 = vst [vmem:[#allocation3 + $0x70] sm:$0xf] %v714
        %779 = vst [vmem:[#allocation3 + $0x94] sm:$0xf] %v715
        %780 = vst [vmem:[#allocation3 + $0xb8] sm:$0xf] %v716
        %781 = vst [vmem:[#allocation3 + $0xdc] sm:$0xf] %v717
        %782 = vst [vmem:[#allocation3 + $0x100] sm:$0xf] %v718
        %783 = vst [vmem:[#allocation3 + $0x124] sm:$0xf] %v719
        %784 = vst [vmem:[#allocation3 + $0x148] sm:$0xf] %v720
        %785 = vst [vmem:[#allocation3 + $0x16c] sm:$0xf] %v721
        %786 = vst [vmem:[#allocation3 + $0x190] sm:$0xf] %v722
        %787 = vst [vmem:[#allocation3 + $0x1b4] sm:$0xf] %v723
        %788 = vst [vmem:[#allocation3 + $0x1d8] sm:$0xf] %v724
        %789 = vst [vmem:[#allocation3 + $0x1fc] sm:$0xf] %v725
        %790 = vst [vmem:[#allocation3 + $0x220] sm:$0xf] %v726
        %791 = vst [vmem:[#allocation3 + $0x244] sm:$0xf] %v727
        %792 = vst [vmem:[#allocation3 + $0x268] sm:$0xf] %v728
        %793 = vst [vmem:[#allocation3 + $0x28c] sm:$0xf] %v729
        %794 = vst [vmem:[#allocation3 + $0x2b0] sm:$0xf] %v730
        %795 = vst [vmem:[#allocation3 + $0x2d4] sm:$0xf] %v731
        %796 = vst [vmem:[#allocation3 + $0x2f8] sm:$0xf] %v732
        %797 = vst [vmem:[#allocation3 + $0x31c] sm:$0xf] %v733
        %798 = vst [vmem:[#allocation3 + $0x340] sm:$0xf] %v734
        %799 = vst [vmem:[#allocation3 + $0x364] sm:$0xf] %v735
        %800 = vst [vmem:[#allocation3 + $0x388] sm:$0xf] %v736
        %801 = vst [vmem:[#allocation3 + $0x3ac] sm:$0xf] %v737
        %802 = vst [vmem:[#allocation3 + $0x3d0] sm:$0xf] %v738
        %803 = vst [vmem:[#allocation3 + $0x3f4] sm:$0xf] %v739
        %804 = vst [vmem:[#allocation3 + $0x418] sm:$0xf] %v740
        %805 = vst [vmem:[#allocation3 + $0x43c] sm:$0xf] %v741
        %806 = vst [vmem:[#allocation3 + $0x460] sm:$0xf] %v742
        %v807 = vld [vmem:[#allocation2 + $0x9] sm:$0xff]
        %v808 = vld [vmem:[#allocation2 + $0x11] sm:$0xff]
        %v809 = vld [vmem:[#allocation2 + $0x29] sm:$0xff]
        %v810 = vld [vmem:[#allocation2 + $0x31] sm:$0xff]
        %v811 = vld [vmem:[#allocation2 + $0x49] sm:$0xff]
        %v812 = vld [vmem:[#allocation2 + $0x51] sm:$0xff]
        %v813 = vld [vmem:[#allocation2 + $0x69] sm:$0xff]
        %v814 = vld [vmem:[#allocation2 + $0x71] sm:$0xff]
        %v815 = vld [vmem:[#allocation2 + $0x89] sm:$0xff]
        %v816 = vld [vmem:[#allocation2 + $0x91] sm:$0xff]
        %v817 = vld [vmem:[#allocation2 + $0xa9] sm:$0xff]
        %v818 = vld [vmem:[#allocation2 + $0xb1] sm:$0xff]
        %v819 = vld [vmem:[#allocation2 + $0xc9] sm:$0xff]
        %v820 = vld [vmem:[#allocation2 + $0xd1] sm:$0xff]
        %v821 = vld [vmem:[#allocation2 + $0xe9] sm:$0xff]
        %v822 = vld [vmem:[#allocation2 + $0xf1] sm:$0xff]
        %v823 = vld [vmem:[#allocation2 + $0x109] sm:$0xff]
        %v824 = vld [vmem:[#allocation2 + $0x111] sm:$0xff]
        %v825 = vld [vmem:[#allocation2 + $0x129] sm:$0xff]
        %v826 = vld [vmem:[#allocation2 + $0x131] sm:$0xff]
        %v827 = vld [vmem:[#allocation2 + $0x149] sm:$0xff]
        %v828 = vld [vmem:[#allocation2 + $0x151] sm:$0xff]
        %v829 = vld [vmem:[#allocation2 + $0x169] sm:$0xff]
        %v830 = vld [vmem:[#allocation2 + $0x171] sm:$0xff]
        %v831 = vld [vmem:[#allocation2 + $0x189] sm:$0xff]
        %v832 = vld [vmem:[#allocation2 + $0x191] sm:$0xff]
        %v833 = vld [vmem:[#allocation2 + $0x1a9] sm:$0xff]
        %v834 = vld [vmem:[#allocation2 + $0x1b1] sm:$0xff]
        %v835 = vld [vmem:[#allocation2 + $0x1c9] sm:$0xff]
        %v836 = vld [vmem:[#allocation2 + $0x1d1] sm:$0xff]
        %v837 = vld [vmem:[#allocation2 + $0x1e9] sm:$0xff]
        %v838 = vld [vmem:[#allocation2 + $0x1f1] sm:$0xff]
        %v839 = vpack.c.bf16 %v808, %v807
        %v840 = vpack.c.bf16 %v810, %v809
        %v841 = vpack.c.bf16 %v812, %v811
        %v842 = vpack.c.bf16 %v814, %v813
        %v843 = vpack.c.bf16 %v816, %v815
        %v844 = vpack.c.bf16 %v818, %v817
        %v845 = vpack.c.bf16 %v820, %v819
        %v846 = vpack.c.bf16 %v822, %v821
        %v847 = vpack.c.bf16 %v824, %v823
        %v848 = vpack.c.bf16 %v826, %v825
        %v849 = vpack.c.bf16 %v828, %v827
        %v850 = vpack.c.bf16 %v830, %v829
        %v851 = vpack.c.bf16 %v832, %v831
        %v852 = vpack.c.bf16 %v834, %v833
        %v853 = vpack.c.bf16 %v836, %v835
        %v854 = vpack.c.bf16 %v838, %v837
        %v871 = vunpack.c.l.b16 %v839
        %v872 = vunpack.c.h.b16 %v839
        %v873 = vunpack.c.l.b16 %v840
        %v874 = vunpack.c.h.b16 %v840
        %v875 = vunpack.c.l.b16 %v841
        %v876 = vunpack.c.h.b16 %v841
        %v877 = vunpack.c.l.b16 %v842
        %v878 = vunpack.c.h.b16 %v842
        %v879 = vunpack.c.l.b16 %v843
        %v880 = vunpack.c.h.b16 %v843
        %v881 = vunpack.c.l.b16 %v844
        %v882 = vunpack.c.h.b16 %v844
        %v883 = vunpack.c.l.b16 %v845
        %v884 = vunpack.c.h.b16 %v845
        %v885 = vunpack.c.l.b16 %v846
        %v886 = vunpack.c.h.b16 %v846
        %v887 = vunpack.c.l.b16 %v847
        %v888 = vunpack.c.h.b16 %v847
        %v889 = vunpack.c.l.b16 %v848
        %v890 = vunpack.c.h.b16 %v848
        %v891 = vunpack.c.l.b16 %v849
        %v892 = vunpack.c.h.b16 %v849
        %v893 = vunpack.c.l.b16 %v850
        %v894 = vunpack.c.h.b16 %v850
        %v895 = vunpack.c.l.b16 %v851
        %v896 = vunpack.c.h.b16 %v851
        %v897 = vunpack.c.l.b16 %v852
        %v898 = vunpack.c.h.b16 %v852
        %v899 = vunpack.c.l.b16 %v853
        %v900 = vunpack.c.h.b16 %v853
        %v901 = vunpack.c.l.b16 %v854
        %v902 = vunpack.c.h.b16 %v854
        %v903 = vpack.c.b16 %v871, %v871
        %v904 = vpack.c.b16 %v872, %v872
        %v905 = vpack.c.b16 %v873, %v873
        %v906 = vpack.c.b16 %v874, %v874
        %v907 = vpack.c.b16 %v875, %v875
        %v908 = vpack.c.b16 %v876, %v876
        %v909 = vpack.c.b16 %v877, %v877
        %v910 = vpack.c.b16 %v878, %v878
        %v911 = vpack.c.b16 %v879, %v879
        %v912 = vpack.c.b16 %v880, %v880
        %v913 = vpack.c.b16 %v881, %v881
        %v914 = vpack.c.b16 %v882, %v882
        %v915 = vpack.c.b16 %v883, %v883
        %v916 = vpack.c.b16 %v884, %v884
        %v917 = vpack.c.b16 %v885, %v885
        %v918 = vpack.c.b16 %v886, %v886
        %v919 = vpack.c.b16 %v887, %v887
        %v920 = vpack.c.b16 %v888, %v888
        %v921 = vpack.c.b16 %v889, %v889
        %v922 = vpack.c.b16 %v890, %v890
        %v923 = vpack.c.b16 %v891, %v891
        %v924 = vpack.c.b16 %v892, %v892
        %v925 = vpack.c.b16 %v893, %v893
        %v926 = vpack.c.b16 %v894, %v894
        %v927 = vpack.c.b16 %v895, %v895
        %v928 = vpack.c.b16 %v896, %v896
        %v929 = vpack.c.b16 %v897, %v897
        %v930 = vpack.c.b16 %v898, %v898
        %v931 = vpack.c.b16 %v899, %v899
        %v932 = vpack.c.b16 %v900, %v900
        %v933 = vpack.c.b16 %v901, %v901
        %v934 = vpack.c.b16 %v902, %v902
        %967 = vst [vmem:[#allocation3 + $0x8] sm:$0xf] %v903
        %968 = vst [vmem:[#allocation3 + $0x2c] sm:$0xf] %v904
        %969 = vst [vmem:[#allocation3 + $0x50] sm:$0xf] %v905
        %970 = vst [vmem:[#allocation3 + $0x74] sm:$0xf] %v906
        %971 = vst [vmem:[#allocation3 + $0x98] sm:$0xf] %v907
        %972 = vst [vmem:[#allocation3 + $0xbc] sm:$0xf] %v908
        %973 = vst [vmem:[#allocation3 + $0xe0] sm:$0xf] %v909
        %974 = vst [vmem:[#allocation3 + $0x104] sm:$0xf] %v910
        %975 = vst [vmem:[#allocation3 + $0x128] sm:$0xf] %v911
        %976 = vst [vmem:[#allocation3 + $0x14c] sm:$0xf] %v912
        %977 = vst [vmem:[#allocation3 + $0x170] sm:$0xf] %v913
        %978 = vst [vmem:[#allocation3 + $0x194] sm:$0xf] %v914
        %979 = vst [vmem:[#allocation3 + $0x1b8] sm:$0xf] %v915
        %980 = vst [vmem:[#allocation3 + $0x1dc] sm:$0xf] %v916
        %981 = vst [vmem:[#allocation3 + $0x200] sm:$0xf] %v917
        %982 = vst [vmem:[#allocation3 + $0x224] sm:$0xf] %v918
        %983 = vst [vmem:[#allocation3 + $0x248] sm:$0xf] %v919
        %984 = vst [vmem:[#allocation3 + $0x26c] sm:$0xf] %v920
        %985 = vst [vmem:[#allocation3 + $0x290] sm:$0xf] %v921
        %986 = vst [vmem:[#allocation3 + $0x2b4] sm:$0xf] %v922
        %987 = vst [vmem:[#allocation3 + $0x2d8] sm:$0xf] %v923
        %988 = vst [vmem:[#allocation3 + $0x2fc] sm:$0xf] %v924
        %989 = vst [vmem:[#allocation3 + $0x320] sm:$0xf] %v925
        %990 = vst [vmem:[#allocation3 + $0x344] sm:$0xf] %v926
        %991 = vst [vmem:[#allocation3 + $0x368] sm:$0xf] %v927
        %992 = vst [vmem:[#allocation3 + $0x38c] sm:$0xf] %v928
        %993 = vst [vmem:[#allocation3 + $0x3b0] sm:$0xf] %v929
        %994 = vst [vmem:[#allocation3 + $0x3d4] sm:$0xf] %v930
        %995 = vst [vmem:[#allocation3 + $0x3f8] sm:$0xf] %v931
        %996 = vst [vmem:[#allocation3 + $0x41c] sm:$0xf] %v932
        %997 = vst [vmem:[#allocation3 + $0x440] sm:$0xf] %v933
        %998 = vst [vmem:[#allocation3 + $0x464] sm:$0xf] %v934
        %v999 = vld [vmem:[%s390 + $0x7] sm:$0xff]
        %v1000 = vld [vmem:[%s390 + $0xf] sm:$0xff]
        %v1001 = vld [vmem:[%s390 + $0x27] sm:$0xff]
        %v1002 = vld [vmem:[%s390 + $0x2f] sm:$0xff]
        %v1003 = vld [vmem:[%s390 + $0x47] sm:$0xff]
        %v1004 = vld [vmem:[%s390 + $0x4f] sm:$0xff]
        %v1005 = vld [vmem:[%s390 + $0x67] sm:$0xff]
        %v1006 = vld [vmem:[%s390 + $0x6f] sm:$0xff]
        %v1007 = vld [vmem:[%s390 + $0x87] sm:$0xff]
        %v1008 = vld [vmem:[%s390 + $0x8f] sm:$0xff]
        %v1009 = vld [vmem:[%s390 + $0xa7] sm:$0xff]
        %v1010 = vld [vmem:[%s390 + $0xaf] sm:$0xff]
        %v1011 = vld [vmem:[%s390 + $0xc7] sm:$0xff]
        %v1012 = vld [vmem:[%s390 + $0xcf] sm:$0xff]
        %v1013 = vld [vmem:[%s390 + $0xe7] sm:$0xff]
        %v1014 = vld [vmem:[%s390 + $0xef] sm:$0xff]
        %v1015 = vld [vmem:[%s390 + $0x107] sm:$0xff]
        %v1016 = vld [vmem:[%s390 + $0x10f] sm:$0xff]
        %v1017 = vld [vmem:[%s390 + $0x127] sm:$0xff]
        %v1018 = vld [vmem:[%s390 + $0x12f] sm:$0xff]
        %v1019 = vld [vmem:[%s390 + $0x147] sm:$0xff]
        %v1020 = vld [vmem:[%s390 + $0x14f] sm:$0xff]
        %v1021 = vld [vmem:[%s390 + $0x167] sm:$0xff]
        %v1022 = vld [vmem:[%s390 + $0x16f] sm:$0xff]
        %v1023 = vld [vmem:[%s390 + $0x187] sm:$0xff]
        %v1024 = vld [vmem:[%s390 + $0x18f] sm:$0xff]
        %v1025 = vld [vmem:[%s390 + $0x1a7] sm:$0xff]
        %v1026 = vld [vmem:[%s390 + $0x1af] sm:$0xff]
        %v1027 = vld [vmem:[%s390 + $0x1c7] sm:$0xff]
        %v1028 = vld [vmem:[%s390 + $0x1cf] sm:$0xff]
        %v1029 = vld [vmem:[%s390 + $0x1e7] sm:$0xff]
        %v1030 = vld [vmem:[%s390 + $0x1ef] sm:$0xff]
        %v1031 = vpack.c.bf16 %v1000, %v999
        %v1032 = vpack.c.bf16 %v1002, %v1001
        %v1033 = vpack.c.bf16 %v1004, %v1003
        %v1034 = vpack.c.bf16 %v1006, %v1005
        %v1035 = vpack.c.bf16 %v1008, %v1007
        %v1036 = vpack.c.bf16 %v1010, %v1009
        %v1037 = vpack.c.bf16 %v1012, %v1011
        %v1038 = vpack.c.bf16 %v1014, %v1013
        %v1039 = vpack.c.bf16 %v1016, %v1015
        %v1040 = vpack.c.bf16 %v1018, %v1017
        %v1041 = vpack.c.bf16 %v1020, %v1019
        %v1042 = vpack.c.bf16 %v1022, %v1021
        %v1043 = vpack.c.bf16 %v1024, %v1023
        %v1044 = vpack.c.bf16 %v1026, %v1025
        %v1045 = vpack.c.bf16 %v1028, %v1027
        %v1046 = vpack.c.bf16 %v1030, %v1029
        %v1063 = vunpack.c.l.b16 %v1031
        %v1064 = vunpack.c.h.b16 %v1031
        %v1065 = vunpack.c.l.b16 %v1032
        %v1066 = vunpack.c.h.b16 %v1032
        %v1067 = vunpack.c.l.b16 %v1033
        %v1068 = vunpack.c.h.b16 %v1033
        %v1069 = vunpack.c.l.b16 %v1034
        %v1070 = vunpack.c.h.b16 %v1034
        %v1071 = vunpack.c.l.b16 %v1035
        %v1072 = vunpack.c.h.b16 %v1035
        %v1073 = vunpack.c.l.b16 %v1036
        %v1074 = vunpack.c.h.b16 %v1036
        %v1075 = vunpack.c.l.b16 %v1037
        %v1076 = vunpack.c.h.b16 %v1037
        %v1077 = vunpack.c.l.b16 %v1038
        %v1078 = vunpack.c.h.b16 %v1038
        %v1079 = vunpack.c.l.b16 %v1039
        %v1080 = vunpack.c.h.b16 %v1039
        %v1081 = vunpack.c.l.b16 %v1040
        %v1082 = vunpack.c.h.b16 %v1040
        %v1083 = vunpack.c.l.b16 %v1041
        %v1084 = vunpack.c.h.b16 %v1041
        %v1085 = vunpack.c.l.b16 %v1042
        %v1086 = vunpack.c.h.b16 %v1042
        %v1087 = vunpack.c.l.b16 %v1043
        %v1088 = vunpack.c.h.b16 %v1043
        %v1089 = vunpack.c.l.b16 %v1044
        %v1090 = vunpack.c.h.b16 %v1044
        %v1091 = vunpack.c.l.b16 %v1045
        %v1092 = vunpack.c.h.b16 %v1045
        %v1093 = vunpack.c.l.b16 %v1046
        %v1094 = vunpack.c.h.b16 %v1046
        %v1095 = vpack.c.b16 %v1063, %v1063
        %v1096 = vpack.c.b16 %v1064, %v1064
        %v1097 = vpack.c.b16 %v1065, %v1065
        %v1098 = vpack.c.b16 %v1066, %v1066
        %v1099 = vpack.c.b16 %v1067, %v1067
        %v1100 = vpack.c.b16 %v1068, %v1068
        %v1101 = vpack.c.b16 %v1069, %v1069
        %v1102 = vpack.c.b16 %v1070, %v1070
        %v1103 = vpack.c.b16 %v1071, %v1071
        %v1104 = vpack.c.b16 %v1072, %v1072
        %v1105 = vpack.c.b16 %v1073, %v1073
        %v1106 = vpack.c.b16 %v1074, %v1074
        %v1107 = vpack.c.b16 %v1075, %v1075
        %v1108 = vpack.c.b16 %v1076, %v1076
        %v1109 = vpack.c.b16 %v1077, %v1077
        %v1110 = vpack.c.b16 %v1078, %v1078
        %v1111 = vpack.c.b16 %v1079, %v1079
        %v1112 = vpack.c.b16 %v1080, %v1080
        %v1113 = vpack.c.b16 %v1081, %v1081
        %v1114 = vpack.c.b16 %v1082, %v1082
        %v1115 = vpack.c.b16 %v1083, %v1083
        %v1116 = vpack.c.b16 %v1084, %v1084
        %v1117 = vpack.c.b16 %v1085, %v1085
        %v1118 = vpack.c.b16 %v1086, %v1086
        %v1119 = vpack.c.b16 %v1087, %v1087
        %v1120 = vpack.c.b16 %v1088, %v1088
        %v1121 = vpack.c.b16 %v1089, %v1089
        %v1122 = vpack.c.b16 %v1090, %v1090
        %v1123 = vpack.c.b16 %v1091, %v1091
        %v1124 = vpack.c.b16 %v1092, %v1092
        %v1125 = vpack.c.b16 %v1093, %v1093
        %v1126 = vpack.c.b16 %v1094, %v1094
        %1159 = vst [vmem:[#allocation3 + $0xc] sm:$0xf] %v1095
        %1160 = vst [vmem:[#allocation3 + $0x30] sm:$0xf] %v1096
        %1161 = vst [vmem:[#allocation3 + $0x54] sm:$0xf] %v1097
        %1162 = vst [vmem:[#allocation3 + $0x78] sm:$0xf] %v1098
        %1163 = vst [vmem:[#allocation3 + $0x9c] sm:$0xf] %v1099
        %1164 = vst [vmem:[#allocation3 + $0xc0] sm:$0xf] %v1100
        %1165 = vst [vmem:[#allocation3 + $0xe4] sm:$0xf] %v1101
        %1166 = vst [vmem:[#allocation3 + $0x108] sm:$0xf] %v1102
        %1167 = vst [vmem:[#allocation3 + $0x12c] sm:$0xf] %v1103
        %1168 = vst [vmem:[#allocation3 + $0x150] sm:$0xf] %v1104
        %1169 = vst [vmem:[#allocation3 + $0x174] sm:$0xf] %v1105
        %1170 = vst [vmem:[#allocation3 + $0x198] sm:$0xf] %v1106
        %1171 = vst [vmem:[#allocation3 + $0x1bc] sm:$0xf] %v1107
        %1172 = vst [vmem:[#allocation3 + $0x1e0] sm:$0xf] %v1108
        %1173 = vst [vmem:[#allocation3 + $0x204] sm:$0xf] %v1109
        %1174 = vst [vmem:[#allocation3 + $0x228] sm:$0xf] %v1110
        %1175 = vst [vmem:[#allocation3 + $0x24c] sm:$0xf] %v1111
        %1176 = vst [vmem:[#allocation3 + $0x270] sm:$0xf] %v1112
        %1177 = vst [vmem:[#allocation3 + $0x294] sm:$0xf] %v1113
        %1178 = vst [vmem:[#allocation3 + $0x2b8] sm:$0xf] %v1114
        %1179 = vst [vmem:[#allocation3 + $0x2dc] sm:$0xf] %v1115
        %1180 = vst [vmem:[#allocation3 + $0x300] sm:$0xf] %v1116
        %1181 = vst [vmem:[#allocation3 + $0x324] sm:$0xf] %v1117
        %1182 = vst [vmem:[#allocation3 + $0x348] sm:$0xf] %v1118
        %1183 = vst [vmem:[#allocation3 + $0x36c] sm:$0xf] %v1119
        %1184 = vst [vmem:[#allocation3 + $0x390] sm:$0xf] %v1120
        %1185 = vst [vmem:[#allocation3 + $0x3b4] sm:$0xf] %v1121
        %1186 = vst [vmem:[#allocation3 + $0x3d8] sm:$0xf] %v1122
        %1187 = vst [vmem:[#allocation3 + $0x3fc] sm:$0xf] %v1123
        %1188 = vst [vmem:[#allocation3 + $0x420] sm:$0xf] %v1124
        %1189 = vst [vmem:[#allocation3 + $0x444] sm:$0xf] %v1125
        %1190 = vst [vmem:[#allocation3 + $0x468] sm:$0xf] %v1126
        %v1191 = vld [vmem:[%s390 + $0x8] sm:$0xff]
        %v1192 = vld [vmem:[%s390 + $0x10] sm:$0xff]
        %v1193 = vld [vmem:[%s390 + $0x28] sm:$0xff]
        %v1194 = vld [vmem:[%s390 + $0x30] sm:$0xff]
        %v1195 = vld [vmem:[%s390 + $0x48] sm:$0xff]
        %v1196 = vld [vmem:[%s390 + $0x50] sm:$0xff]
        %v1197 = vld [vmem:[%s390 + $0x68] sm:$0xff]
        %v1198 = vld [vmem:[%s390 + $0x70] sm:$0xff]
        %v1199 = vld [vmem:[%s390 + $0x88] sm:$0xff]
        %v1200 = vld [vmem:[%s390 + $0x90] sm:$0xff]
        %v1201 = vld [vmem:[%s390 + $0xa8] sm:$0xff]
        %v1202 = vld [vmem:[%s390 + $0xb0] sm:$0xff]
        %v1203 = vld [vmem:[%s390 + $0xc8] sm:$0xff]
        %v1204 = vld [vmem:[%s390 + $0xd0] sm:$0xff]
        %v1205 = vld [vmem:[%s390 + $0xe8] sm:$0xff]
        %v1206 = vld [vmem:[%s390 + $0xf0] sm:$0xff]
        %v1207 = vld [vmem:[%s390 + $0x108] sm:$0xff]
        %v1208 = vld [vmem:[%s390 + $0x110] sm:$0xff]
        %v1209 = vld [vmem:[%s390 + $0x128] sm:$0xff]
        %v1210 = vld [vmem:[%s390 + $0x130] sm:$0xff]
        %v1211 = vld [vmem:[%s390 + $0x148] sm:$0xff]
        %v1212 = vld [vmem:[%s390 + $0x150] sm:$0xff]
        %v1213 = vld [vmem:[%s390 + $0x168] sm:$0xff]
        %v1214 = vld [vmem:[%s390 + $0x170] sm:$0xff]
        %v1215 = vld [vmem:[%s390 + $0x188] sm:$0xff]
        %v1216 = vld [vmem:[%s390 + $0x190] sm:$0xff]
        %v1217 = vld [vmem:[%s390 + $0x1a8] sm:$0xff]
        %v1218 = vld [vmem:[%s390 + $0x1b0] sm:$0xff]
        %v1219 = vld [vmem:[%s390 + $0x1c8] sm:$0xff]
        %v1220 = vld [vmem:[%s390 + $0x1d0] sm:$0xff]
        %v1221 = vld [vmem:[%s390 + $0x1e8] sm:$0xff]
        %v1222 = vld [vmem:[%s390 + $0x1f0] sm:$0xff]
        %v1223 = vpack.c.bf16 %v1192, %v1191
        %v1224 = vpack.c.bf16 %v1194, %v1193
        %v1225 = vpack.c.bf16 %v1196, %v1195
        %v1226 = vpack.c.bf16 %v1198, %v1197
        %v1227 = vpack.c.bf16 %v1200, %v1199
        %v1228 = vpack.c.bf16 %v1202, %v1201
        %v1229 = vpack.c.bf16 %v1204, %v1203
        %v1230 = vpack.c.bf16 %v1206, %v1205
        %v1231 = vpack.c.bf16 %v1208, %v1207
        %v1232 = vpack.c.bf16 %v1210, %v1209
        %v1233 = vpack.c.bf16 %v1212, %v1211
        %v1234 = vpack.c.bf16 %v1214, %v1213
        %v1235 = vpack.c.bf16 %v1216, %v1215
        %v1236 = vpack.c.bf16 %v1218, %v1217
        %v1237 = vpack.c.bf16 %v1220, %v1219
        %v1238 = vpack.c.bf16 %v1222, %v1221
        %v1255 = vunpack.c.l.b16 %v1223
        %v1256 = vunpack.c.h.b16 %v1223
        %v1257 = vunpack.c.l.b16 %v1224
        %v1258 = vunpack.c.h.b16 %v1224
        %v1259 = vunpack.c.l.b16 %v1225
        %v1260 = vunpack.c.h.b16 %v1225
        %v1261 = vunpack.c.l.b16 %v1226
        %v1262 = vunpack.c.h.b16 %v1226
        %v1263 = vunpack.c.l.b16 %v1227
        %v1264 = vunpack.c.h.b16 %v1227
        %v1265 = vunpack.c.l.b16 %v1228
        %v1266 = vunpack.c.h.b16 %v1228
        %v1267 = vunpack.c.l.b16 %v1229
        %v1268 = vunpack.c.h.b16 %v1229
        %v1269 = vunpack.c.l.b16 %v1230
        %v1270 = vunpack.c.h.b16 %v1230
        %v1271 = vunpack.c.l.b16 %v1231
        %v1272 = vunpack.c.h.b16 %v1231
        %v1273 = vunpack.c.l.b16 %v1232
        %v1274 = vunpack.c.h.b16 %v1232
        %v1275 = vunpack.c.l.b16 %v1233
        %v1276 = vunpack.c.h.b16 %v1233
        %v1277 = vunpack.c.l.b16 %v1234
        %v1278 = vunpack.c.h.b16 %v1234
        %v1279 = vunpack.c.l.b16 %v1235
        %v1280 = vunpack.c.h.b16 %v1235
        %v1281 = vunpack.c.l.b16 %v1236
        %v1282 = vunpack.c.h.b16 %v1236
        %v1283 = vunpack.c.l.b16 %v1237
        %v1284 = vunpack.c.h.b16 %v1237
        %v1285 = vunpack.c.l.b16 %v1238
        %v1286 = vunpack.c.h.b16 %v1238
        %v1287 = vpack.c.b16 %v1255, %v1255
        %v1288 = vpack.c.b16 %v1256, %v1256
        %v1289 = vpack.c.b16 %v1257, %v1257
        %v1290 = vpack.c.b16 %v1258, %v1258
        %v1291 = vpack.c.b16 %v1259, %v1259
        %v1292 = vpack.c.b16 %v1260, %v1260
        %v1293 = vpack.c.b16 %v1261, %v1261
        %v1294 = vpack.c.b16 %v1262, %v1262
        %v1295 = vpack.c.b16 %v1263, %v1263
        %v1296 = vpack.c.b16 %v1264, %v1264
        %v1297 = vpack.c.b16 %v1265, %v1265
        %v1298 = vpack.c.b16 %v1266, %v1266
        %v1299 = vpack.c.b16 %v1267, %v1267
        %v1300 = vpack.c.b16 %v1268, %v1268
        %v1301 = vpack.c.b16 %v1269, %v1269
        %v1302 = vpack.c.b16 %v1270, %v1270
        %v1303 = vpack.c.b16 %v1271, %v1271
        %v1304 = vpack.c.b16 %v1272, %v1272
        %v1305 = vpack.c.b16 %v1273, %v1273
        %v1306 = vpack.c.b16 %v1274, %v1274
        %v1307 = vpack.c.b16 %v1275, %v1275
        %v1308 = vpack.c.b16 %v1276, %v1276
        %v1309 = vpack.c.b16 %v1277, %v1277
        %v1310 = vpack.c.b16 %v1278, %v1278
        %v1311 = vpack.c.b16 %v1279, %v1279
        %v1312 = vpack.c.b16 %v1280, %v1280
        %v1313 = vpack.c.b16 %v1281, %v1281
        %v1314 = vpack.c.b16 %v1282, %v1282
        %v1315 = vpack.c.b16 %v1283, %v1283
        %v1316 = vpack.c.b16 %v1284, %v1284
        %v1317 = vpack.c.b16 %v1285, %v1285
        %v1318 = vpack.c.b16 %v1286, %v1286
        %1351 = vst [vmem:[#allocation3 + $0x10] sm:$0xf] %v1287
        %1352 = vst [vmem:[#allocation3 + $0x34] sm:$0xf] %v1288
        %1353 = vst [vmem:[#allocation3 + $0x58] sm:$0xf] %v1289
        %1354 = vst [vmem:[#allocation3 + $0x7c] sm:$0xf] %v1290
        %1355 = vst [vmem:[#allocation3 + $0xa0] sm:$0xf] %v1291
        %1356 = vst [vmem:[#allocation3 + $0xc4] sm:$0xf] %v1292
        %1357 = vst [vmem:[#allocation3 + $0xe8] sm:$0xf] %v1293
        %1358 = vst [vmem:[#allocation3 + $0x10c] sm:$0xf] %v1294
        %1359 = vst [vmem:[#allocation3 + $0x130] sm:$0xf] %v1295
        %1360 = vst [vmem:[#allocation3 + $0x154] sm:$0xf] %v1296
        %1361 = vst [vmem:[#allocation3 + $0x178] sm:$0xf] %v1297
        %1362 = vst [vmem:[#allocation3 + $0x19c] sm:$0xf] %v1298
        %1363 = vst [vmem:[#allocation3 + $0x1c0] sm:$0xf] %v1299
        %1364 = vst [vmem:[#allocation3 + $0x1e4] sm:$0xf] %v1300
        %1365 = vst [vmem:[#allocation3 + $0x208] sm:$0xf] %v1301
        %1366 = vst [vmem:[#allocation3 + $0x22c] sm:$0xf] %v1302
        %1367 = vst [vmem:[#allocation3 + $0x250] sm:$0xf] %v1303
        %1368 = vst [vmem:[#allocation3 + $0x274] sm:$0xf] %v1304
        %1369 = vst [vmem:[#allocation3 + $0x298] sm:$0xf] %v1305
        %1370 = vst [vmem:[#allocation3 + $0x2bc] sm:$0xf] %v1306
        %1371 = vst [vmem:[#allocation3 + $0x2e0] sm:$0xf] %v1307
        %1372 = vst [vmem:[#allocation3 + $0x304] sm:$0xf] %v1308
        %1373 = vst [vmem:[#allocation3 + $0x328] sm:$0xf] %v1309
        %1374 = vst [vmem:[#allocation3 + $0x34c] sm:$0xf] %v1310
        %1375 = vst [vmem:[#allocation3 + $0x370] sm:$0xf] %v1311
        %1376 = vst [vmem:[#allocation3 + $0x394] sm:$0xf] %v1312
        %1377 = vst [vmem:[#allocation3 + $0x3b8] sm:$0xf] %v1313
        %1378 = vst [vmem:[#allocation3 + $0x3dc] sm:$0xf] %v1314
        %1379 = vst [vmem:[#allocation3 + $0x400] sm:$0xf] %v1315
        %1380 = vst [vmem:[#allocation3 + $0x424] sm:$0xf] %v1316
        %1381 = vst [vmem:[#allocation3 + $0x448] sm:$0xf] %v1317
        %1382 = vst [vmem:[#allocation3 + $0x46c] sm:$0xf] %v1318
        %v1383 = vld [vmem:[%s390 + $0x9] sm:$0xff]
        %v1384 = vld [vmem:[%s390 + $0x11] sm:$0xff]
        %v1385 = vld [vmem:[%s390 + $0x29] sm:$0xff]
        %v1386 = vld [vmem:[%s390 + $0x31] sm:$0xff]
        %v1387 = vld [vmem:[%s390 + $0x49] sm:$0xff]
        %v1388 = vld [vmem:[%s390 + $0x51] sm:$0xff]
        %v1389 = vld [vmem:[%s390 + $0x69] sm:$0xff]
        %v1390 = vld [vmem:[%s390 + $0x71] sm:$0xff]
        %v1391 = vld [vmem:[%s390 + $0x89] sm:$0xff]
        %v1392 = vld [vmem:[%s390 + $0x91] sm:$0xff]
        %v1393 = vld [vmem:[%s390 + $0xa9] sm:$0xff]
        %v1394 = vld [vmem:[%s390 + $0xb1] sm:$0xff]
        %v1395 = vld [vmem:[%s390 + $0xc9] sm:$0xff]
        %v1396 = vld [vmem:[%s390 + $0xd1] sm:$0xff]
        %v1397 = vld [vmem:[%s390 + $0xe9] sm:$0xff]
        %v1398 = vld [vmem:[%s390 + $0xf1] sm:$0xff]
        %v1399 = vld [vmem:[%s390 + $0x109] sm:$0xff]
        %v1400 = vld [vmem:[%s390 + $0x111] sm:$0xff]
        %v1401 = vld [vmem:[%s390 + $0x129] sm:$0xff]
        %v1402 = vld [vmem:[%s390 + $0x131] sm:$0xff]
        %v1403 = vld [vmem:[%s390 + $0x149] sm:$0xff]
        %v1404 = vld [vmem:[%s390 + $0x151] sm:$0xff]
        %v1405 = vld [vmem:[%s390 + $0x169] sm:$0xff]
        %v1406 = vld [vmem:[%s390 + $0x171] sm:$0xff]
        %v1407 = vld [vmem:[%s390 + $0x189] sm:$0xff]
        %v1408 = vld [vmem:[%s390 + $0x191] sm:$0xff]
        %v1409 = vld [vmem:[%s390 + $0x1a9] sm:$0xff]
        %v1410 = vld [vmem:[%s390 + $0x1b1] sm:$0xff]
        %v1411 = vld [vmem:[%s390 + $0x1c9] sm:$0xff]
        %v1412 = vld [vmem:[%s390 + $0x1d1] sm:$0xff]
        %v1413 = vld [vmem:[%s390 + $0x1e9] sm:$0xff]
        %v1414 = vld [vmem:[%s390 + $0x1f1] sm:$0xff]
        %v1415 = vpack.c.bf16 %v1384, %v1383
        %v1416 = vpack.c.bf16 %v1386, %v1385
        %v1417 = vpack.c.bf16 %v1388, %v1387
        %v1418 = vpack.c.bf16 %v1390, %v1389
        %v1419 = vpack.c.bf16 %v1392, %v1391
        %v1420 = vpack.c.bf16 %v1394, %v1393
        %v1421 = vpack.c.bf16 %v1396, %v1395
        %v1422 = vpack.c.bf16 %v1398, %v1397
        %v1423 = vpack.c.bf16 %v1400, %v1399
        %v1424 = vpack.c.bf16 %v1402, %v1401
        %v1425 = vpack.c.bf16 %v1404, %v1403
        %v1426 = vpack.c.bf16 %v1406, %v1405
        %v1427 = vpack.c.bf16 %v1408, %v1407
        %v1428 = vpack.c.bf16 %v1410, %v1409
        %v1429 = vpack.c.bf16 %v1412, %v1411
        %v1430 = vpack.c.bf16 %v1414, %v1413
        %v1447 = vunpack.c.l.b16 %v1415
        %v1448 = vunpack.c.h.b16 %v1415
        %v1449 = vunpack.c.l.b16 %v1416
        %v1450 = vunpack.c.h.b16 %v1416
        %v1451 = vunpack.c.l.b16 %v1417
        %v1452 = vunpack.c.h.b16 %v1417
        %v1453 = vunpack.c.l.b16 %v1418
        %v1454 = vunpack.c.h.b16 %v1418
        %v1455 = vunpack.c.l.b16 %v1419
        %v1456 = vunpack.c.h.b16 %v1419
        %v1457 = vunpack.c.l.b16 %v1420
        %v1458 = vunpack.c.h.b16 %v1420
        %v1459 = vunpack.c.l.b16 %v1421
        %v1460 = vunpack.c.h.b16 %v1421
        %v1461 = vunpack.c.l.b16 %v1422
        %v1462 = vunpack.c.h.b16 %v1422
        %v1463 = vunpack.c.l.b16 %v1423
        %v1464 = vunpack.c.h.b16 %v1423
        %v1465 = vunpack.c.l.b16 %v1424
        %v1466 = vunpack.c.h.b16 %v1424
        %v1467 = vunpack.c.l.b16 %v1425
        %v1468 = vunpack.c.h.b16 %v1425
        %v1469 = vunpack.c.l.b16 %v1426
        %v1470 = vunpack.c.h.b16 %v1426
        %v1471 = vunpack.c.l.b16 %v1427
        %v1472 = vunpack.c.h.b16 %v1427
        %v1473 = vunpack.c.l.b16 %v1428
        %v1474 = vunpack.c.h.b16 %v1428
        %v1475 = vunpack.c.l.b16 %v1429
        %v1476 = vunpack.c.h.b16 %v1429
        %v1477 = vunpack.c.l.b16 %v1430
        %v1478 = vunpack.c.h.b16 %v1430
        %v1479 = vpack.c.b16 %v1447, %v1447
        %v1480 = vpack.c.b16 %v1448, %v1448
        %v1481 = vpack.c.b16 %v1449, %v1449
        %v1482 = vpack.c.b16 %v1450, %v1450
        %v1483 = vpack.c.b16 %v1451, %v1451
        %v1484 = vpack.c.b16 %v1452, %v1452
        %v1485 = vpack.c.b16 %v1453, %v1453
        %v1486 = vpack.c.b16 %v1454, %v1454
        %v1487 = vpack.c.b16 %v1455, %v1455
        %v1488 = vpack.c.b16 %v1456, %v1456
        %v1489 = vpack.c.b16 %v1457, %v1457
        %v1490 = vpack.c.b16 %v1458, %v1458
        %v1491 = vpack.c.b16 %v1459, %v1459
        %v1492 = vpack.c.b16 %v1460, %v1460
        %v1493 = vpack.c.b16 %v1461, %v1461
        %v1494 = vpack.c.b16 %v1462, %v1462
        %v1495 = vpack.c.b16 %v1463, %v1463
        %v1496 = vpack.c.b16 %v1464, %v1464
        %v1497 = vpack.c.b16 %v1465, %v1465
        %v1498 = vpack.c.b16 %v1466, %v1466
        %v1499 = vpack.c.b16 %v1467, %v1467
        %v1500 = vpack.c.b16 %v1468, %v1468
        %v1501 = vpack.c.b16 %v1469, %v1469
        %v1502 = vpack.c.b16 %v1470, %v1470
        %v1503 = vpack.c.b16 %v1471, %v1471
        %v1504 = vpack.c.b16 %v1472, %v1472
        %v1505 = vpack.c.b16 %v1473, %v1473
        %v1506 = vpack.c.b16 %v1474, %v1474
        %v1507 = vpack.c.b16 %v1475, %v1475
        %v1508 = vpack.c.b16 %v1476, %v1476
        %v1509 = vpack.c.b16 %v1477, %v1477
        %v1510 = vpack.c.b16 %v1478, %v1478
        %1543 = vst [vmem:[#allocation3 + $0x14] sm:$0xf] %v1479
        %1544 = vst [vmem:[#allocation3 + $0x38] sm:$0xf] %v1480
        %1545 = vst [vmem:[#allocation3 + $0x5c] sm:$0xf] %v1481
        %1546 = vst [vmem:[#allocation3 + $0x80] sm:$0xf] %v1482
        %1547 = vst [vmem:[#allocation3 + $0xa4] sm:$0xf] %v1483
        %1548 = vst [vmem:[#allocation3 + $0xc8] sm:$0xf] %v1484
        %1549 = vst [vmem:[#allocation3 + $0xec] sm:$0xf] %v1485
        %1550 = vst [vmem:[#allocation3 + $0x110] sm:$0xf] %v1486
        %1551 = vst [vmem:[#allocation3 + $0x134] sm:$0xf] %v1487
        %1552 = vst [vmem:[#allocation3 + $0x158] sm:$0xf] %v1488
        %1553 = vst [vmem:[#allocation3 + $0x17c] sm:$0xf] %v1489
        %1554 = vst [vmem:[#allocation3 + $0x1a0] sm:$0xf] %v1490
        %1555 = vst [vmem:[#allocation3 + $0x1c4] sm:$0xf] %v1491
        %1556 = vst [vmem:[#allocation3 + $0x1e8] sm:$0xf] %v1492
        %1557 = vst [vmem:[#allocation3 + $0x20c] sm:$0xf] %v1493
        %1558 = vst [vmem:[#allocation3 + $0x230] sm:$0xf] %v1494
        %1559 = vst [vmem:[#allocation3 + $0x254] sm:$0xf] %v1495
        %1560 = vst [vmem:[#allocation3 + $0x278] sm:$0xf] %v1496
        %1561 = vst [vmem:[#allocation3 + $0x29c] sm:$0xf] %v1497
        %1562 = vst [vmem:[#allocation3 + $0x2c0] sm:$0xf] %v1498
        %1563 = vst [vmem:[#allocation3 + $0x2e4] sm:$0xf] %v1499
        %1564 = vst [vmem:[#allocation3 + $0x308] sm:$0xf] %v1500
        %1565 = vst [vmem:[#allocation3 + $0x32c] sm:$0xf] %v1501
        %1566 = vst [vmem:[#allocation3 + $0x350] sm:$0xf] %v1502
        %1567 = vst [vmem:[#allocation3 + $0x374] sm:$0xf] %v1503
        %1568 = vst [vmem:[#allocation3 + $0x398] sm:$0xf] %v1504
        %1569 = vst [vmem:[#allocation3 + $0x3bc] sm:$0xf] %v1505
        %1570 = vst [vmem:[#allocation3 + $0x3e0] sm:$0xf] %v1506
        %1571 = vst [vmem:[#allocation3 + $0x404] sm:$0xf] %v1507
        %1572 = vst [vmem:[#allocation3 + $0x428] sm:$0xf] %v1508
        %1573 = vst [vmem:[#allocation3 + $0x44c] sm:$0xf] %v1509
        %1574 = vst [vmem:[#allocation3 + $0x470] sm:$0xf] %v1510
        %s1575 = scalar_lea.vmem [#allocation2], 64
        %v1576 = vld [vmem:[%s1575 + $0x7] sm:$0xff]
        %v1577 = vld [vmem:[%s1575 + $0xf] sm:$0xff]
        %v1578 = vld [vmem:[%s1575 + $0x27] sm:$0xff]
        %v1579 = vld [vmem:[%s1575 + $0x2f] sm:$0xff]
        %v1580 = vld [vmem:[%s1575 + $0x47] sm:$0xff]
        %v1581 = vld [vmem:[%s1575 + $0x4f] sm:$0xff]
        %v1582 = vld [vmem:[%s1575 + $0x67] sm:$0xff]
        %v1583 = vld [vmem:[%s1575 + $0x6f] sm:$0xff]
        %v1584 = vld [vmem:[%s1575 + $0x87] sm:$0xff]
        %v1585 = vld [vmem:[%s1575 + $0x8f] sm:$0xff]
        %v1586 = vld [vmem:[%s1575 + $0xa7] sm:$0xff]
        %v1587 = vld [vmem:[%s1575 + $0xaf] sm:$0xff]
        %v1588 = vld [vmem:[%s1575 + $0xc7] sm:$0xff]
        %v1589 = vld [vmem:[%s1575 + $0xcf] sm:$0xff]
        %v1590 = vld [vmem:[%s1575 + $0xe7] sm:$0xff]
        %v1591 = vld [vmem:[%s1575 + $0xef] sm:$0xff]
        %v1592 = vld [vmem:[%s1575 + $0x107] sm:$0xff]
        %v1593 = vld [vmem:[%s1575 + $0x10f] sm:$0xff]
        %v1594 = vld [vmem:[%s1575 + $0x127] sm:$0xff]
        %v1595 = vld [vmem:[%s1575 + $0x12f] sm:$0xff]
        %v1596 = vld [vmem:[%s1575 + $0x147] sm:$0xff]
        %v1597 = vld [vmem:[%s1575 + $0x14f] sm:$0xff]
        %v1598 = vld [vmem:[%s1575 + $0x167] sm:$0xff]
        %v1599 = vld [vmem:[%s1575 + $0x16f] sm:$0xff]
        %v1600 = vld [vmem:[%s1575 + $0x187] sm:$0xff]
        %v1601 = vld [vmem:[%s1575 + $0x18f] sm:$0xff]
        %v1602 = vld [vmem:[%s1575 + $0x1a7] sm:$0xff]
        %v1603 = vld [vmem:[%s1575 + $0x1af] sm:$0xff]
        %v1604 = vld [vmem:[%s1575 + $0x1c7] sm:$0xff]
        %v1605 = vld [vmem:[%s1575 + $0x1cf] sm:$0xff]
        %v1606 = vld [vmem:[%s1575 + $0x1e7] sm:$0xff]
        %v1607 = vld [vmem:[%s1575 + $0x1ef] sm:$0xff]
        %v1608 = vpack.c.bf16 %v1577, %v1576
        %v1609 = vpack.c.bf16 %v1579, %v1578
        %v1610 = vpack.c.bf16 %v1581, %v1580
        %v1611 = vpack.c.bf16 %v1583, %v1582
        %v1612 = vpack.c.bf16 %v1585, %v1584
        %v1613 = vpack.c.bf16 %v1587, %v1586
        %v1614 = vpack.c.bf16 %v1589, %v1588
        %v1615 = vpack.c.bf16 %v1591, %v1590
        %v1616 = vpack.c.bf16 %v1593, %v1592
        %v1617 = vpack.c.bf16 %v1595, %v1594
        %v1618 = vpack.c.bf16 %v1597, %v1596
        %v1619 = vpack.c.bf16 %v1599, %v1598
        %v1620 = vpack.c.bf16 %v1601, %v1600
        %v1621 = vpack.c.bf16 %v1603, %v1602
        %v1622 = vpack.c.bf16 %v1605, %v1604
        %v1623 = vpack.c.bf16 %v1607, %v1606
        %v1640 = vunpack.c.l.b16 %v1608
        %v1641 = vunpack.c.h.b16 %v1608
        %v1642 = vunpack.c.l.b16 %v1609
        %v1643 = vunpack.c.h.b16 %v1609
        %v1644 = vunpack.c.l.b16 %v1610
        %v1645 = vunpack.c.h.b16 %v1610
        %v1646 = vunpack.c.l.b16 %v1611
        %v1647 = vunpack.c.h.b16 %v1611
        %v1648 = vunpack.c.l.b16 %v1612
        %v1649 = vunpack.c.h.b16 %v1612
        %v1650 = vunpack.c.l.b16 %v1613
        %v1651 = vunpack.c.h.b16 %v1613
        %v1652 = vunpack.c.l.b16 %v1614
        %v1653 = vunpack.c.h.b16 %v1614
        %v1654 = vunpack.c.l.b16 %v1615
        %v1655 = vunpack.c.h.b16 %v1615
        %v1656 = vunpack.c.l.b16 %v1616
        %v1657 = vunpack.c.h.b16 %v1616
        %v1658 = vunpack.c.l.b16 %v1617
        %v1659 = vunpack.c.h.b16 %v1617
        %v1660 = vunpack.c.l.b16 %v1618
        %v1661 = vunpack.c.h.b16 %v1618
        %v1662 = vunpack.c.l.b16 %v1619
        %v1663 = vunpack.c.h.b16 %v1619
        %v1664 = vunpack.c.l.b16 %v1620
        %v1665 = vunpack.c.h.b16 %v1620
        %v1666 = vunpack.c.l.b16 %v1621
        %v1667 = vunpack.c.h.b16 %v1621
        %v1668 = vunpack.c.l.b16 %v1622
        %v1669 = vunpack.c.h.b16 %v1622
        %v1670 = vunpack.c.l.b16 %v1623
        %v1671 = vunpack.c.h.b16 %v1623
        %v1672 = vpack.c.b16 %v1640, %v1640
        %v1673 = vpack.c.b16 %v1641, %v1641
        %v1674 = vpack.c.b16 %v1642, %v1642
        %v1675 = vpack.c.b16 %v1643, %v1643
        %v1676 = vpack.c.b16 %v1644, %v1644
        %v1677 = vpack.c.b16 %v1645, %v1645
        %v1678 = vpack.c.b16 %v1646, %v1646
        %v1679 = vpack.c.b16 %v1647, %v1647
        %v1680 = vpack.c.b16 %v1648, %v1648
        %v1681 = vpack.c.b16 %v1649, %v1649
        %v1682 = vpack.c.b16 %v1650, %v1650
        %v1683 = vpack.c.b16 %v1651, %v1651
        %v1684 = vpack.c.b16 %v1652, %v1652
        %v1685 = vpack.c.b16 %v1653, %v1653
        %v1686 = vpack.c.b16 %v1654, %v1654
        %v1687 = vpack.c.b16 %v1655, %v1655
        %v1688 = vpack.c.b16 %v1656, %v1656
        %v1689 = vpack.c.b16 %v1657, %v1657
        %v1690 = vpack.c.b16 %v1658, %v1658
        %v1691 = vpack.c.b16 %v1659, %v1659
        %v1692 = vpack.c.b16 %v1660, %v1660
        %v1693 = vpack.c.b16 %v1661, %v1661
        %v1694 = vpack.c.b16 %v1662, %v1662
        %v1695 = vpack.c.b16 %v1663, %v1663
        %v1696 = vpack.c.b16 %v1664, %v1664
        %v1697 = vpack.c.b16 %v1665, %v1665
        %v1698 = vpack.c.b16 %v1666, %v1666
        %v1699 = vpack.c.b16 %v1667, %v1667
        %v1700 = vpack.c.b16 %v1668, %v1668
        %v1701 = vpack.c.b16 %v1669, %v1669
        %v1702 = vpack.c.b16 %v1670, %v1670
        %v1703 = vpack.c.b16 %v1671, %v1671
        %1736 = vst [vmem:[#allocation3 + $0x18] sm:$0xf] %v1672
        %1737 = vst [vmem:[#allocation3 + $0x3c] sm:$0xf] %v1673
        %1738 = vst [vmem:[#allocation3 + $0x60] sm:$0xf] %v1674
        %1739 = vst [vmem:[#allocation3 + $0x84] sm:$0xf] %v1675
        %1740 = vst [vmem:[#allocation3 + $0xa8] sm:$0xf] %v1676
        %1741 = vst [vmem:[#allocation3 + $0xcc] sm:$0xf] %v1677
        %1742 = vst [vmem:[#allocation3 + $0xf0] sm:$0xf] %v1678
        %1743 = vst [vmem:[#allocation3 + $0x114] sm:$0xf] %v1679
        %1744 = vst [vmem:[#allocation3 + $0x138] sm:$0xf] %v1680
        %1745 = vst [vmem:[#allocation3 + $0x15c] sm:$0xf] %v1681
        %1746 = vst [vmem:[#allocation3 + $0x180] sm:$0xf] %v1682
        %1747 = vst [vmem:[#allocation3 + $0x1a4] sm:$0xf] %v1683
        %1748 = vst [vmem:[#allocation3 + $0x1c8] sm:$0xf] %v1684
        %1749 = vst [vmem:[#allocation3 + $0x1ec] sm:$0xf] %v1685
        %1750 = vst [vmem:[#allocation3 + $0x210] sm:$0xf] %v1686
        %1751 = vst [vmem:[#allocation3 + $0x234] sm:$0xf] %v1687
        %1752 = vst [vmem:[#allocation3 + $0x258] sm:$0xf] %v1688
        %1753 = vst [vmem:[#allocation3 + $0x27c] sm:$0xf] %v1689
        %1754 = vst [vmem:[#allocation3 + $0x2a0] sm:$0xf] %v1690
        %1755 = vst [vmem:[#allocation3 + $0x2c4] sm:$0xf] %v1691
        %1756 = vst [vmem:[#allocation3 + $0x2e8] sm:$0xf] %v1692
        %1757 = vst [vmem:[#allocation3 + $0x30c] sm:$0xf] %v1693
        %1758 = vst [vmem:[#allocation3 + $0x330] sm:$0xf] %v1694
        %1759 = vst [vmem:[#allocation3 + $0x354] sm:$0xf] %v1695
        %1760 = vst [vmem:[#allocation3 + $0x378] sm:$0xf] %v1696
        %1761 = vst [vmem:[#allocation3 + $0x39c] sm:$0xf] %v1697
        %1762 = vst [vmem:[#allocation3 + $0x3c0] sm:$0xf] %v1698
        %1763 = vst [vmem:[#allocation3 + $0x3e4] sm:$0xf] %v1699
        %1764 = vst [vmem:[#allocation3 + $0x408] sm:$0xf] %v1700
        %1765 = vst [vmem:[#allocation3 + $0x42c] sm:$0xf] %v1701
        %1766 = vst [vmem:[#allocation3 + $0x450] sm:$0xf] %v1702
        %1767 = vst [vmem:[#allocation3 + $0x474] sm:$0xf] %v1703
        %v1768 = vld [vmem:[%s1575 + $0x8] sm:$0xff]
        %v1769 = vld [vmem:[%s1575 + $0x10] sm:$0xff]
        %v1770 = vld [vmem:[%s1575 + $0x28] sm:$0xff]
        %v1771 = vld [vmem:[%s1575 + $0x30] sm:$0xff]
        %v1772 = vld [vmem:[%s1575 + $0x48] sm:$0xff]
        %v1773 = vld [vmem:[%s1575 + $0x50] sm:$0xff]
        %v1774 = vld [vmem:[%s1575 + $0x68] sm:$0xff]
        %v1775 = vld [vmem:[%s1575 + $0x70] sm:$0xff]
        %v1776 = vld [vmem:[%s1575 + $0x88] sm:$0xff]
        %v1777 = vld [vmem:[%s1575 + $0x90] sm:$0xff]
        %v1778 = vld [vmem:[%s1575 + $0xa8] sm:$0xff]
        %v1779 = vld [vmem:[%s1575 + $0xb0] sm:$0xff]
        %v1780 = vld [vmem:[%s1575 + $0xc8] sm:$0xff]
        %v1781 = vld [vmem:[%s1575 + $0xd0] sm:$0xff]
        %v1782 = vld [vmem:[%s1575 + $0xe8] sm:$0xff]
        %v1783 = vld [vmem:[%s1575 + $0xf0] sm:$0xff]
        %v1784 = vld [vmem:[%s1575 + $0x108] sm:$0xff]
        %v1785 = vld [vmem:[%s1575 + $0x110] sm:$0xff]
        %v1786 = vld [vmem:[%s1575 + $0x128] sm:$0xff]
        %v1787 = vld [vmem:[%s1575 + $0x130] sm:$0xff]
        %v1788 = vld [vmem:[%s1575 + $0x148] sm:$0xff]
        %v1789 = vld [vmem:[%s1575 + $0x150] sm:$0xff]
        %v1790 = vld [vmem:[%s1575 + $0x168] sm:$0xff]
        %v1791 = vld [vmem:[%s1575 + $0x170] sm:$0xff]
        %v1792 = vld [vmem:[%s1575 + $0x188] sm:$0xff]
        %v1793 = vld [vmem:[%s1575 + $0x190] sm:$0xff]
        %v1794 = vld [vmem:[%s1575 + $0x1a8] sm:$0xff]
        %v1795 = vld [vmem:[%s1575 + $0x1b0] sm:$0xff]
        %v1796 = vld [vmem:[%s1575 + $0x1c8] sm:$0xff]
        %v1797 = vld [vmem:[%s1575 + $0x1d0] sm:$0xff]
        %v1798 = vld [vmem:[%s1575 + $0x1e8] sm:$0xff]
        %v1799 = vld [vmem:[%s1575 + $0x1f0] sm:$0xff]
        %v1800 = vpack.c.bf16 %v1769, %v1768
        %v1801 = vpack.c.bf16 %v1771, %v1770
        %v1802 = vpack.c.bf16 %v1773, %v1772
        %v1803 = vpack.c.bf16 %v1775, %v1774
        %v1804 = vpack.c.bf16 %v1777, %v1776
        %v1805 = vpack.c.bf16 %v1779, %v1778
        %v1806 = vpack.c.bf16 %v1781, %v1780
        %v1807 = vpack.c.bf16 %v1783, %v1782
        %v1808 = vpack.c.bf16 %v1785, %v1784
        %v1809 = vpack.c.bf16 %v1787, %v1786
        %v1810 = vpack.c.bf16 %v1789, %v1788
        %v1811 = vpack.c.bf16 %v1791, %v1790
        %v1812 = vpack.c.bf16 %v1793, %v1792
        %v1813 = vpack.c.bf16 %v1795, %v1794
        %v1814 = vpack.c.bf16 %v1797, %v1796
        %v1815 = vpack.c.bf16 %v1799, %v1798
        %v1832 = vunpack.c.l.b16 %v1800
        %v1833 = vunpack.c.h.b16 %v1800
        %v1834 = vunpack.c.l.b16 %v1801
        %v1835 = vunpack.c.h.b16 %v1801
        %v1836 = vunpack.c.l.b16 %v1802
        %v1837 = vunpack.c.h.b16 %v1802
        %v1838 = vunpack.c.l.b16 %v1803
        %v1839 = vunpack.c.h.b16 %v1803
        %v1840 = vunpack.c.l.b16 %v1804
        %v1841 = vunpack.c.h.b16 %v1804
        %v1842 = vunpack.c.l.b16 %v1805
        %v1843 = vunpack.c.h.b16 %v1805
        %v1844 = vunpack.c.l.b16 %v1806
        %v1845 = vunpack.c.h.b16 %v1806
        %v1846 = vunpack.c.l.b16 %v1807
        %v1847 = vunpack.c.h.b16 %v1807
        %v1848 = vunpack.c.l.b16 %v1808
        %v1849 = vunpack.c.h.b16 %v1808
        %v1850 = vunpack.c.l.b16 %v1809
        %v1851 = vunpack.c.h.b16 %v1809
        %v1852 = vunpack.c.l.b16 %v1810
        %v1853 = vunpack.c.h.b16 %v1810
        %v1854 = vunpack.c.l.b16 %v1811
        %v1855 = vunpack.c.h.b16 %v1811
        %v1856 = vunpack.c.l.b16 %v1812
        %v1857 = vunpack.c.h.b16 %v1812
        %v1858 = vunpack.c.l.b16 %v1813
        %v1859 = vunpack.c.h.b16 %v1813
        %v1860 = vunpack.c.l.b16 %v1814
        %v1861 = vunpack.c.h.b16 %v1814
        %v1862 = vunpack.c.l.b16 %v1815
        %v1863 = vunpack.c.h.b16 %v1815
        %v1864 = vpack.c.b16 %v1832, %v1832
        %v1865 = vpack.c.b16 %v1833, %v1833
        %v1866 = vpack.c.b16 %v1834, %v1834
        %v1867 = vpack.c.b16 %v1835, %v1835
        %v1868 = vpack.c.b16 %v1836, %v1836
        %v1869 = vpack.c.b16 %v1837, %v1837
        %v1870 = vpack.c.b16 %v1838, %v1838
        %v1871 = vpack.c.b16 %v1839, %v1839
        %v1872 = vpack.c.b16 %v1840, %v1840
        %v1873 = vpack.c.b16 %v1841, %v1841
        %v1874 = vpack.c.b16 %v1842, %v1842
        %v1875 = vpack.c.b16 %v1843, %v1843
        %v1876 = vpack.c.b16 %v1844, %v1844
        %v1877 = vpack.c.b16 %v1845, %v1845
        %v1878 = vpack.c.b16 %v1846, %v1846
        %v1879 = vpack.c.b16 %v1847, %v1847
        %v1880 = vpack.c.b16 %v1848, %v1848
        %v1881 = vpack.c.b16 %v1849, %v1849
        %v1882 = vpack.c.b16 %v1850, %v1850
        %v1883 = vpack.c.b16 %v1851, %v1851
        %v1884 = vpack.c.b16 %v1852, %v1852
        %v1885 = vpack.c.b16 %v1853, %v1853
        %v1886 = vpack.c.b16 %v1854, %v1854
        %v1887 = vpack.c.b16 %v1855, %v1855
        %v1888 = vpack.c.b16 %v1856, %v1856
        %v1889 = vpack.c.b16 %v1857, %v1857
        %v1890 = vpack.c.b16 %v1858, %v1858
        %v1891 = vpack.c.b16 %v1859, %v1859
        %v1892 = vpack.c.b16 %v1860, %v1860
        %v1893 = vpack.c.b16 %v1861, %v1861
        %v1894 = vpack.c.b16 %v1862, %v1862
        %v1895 = vpack.c.b16 %v1863, %v1863
        %1928 = vst [vmem:[#allocation3 + $0x1c] sm:$0xf] %v1864
        %1929 = vst [vmem:[#allocation3 + $0x40] sm:$0xf] %v1865
        %1930 = vst [vmem:[#allocation3 + $0x64] sm:$0xf] %v1866
        %1931 = vst [vmem:[#allocation3 + $0x88] sm:$0xf] %v1867
        %1932 = vst [vmem:[#allocation3 + $0xac] sm:$0xf] %v1868
        %1933 = vst [vmem:[#allocation3 + $0xd0] sm:$0xf] %v1869
        %1934 = vst [vmem:[#allocation3 + $0xf4] sm:$0xf] %v1870
        %1935 = vst [vmem:[#allocation3 + $0x118] sm:$0xf] %v1871
        %1936 = vst [vmem:[#allocation3 + $0x13c] sm:$0xf] %v1872
        %1937 = vst [vmem:[#allocation3 + $0x160] sm:$0xf] %v1873
        %1938 = vst [vmem:[#allocation3 + $0x184] sm:$0xf] %v1874
        %1939 = vst [vmem:[#allocation3 + $0x1a8] sm:$0xf] %v1875
        %1940 = vst [vmem:[#allocation3 + $0x1cc] sm:$0xf] %v1876
        %1941 = vst [vmem:[#allocation3 + $0x1f0] sm:$0xf] %v1877
        %1942 = vst [vmem:[#allocation3 + $0x214] sm:$0xf] %v1878
        %1943 = vst [vmem:[#allocation3 + $0x238] sm:$0xf] %v1879
        %1944 = vst [vmem:[#allocation3 + $0x25c] sm:$0xf] %v1880
        %1945 = vst [vmem:[#allocation3 + $0x280] sm:$0xf] %v1881
        %1946 = vst [vmem:[#allocation3 + $0x2a4] sm:$0xf] %v1882
        %1947 = vst [vmem:[#allocation3 + $0x2c8] sm:$0xf] %v1883
        %1948 = vst [vmem:[#allocation3 + $0x2ec] sm:$0xf] %v1884
        %1949 = vst [vmem:[#allocation3 + $0x310] sm:$0xf] %v1885
        %1950 = vst [vmem:[#allocation3 + $0x334] sm:$0xf] %v1886
        %1951 = vst [vmem:[#allocation3 + $0x358] sm:$0xf] %v1887
        %1952 = vst [vmem:[#allocation3 + $0x37c] sm:$0xf] %v1888
        %1953 = vst [vmem:[#allocation3 + $0x3a0] sm:$0xf] %v1889
        %1954 = vst [vmem:[#allocation3 + $0x3c4] sm:$0xf] %v1890
        %1955 = vst [vmem:[#allocation3 + $0x3e8] sm:$0xf] %v1891
        %1956 = vst [vmem:[#allocation3 + $0x40c] sm:$0xf] %v1892
        %1957 = vst [vmem:[#allocation3 + $0x430] sm:$0xf] %v1893
        %1958 = vst [vmem:[#allocation3 + $0x454] sm:$0xf] %v1894
        %1959 = vst [vmem:[#allocation3 + $0x478] sm:$0xf] %v1895
        %v1960 = vld [vmem:[%s1575 + $0x9] sm:$0xff]
        %v1961 = vld [vmem:[%s1575 + $0x11] sm:$0xff]
        %v1962 = vld [vmem:[%s1575 + $0x29] sm:$0xff]
        %v1963 = vld [vmem:[%s1575 + $0x31] sm:$0xff]
        %v1964 = vld [vmem:[%s1575 + $0x49] sm:$0xff]
        %v1965 = vld [vmem:[%s1575 + $0x51] sm:$0xff]
        %v1966 = vld [vmem:[%s1575 + $0x69] sm:$0xff]
        %v1967 = vld [vmem:[%s1575 + $0x71] sm:$0xff]
        %v1968 = vld [vmem:[%s1575 + $0x89] sm:$0xff]
        %v1969 = vld [vmem:[%s1575 + $0x91] sm:$0xff]
        %v1970 = vld [vmem:[%s1575 + $0xa9] sm:$0xff]
        %v1971 = vld [vmem:[%s1575 + $0xb1] sm:$0xff]
        %v1972 = vld [vmem:[%s1575 + $0xc9] sm:$0xff]
        %v1973 = vld [vmem:[%s1575 + $0xd1] sm:$0xff]
        %v1974 = vld [vmem:[%s1575 + $0xe9] sm:$0xff]
        %v1975 = vld [vmem:[%s1575 + $0xf1] sm:$0xff]
        %v1976 = vld [vmem:[%s1575 + $0x109] sm:$0xff]
        %v1977 = vld [vmem:[%s1575 + $0x111] sm:$0xff]
        %v1978 = vld [vmem:[%s1575 + $0x129] sm:$0xff]
        %v1979 = vld [vmem:[%s1575 + $0x131] sm:$0xff]
        %v1980 = vld [vmem:[%s1575 + $0x149] sm:$0xff]
        %v1981 = vld [vmem:[%s1575 + $0x151] sm:$0xff]
        %v1982 = vld [vmem:[%s1575 + $0x169] sm:$0xff]
        %v1983 = vld [vmem:[%s1575 + $0x171] sm:$0xff]
        %v1984 = vld [vmem:[%s1575 + $0x189] sm:$0xff]
        %v1985 = vld [vmem:[%s1575 + $0x191] sm:$0xff]
        %v1986 = vld [vmem:[%s1575 + $0x1a9] sm:$0xff]
        %v1987 = vld [vmem:[%s1575 + $0x1b1] sm:$0xff]
        %v1988 = vld [vmem:[%s1575 + $0x1c9] sm:$0xff]
        %v1989 = vld [vmem:[%s1575 + $0x1d1] sm:$0xff]
        %v1990 = vld [vmem:[%s1575 + $0x1e9] sm:$0xff]
        %v1991 = vld [vmem:[%s1575 + $0x1f1] sm:$0xff]
        %v1992 = vpack.c.bf16 %v1961, %v1960
        %v1993 = vpack.c.bf16 %v1963, %v1962
        %v1994 = vpack.c.bf16 %v1965, %v1964
        %v1995 = vpack.c.bf16 %v1967, %v1966
        %v1996 = vpack.c.bf16 %v1969, %v1968
        %v1997 = vpack.c.bf16 %v1971, %v1970
        %v1998 = vpack.c.bf16 %v1973, %v1972
        %v1999 = vpack.c.bf16 %v1975, %v1974
        %v2000 = vpack.c.bf16 %v1977, %v1976
        %v2001 = vpack.c.bf16 %v1979, %v1978
        %v2002 = vpack.c.bf16 %v1981, %v1980
        %v2003 = vpack.c.bf16 %v1983, %v1982
        %v2004 = vpack.c.bf16 %v1985, %v1984
        %v2005 = vpack.c.bf16 %v1987, %v1986
        %v2006 = vpack.c.bf16 %v1989, %v1988
        %v2007 = vpack.c.bf16 %v1991, %v1990
        %v2024 = vunpack.c.l.b16 %v1992
        %v2025 = vunpack.c.h.b16 %v1992
        %v2026 = vunpack.c.l.b16 %v1993
        %v2027 = vunpack.c.h.b16 %v1993
        %v2028 = vunpack.c.l.b16 %v1994
        %v2029 = vunpack.c.h.b16 %v1994
        %v2030 = vunpack.c.l.b16 %v1995
        %v2031 = vunpack.c.h.b16 %v1995
        %v2032 = vunpack.c.l.b16 %v1996
        %v2033 = vunpack.c.h.b16 %v1996
        %v2034 = vunpack.c.l.b16 %v1997
        %v2035 = vunpack.c.h.b16 %v1997
        %v2036 = vunpack.c.l.b16 %v1998
        %v2037 = vunpack.c.h.b16 %v1998
        %v2038 = vunpack.c.l.b16 %v1999
        %v2039 = vunpack.c.h.b16 %v1999
        %v2040 = vunpack.c.l.b16 %v2000
        %v2041 = vunpack.c.h.b16 %v2000
        %v2042 = vunpack.c.l.b16 %v2001
        %v2043 = vunpack.c.h.b16 %v2001
        %v2044 = vunpack.c.l.b16 %v2002
        %v2045 = vunpack.c.h.b16 %v2002
        %v2046 = vunpack.c.l.b16 %v2003
        %v2047 = vunpack.c.h.b16 %v2003
        %v2048 = vunpack.c.l.b16 %v2004
        %v2049 = vunpack.c.h.b16 %v2004
        %v2050 = vunpack.c.l.b16 %v2005
        %v2051 = vunpack.c.h.b16 %v2005
        %v2052 = vunpack.c.l.b16 %v2006
        %v2053 = vunpack.c.h.b16 %v2006
        %v2054 = vunpack.c.l.b16 %v2007
        %v2055 = vunpack.c.h.b16 %v2007
        %v2056 = vpack.c.b16 %v2024, %v2024
        %v2057 = vpack.c.b16 %v2025, %v2025
        %v2058 = vpack.c.b16 %v2026, %v2026
        %v2059 = vpack.c.b16 %v2027, %v2027
        %v2060 = vpack.c.b16 %v2028, %v2028
        %v2061 = vpack.c.b16 %v2029, %v2029
        %v2062 = vpack.c.b16 %v2030, %v2030
        %v2063 = vpack.c.b16 %v2031, %v2031
        %v2064 = vpack.c.b16 %v2032, %v2032
        %v2065 = vpack.c.b16 %v2033, %v2033
        %v2066 = vpack.c.b16 %v2034, %v2034
        %v2067 = vpack.c.b16 %v2035, %v2035
        %v2068 = vpack.c.b16 %v2036, %v2036
        %v2069 = vpack.c.b16 %v2037, %v2037
        %v2070 = vpack.c.b16 %v2038, %v2038
        %v2071 = vpack.c.b16 %v2039, %v2039
        %v2072 = vpack.c.b16 %v2040, %v2040
        %v2073 = vpack.c.b16 %v2041, %v2041
        %v2074 = vpack.c.b16 %v2042, %v2042
        %v2075 = vpack.c.b16 %v2043, %v2043
        %v2076 = vpack.c.b16 %v2044, %v2044
        %v2077 = vpack.c.b16 %v2045, %v2045
        %v2078 = vpack.c.b16 %v2046, %v2046
        %v2079 = vpack.c.b16 %v2047, %v2047
        %v2080 = vpack.c.b16 %v2048, %v2048
        %v2081 = vpack.c.b16 %v2049, %v2049
        %v2082 = vpack.c.b16 %v2050, %v2050
        %v2083 = vpack.c.b16 %v2051, %v2051
        %v2084 = vpack.c.b16 %v2052, %v2052
        %v2085 = vpack.c.b16 %v2053, %v2053
        %v2086 = vpack.c.b16 %v2054, %v2054
        %v2087 = vpack.c.b16 %v2055, %v2055
        %2120 = vst [vmem:[#allocation3 + $0x20] sm:$0xf] %v2056
        %2121 = vst [vmem:[#allocation3 + $0x44] sm:$0xf] %v2057
        %2122 = vst [vmem:[#allocation3 + $0x68] sm:$0xf] %v2058
        %2123 = vst [vmem:[#allocation3 + $0x8c] sm:$0xf] %v2059
        %2124 = vst [vmem:[#allocation3 + $0xb0] sm:$0xf] %v2060
        %2125 = vst [vmem:[#allocation3 + $0xd4] sm:$0xf] %v2061
        %2126 = vst [vmem:[#allocation3 + $0xf8] sm:$0xf] %v2062
        %2127 = vst [vmem:[#allocation3 + $0x11c] sm:$0xf] %v2063
        %2128 = vst [vmem:[#allocation3 + $0x140] sm:$0xf] %v2064
        %2129 = vst [vmem:[#allocation3 + $0x164] sm:$0xf] %v2065
        %2130 = vst [vmem:[#allocation3 + $0x188] sm:$0xf] %v2066
        %2131 = vst [vmem:[#allocation3 + $0x1ac] sm:$0xf] %v2067
        %2132 = vst [vmem:[#allocation3 + $0x1d0] sm:$0xf] %v2068
        %2133 = vst [vmem:[#allocation3 + $0x1f4] sm:$0xf] %v2069
        %2134 = vst [vmem:[#allocation3 + $0x218] sm:$0xf] %v2070
        %2135 = vst [vmem:[#allocation3 + $0x23c] sm:$0xf] %v2071
        %2136 = vst [vmem:[#allocation3 + $0x260] sm:$0xf] %v2072
        %2137 = vst [vmem:[#allocation3 + $0x284] sm:$0xf] %v2073
        %2138 = vst [vmem:[#allocation3 + $0x2a8] sm:$0xf] %v2074
        %2139 = vst [vmem:[#allocation3 + $0x2cc] sm:$0xf] %v2075
        %2140 = vst [vmem:[#allocation3 + $0x2f0] sm:$0xf] %v2076
        %2141 = vst [vmem:[#allocation3 + $0x314] sm:$0xf] %v2077
        %2142 = vst [vmem:[#allocation3 + $0x338] sm:$0xf] %v2078
        %2143 = vst [vmem:[#allocation3 + $0x35c] sm:$0xf] %v2079
        %2144 = vst [vmem:[#allocation3 + $0x380] sm:$0xf] %v2080
        %2145 = vst [vmem:[#allocation3 + $0x3a4] sm:$0xf] %v2081
        %2146 = vst [vmem:[#allocation3 + $0x3c8] sm:$0xf] %v2082
        %2147 = vst [vmem:[#allocation3 + $0x3ec] sm:$0xf] %v2083
        %2148 = vst [vmem:[#allocation3 + $0x410] sm:$0xf] %v2084
        %2149 = vst [vmem:[#allocation3 + $0x434] sm:$0xf] %v2085
        %2150 = vst [vmem:[#allocation3 + $0x458] sm:$0xf] %v2086
        %2151 = vst [vmem:[#allocation3 + $0x47c] sm:$0xf] %v2087
        %v2152 = vld [vmem:[#allocation3] sm:$0xff]
        %v2153 = vld [vmem:[#allocation3 + $0x8] sm:$0xff]
        %v2154 = vld [vmem:[#allocation3 + $0x10] sm:$0xff]
        %v2155 = vld [vmem:[#allocation3 + $0x18] sm:$0xff]
        %v2156 = vld [vmem:[#allocation3 + $0x20] sm:$0xf]
        %v2157 = vld [vmem:[#allocation3 + $0x24] sm:$0xff]
        %v2158 = vld [vmem:[#allocation3 + $0x2c] sm:$0xff]
        %v2159 = vld [vmem:[#allocation3 + $0x34] sm:$0xff]
        %v2160 = vld [vmem:[#allocation3 + $0x3c] sm:$0xff]
        %v2161 = vld [vmem:[#allocation3 + $0x44] sm:$0xf]
        %v2162 = vld [vmem:[#allocation3 + $0x48] sm:$0xff]
        %v2163 = vld [vmem:[#allocation3 + $0x50] sm:$0xff]
        %v2164 = vld [vmem:[#allocation3 + $0x58] sm:$0xff]
        %v2165 = vld [vmem:[#allocation3 + $0x60] sm:$0xff]
        %v2166 = vld [vmem:[#allocation3 + $0x68] sm:$0xf]
        %v2167 = vld [vmem:[#allocation3 + $0x6c] sm:$0xff]
        %v2168 = vld [vmem:[#allocation3 + $0x74] sm:$0xff]
        %v2169 = vld [vmem:[#allocation3 + $0x7c] sm:$0xff]
        %v2170 = vld [vmem:[#allocation3 + $0x84] sm:$0xff]
        %v2171 = vld [vmem:[#allocation3 + $0x8c] sm:$0xf]
        %v2172 = vld [vmem:[#allocation3 + $0x90] sm:$0xff]
        %v2173 = vld [vmem:[#allocation3 + $0x98] sm:$0xff]
        %v2174 = vld [vmem:[#allocation3 + $0xa0] sm:$0xff]
        %v2175 = vld [vmem:[#allocation3 + $0xa8] sm:$0xff]
        %v2176 = vld [vmem:[#allocation3 + $0xb0] sm:$0xf]
        %v2177 = vld [vmem:[#allocation3 + $0xb4] sm:$0xff]
        %v2178 = vld [vmem:[#allocation3 + $0xbc] sm:$0xff]
        %v2179 = vld [vmem:[#allocation3 + $0xc4] sm:$0xff]
        %v2180 = vld [vmem:[#allocation3 + $0xcc] sm:$0xff]
        %v2181 = vld [vmem:[#allocation3 + $0xd4] sm:$0xf]
        %v2182 = vld [vmem:[#allocation3 + $0xd8] sm:$0xff]
        %v2183 = vld [vmem:[#allocation3 + $0xe0] sm:$0xff]
        %v2184 = vld [vmem:[#allocation3 + $0xe8] sm:$0xff]
        %v2185 = vld [vmem:[#allocation3 + $0xf0] sm:$0xff]
        %v2186 = vld [vmem:[#allocation3 + $0xf8] sm:$0xf]
        %v2187 = vld [vmem:[#allocation3 + $0xfc] sm:$0xff]
        %v2188 = vld [vmem:[#allocation3 + $0x104] sm:$0xff]
        %v2189 = vld [vmem:[#allocation3 + $0x10c] sm:$0xff]
        %v2190 = vld [vmem:[#allocation3 + $0x114] sm:$0xff]
        %v2191 = vld [vmem:[#allocation3 + $0x11c] sm:$0xf]
        %v2192 = vld [vmem:[#allocation3 + $0x120] sm:$0xff]
        %v2193 = vld [vmem:[#allocation3 + $0x128] sm:$0xff]
        %v2194 = vld [vmem:[#allocation3 + $0x130] sm:$0xff]
        %v2195 = vld [vmem:[#allocation3 + $0x138] sm:$0xff]
        %v2196 = vld [vmem:[#allocation3 + $0x140] sm:$0xf]
        %v2197 = vld [vmem:[#allocation3 + $0x144] sm:$0xff]
        %v2198 = vld [vmem:[#allocation3 + $0x14c] sm:$0xff]
        %v2199 = vld [vmem:[#allocation3 + $0x154] sm:$0xff]
        %v2200 = vld [vmem:[#allocation3 + $0x15c] sm:$0xff]
        %v2201 = vld [vmem:[#allocation3 + $0x164] sm:$0xf]
        %v2202 = vld [vmem:[#allocation3 + $0x168] sm:$0xff]
        %v2203 = vld [vmem:[#allocation3 + $0x170] sm:$0xff]
        %v2204 = vld [vmem:[#allocation3 + $0x178] sm:$0xff]
        %v2205 = vld [vmem:[#allocation3 + $0x180] sm:$0xff]
        %v2206 = vld [vmem:[#allocation3 + $0x188] sm:$0xf]
        %v2207 = vld [vmem:[#allocation3 + $0x18c] sm:$0xff]
        %v2208 = vld [vmem:[#allocation3 + $0x194] sm:$0xff]
        %v2209 = vld [vmem:[#allocation3 + $0x19c] sm:$0xff]
        %v2210 = vld [vmem:[#allocation3 + $0x1a4] sm:$0xff]
        %v2211 = vld [vmem:[#allocation3 + $0x1ac] sm:$0xf]
        %v2212 = vld [vmem:[#allocation3 + $0x1b0] sm:$0xff]
        %v2213 = vld [vmem:[#allocation3 + $0x1b8] sm:$0xff]
        %v2214 = vld [vmem:[#allocation3 + $0x1c0] sm:$0xff]
        %v2215 = vld [vmem:[#allocation3 + $0x1c8] sm:$0xff]
        %v2216 = vld [vmem:[#allocation3 + $0x1d0] sm:$0xf]
        %v2217 = vld [vmem:[#allocation3 + $0x1d4] sm:$0xff]
        %v2218 = vld [vmem:[#allocation3 + $0x1dc] sm:$0xff]
        %v2219 = vld [vmem:[#allocation3 + $0x1e4] sm:$0xff]
        %v2220 = vld [vmem:[#allocation3 + $0x1ec] sm:$0xff]
        %v2221 = vld [vmem:[#allocation3 + $0x1f4] sm:$0xf]
        %v2222 = vld [vmem:[#allocation3 + $0x1f8] sm:$0xff]
        %v2223 = vld [vmem:[#allocation3 + $0x200] sm:$0xff]
        %v2224 = vld [vmem:[#allocation3 + $0x208] sm:$0xff]
        %v2225 = vld [vmem:[#allocation3 + $0x210] sm:$0xff]
        %v2226 = vld [vmem:[#allocation3 + $0x218] sm:$0xf]
        %v2227 = vld [vmem:[#allocation3 + $0x21c] sm:$0xff]
        %v2228 = vld [vmem:[#allocation3 + $0x224] sm:$0xff]
        %v2229 = vld [vmem:[#allocation3 + $0x22c] sm:$0xff]
        %v2230 = vld [vmem:[#allocation3 + $0x234] sm:$0xff]
        %v2231 = vld [vmem:[#allocation3 + $0x23c] sm:$0xf]
        %v2232 = vld [vmem:[#allocation3 + $0x240] sm:$0xff]
        %v2233 = vld [vmem:[#allocation3 + $0x248] sm:$0xff]
        %v2234 = vld [vmem:[#allocation3 + $0x250] sm:$0xff]
        %v2235 = vld [vmem:[#allocation3 + $0x258] sm:$0xff]
        %v2236 = vld [vmem:[#allocation3 + $0x260] sm:$0xf]
        %v2237 = vld [vmem:[#allocation3 + $0x264] sm:$0xff]
        %v2238 = vld [vmem:[#allocation3 + $0x26c] sm:$0xff]
        %v2239 = vld [vmem:[#allocation3 + $0x274] sm:$0xff]
        %v2240 = vld [vmem:[#allocation3 + $0x27c] sm:$0xff]
        %v2241 = vld [vmem:[#allocation3 + $0x284] sm:$0xf]
        %v2242 = vld [vmem:[#allocation3 + $0x288] sm:$0xff]
        %v2243 = vld [vmem:[#allocation3 + $0x290] sm:$0xff]
        %v2244 = vld [vmem:[#allocation3 + $0x298] sm:$0xff]
        %v2245 = vld [vmem:[#allocation3 + $0x2a0] sm:$0xff]
        %v2246 = vld [vmem:[#allocation3 + $0x2a8] sm:$0xf]
        %v2247 = vld [vmem:[#allocation3 + $0x2ac] sm:$0xff]
        %v2248 = vld [vmem:[#allocation3 + $0x2b4] sm:$0xff]
        %v2249 = vld [vmem:[#allocation3 + $0x2bc] sm:$0xff]
        %v2250 = vld [vmem:[#allocation3 + $0x2c4] sm:$0xff]
        %v2251 = vld [vmem:[#allocation3 + $0x2cc] sm:$0xf]
        %v2252 = vld [vmem:[#allocation3 + $0x2d0] sm:$0xff]
        %v2253 = vld [vmem:[#allocation3 + $0x2d8] sm:$0xff]
        %v2254 = vld [vmem:[#allocation3 + $0x2e0] sm:$0xff]
        %v2255 = vld [vmem:[#allocation3 + $0x2e8] sm:$0xff]
        %v2256 = vld [vmem:[#allocation3 + $0x2f0] sm:$0xf]
        %v2257 = vld [vmem:[#allocation3 + $0x2f4] sm:$0xff]
        %v2258 = vld [vmem:[#allocation3 + $0x2fc] sm:$0xff]
        %v2259 = vld [vmem:[#allocation3 + $0x304] sm:$0xff]
        %v2260 = vld [vmem:[#allocation3 + $0x30c] sm:$0xff]
        %v2261 = vld [vmem:[#allocation3 + $0x314] sm:$0xf]
        %v2262 = vld [vmem:[#allocation3 + $0x318] sm:$0xff]
        %v2263 = vld [vmem:[#allocation3 + $0x320] sm:$0xff]
        %v2264 = vld [vmem:[#allocation3 + $0x328] sm:$0xff]
        %v2265 = vld [vmem:[#allocation3 + $0x330] sm:$0xff]
        %v2266 = vld [vmem:[#allocation3 + $0x338] sm:$0xf]
        %v2267 = vld [vmem:[#allocation3 + $0x33c] sm:$0xff]
        %v2268 = vld [vmem:[#allocation3 + $0x344] sm:$0xff]
        %v2269 = vld [vmem:[#allocation3 + $0x34c] sm:$0xff]
        %v2270 = vld [vmem:[#allocation3 + $0x354] sm:$0xff]
        %v2271 = vld [vmem:[#allocation3 + $0x35c] sm:$0xf]
        %v2272 = vld [vmem:[#allocation3 + $0x360] sm:$0xff]
        %v2273 = vld [vmem:[#allocation3 + $0x368] sm:$0xff]
        %v2274 = vld [vmem:[#allocation3 + $0x370] sm:$0xff]
        %v2275 = vld [vmem:[#allocation3 + $0x378] sm:$0xff]
        %v2276 = vld [vmem:[#allocation3 + $0x380] sm:$0xf]
        %v2277 = vld [vmem:[#allocation3 + $0x384] sm:$0xff]
        %v2278 = vld [vmem:[#allocation3 + $0x38c] sm:$0xff]
        %v2279 = vld [vmem:[#allocation3 + $0x394] sm:$0xff]
        %v2280 = vld [vmem:[#allocation3 + $0x39c] sm:$0xff]
        %v2281 = vld [vmem:[#allocation3 + $0x3a4] sm:$0xf]
        %v2282 = vld [vmem:[#allocation3 + $0x3a8] sm:$0xff]
        %v2283 = vld [vmem:[#allocation3 + $0x3b0] sm:$0xff]
        %v2284 = vld [vmem:[#allocation3 + $0x3b8] sm:$0xff]
        %v2285 = vld [vmem:[#allocation3 + $0x3c0] sm:$0xff]
        %v2286 = vld [vmem:[#allocation3 + $0x3c8] sm:$0xf]
        %v2287 = vld [vmem:[#allocation3 + $0x3cc] sm:$0xff]
        %v2288 = vld [vmem:[#allocation3 + $0x3d4] sm:$0xff]
        %v2289 = vld [vmem:[#allocation3 + $0x3dc] sm:$0xff]
        %v2290 = vld [vmem:[#allocation3 + $0x3e4] sm:$0xff]
        %v2291 = vld [vmem:[#allocation3 + $0x3ec] sm:$0xf]
        %v2292 = vld [vmem:[#allocation3 + $0x3f0] sm:$0xff]
        %v2293 = vld [vmem:[#allocation3 + $0x3f8] sm:$0xff]
        %v2294 = vld [vmem:[#allocation3 + $0x400] sm:$0xff]
        %v2295 = vld [vmem:[#allocation3 + $0x408] sm:$0xff]
        %v2296 = vld [vmem:[#allocation3 + $0x410] sm:$0xf]
        %v2297 = vld [vmem:[#allocation3 + $0x414] sm:$0xff]
        %v2298 = vld [vmem:[#allocation3 + $0x41c] sm:$0xff]
        %v2299 = vld [vmem:[#allocation3 + $0x424] sm:$0xff]
        %v2300 = vld [vmem:[#allocation3 + $0x42c] sm:$0xff]
        %v2301 = vld [vmem:[#allocation3 + $0x434] sm:$0xf]
        %v2302 = vld [vmem:[#allocation3 + $0x438] sm:$0xff]
        %v2303 = vld [vmem:[#allocation3 + $0x440] sm:$0xff]
        %v2304 = vld [vmem:[#allocation3 + $0x448] sm:$0xff]
        %v2305 = vld [vmem:[#allocation3 + $0x450] sm:$0xff]
        %v2306 = vld [vmem:[#allocation3 + $0x458] sm:$0xf]
        %v2307 = vld [vmem:[#allocation3 + $0x45c] sm:$0xff]
        %v2308 = vld [vmem:[#allocation3 + $0x464] sm:$0xff]
        %v2309 = vld [vmem:[#allocation3 + $0x46c] sm:$0xff]
        %v2310 = vld [vmem:[#allocation3 + $0x474] sm:$0xff]
        %v2311 = vld [vmem:[#allocation3 + $0x47c] sm:$0xf]
        %v2312 = vld [vmem:[#allocation7] sm:$0xf]
        %v2313 = vld [vmem:[#allocation7 + $0x4] sm:$0xf]
        %v2314 = vld [vmem:[#allocation7 + $0x8] sm:$0xf]
        %v2315 = vld [vmem:[#allocation7 + $0xc] sm:$0xf]
        %v2316 = vld [vmem:[#allocation7 + $0x10] sm:$0xf]
        %v2317 = vld [vmem:[#allocation7 + $0x14] sm:$0xf]
        %v2318 = vld [vmem:[#allocation7 + $0x18] sm:$0xf]
        %v2319 = vld [vmem:[#allocation7 + $0x1c] sm:$0xf]
        %v2320 = vld [vmem:[#allocation7 + $0x20] sm:$0xf]
        %v2321 = vld [vmem:[#allocation7 + $0x24] sm:$0xf]
        %v2322 = vld [vmem:[#allocation7 + $0x28] sm:$0xf]
        %v2323 = vld [vmem:[#allocation7 + $0x2c] sm:$0xf]
        %v2324 = vld [vmem:[#allocation7 + $0x30] sm:$0xf]
        %v2325 = vld [vmem:[#allocation7 + $0x34] sm:$0xf]
        %v2326 = vld [vmem:[#allocation7 + $0x38] sm:$0xf]
        %v2327 = vld [vmem:[#allocation7 + $0x3c] sm:$0xf]
        %v2328 = vld [vmem:[#allocation7 + $0x40] sm:$0xf]
        %v2329 = vld [vmem:[#allocation7 + $0x44] sm:$0xf]
        %v2330 = vld [vmem:[#allocation7 + $0x48] sm:$0xf]
        %v2331 = vld [vmem:[#allocation7 + $0x4c] sm:$0xf]
        %v2332 = vld [vmem:[#allocation7 + $0x50] sm:$0xf]
        %v2333 = vld [vmem:[#allocation7 + $0x54] sm:$0xf]
        %v2334 = vld [vmem:[#allocation7 + $0x58] sm:$0xf]
        %v2335 = vld [vmem:[#allocation7 + $0x5c] sm:$0xf]
        %v2336 = vld [vmem:[#allocation7 + $0x60] sm:$0xf]
        %v2337 = vld [vmem:[#allocation7 + $0x64] sm:$0xf]
        %v2338 = vld [vmem:[#allocation7 + $0x68] sm:$0xf]
        %v2339 = vld [vmem:[#allocation7 + $0x6c] sm:$0xf]
        %v2340 = vld [vmem:[#allocation7 + $0x70] sm:$0xf]
        %v2341 = vld [vmem:[#allocation7 + $0x74] sm:$0xf]
        %v2342 = vld [vmem:[#allocation7 + $0x78] sm:$0xf]
        %v2343 = vld [vmem:[#allocation7 + $0x7c] sm:$0xf]
        %v2344 = vld [vmem:[#allocation7 + $0x80] sm:$0xf]
        %v2345 = vld [vmem:[#allocation7 + $0x84] sm:$0xf]
        %v2346 = vld [vmem:[#allocation7 + $0x88] sm:$0xf]
        %v2347 = vld [vmem:[#allocation7 + $0x8c] sm:$0xf]
        %v2348 = vld [vmem:[#allocation7 + $0x90] sm:$0xf]
        %v2349 = vld [vmem:[#allocation7 + $0x94] sm:$0xf]
        %v2350 = vld [vmem:[#allocation7 + $0x98] sm:$0xf]
        %v2351 = vld [vmem:[#allocation7 + $0x9c] sm:$0xf]
        %v2352 = vld [vmem:[#allocation7 + $0xa0] sm:$0xf]
        %v2353 = vld [vmem:[#allocation7 + $0xa4] sm:$0xf]
        %v2354 = vld [vmem:[#allocation7 + $0xa8] sm:$0xf]
        %v2355 = vld [vmem:[#allocation7 + $0xac] sm:$0xf]
        %v2356 = vld [vmem:[#allocation7 + $0xb0] sm:$0xf]
        %v2357 = vld [vmem:[#allocation7 + $0xb4] sm:$0xf]
        %v2358 = vld [vmem:[#allocation7 + $0xb8] sm:$0xf]
        %v2359 = vld [vmem:[#allocation7 + $0xbc] sm:$0xf]
        %v2360 = vld [vmem:[#allocation7 + $0xc0] sm:$0xf]
        %v2361 = vld [vmem:[#allocation7 + $0xc4] sm:$0xf]
        %v2362 = vld [vmem:[#allocation7 + $0xc8] sm:$0xf]
        %v2363 = vld [vmem:[#allocation7 + $0xcc] sm:$0xf]
        %v2364 = vld [vmem:[#allocation7 + $0xd0] sm:$0xf]
        %v2365 = vld [vmem:[#allocation7 + $0xd4] sm:$0xf]
        %v2366 = vld [vmem:[#allocation7 + $0xd8] sm:$0xf]
        %v2367 = vld [vmem:[#allocation7 + $0xdc] sm:$0xf]
        %v2368 = vld [vmem:[#allocation7 + $0xe0] sm:$0xf]
        %v2369 = vld [vmem:[#allocation7 + $0xe4] sm:$0xf]
        %v2370 = vld [vmem:[#allocation7 + $0xe8] sm:$0xf]
        %v2371 = vld [vmem:[#allocation7 + $0xec] sm:$0xf]
        %v2372 = vld [vmem:[#allocation7 + $0xf0] sm:$0xf]
        %v2373 = vld [vmem:[#allocation7 + $0xf4] sm:$0xf]
        %v2374 = vld [vmem:[#allocation7 + $0xf8] sm:$0xf]
        %v2375 = vld [vmem:[#allocation7 + $0xfc] sm:$0xf]
        %v2376 = vld [vmem:[#allocation7 + $0x100] sm:$0xf]
        %v2377 = vld [vmem:[#allocation7 + $0x104] sm:$0xf]
        %v2378 = vld [vmem:[#allocation7 + $0x108] sm:$0xf]
        %v2379 = vld [vmem:[#allocation7 + $0x10c] sm:$0xf]
        %v2380 = vld [vmem:[#allocation7 + $0x110] sm:$0xf]
        %v2381 = vld [vmem:[#allocation7 + $0x114] sm:$0xf]
        %v2382 = vld [vmem:[#allocation7 + $0x118] sm:$0xf]
        %v2383 = vld [vmem:[#allocation7 + $0x11c] sm:$0xf]
        %v2384 = vld [vmem:[#allocation7 + $0x120] sm:$0xf]
        %v2385 = vld [vmem:[#allocation7 + $0x124] sm:$0xf]
        %v2386 = vld [vmem:[#allocation7 + $0x128] sm:$0xf]
        %v2387 = vld [vmem:[#allocation7 + $0x12c] sm:$0xf]
        %v2388 = vld [vmem:[#allocation7 + $0x130] sm:$0xf]
        %v2389 = vld [vmem:[#allocation7 + $0x134] sm:$0xf]
        %v2390 = vld [vmem:[#allocation7 + $0x138] sm:$0xf]
        %v2391 = vld [vmem:[#allocation7 + $0x13c] sm:$0xf]
        %v2392 = vld [vmem:[#allocation7 + $0x140] sm:$0xf]
        %v2393 = vld [vmem:[#allocation7 + $0x144] sm:$0xf]
        %v2394 = vld [vmem:[#allocation7 + $0x148] sm:$0xf]
        %v2395 = vld [vmem:[#allocation7 + $0x14c] sm:$0xf]
        %v2396 = vld [vmem:[#allocation7 + $0x150] sm:$0xf]
        %v2397 = vld [vmem:[#allocation7 + $0x154] sm:$0xf]
        %v2398 = vld [vmem:[#allocation7 + $0x158] sm:$0xf]
        %v2399 = vld [vmem:[#allocation7 + $0x15c] sm:$0xf]
        %v2400 = vld [vmem:[#allocation7 + $0x160] sm:$0xf]
        %v2401 = vld [vmem:[#allocation7 + $0x164] sm:$0xf]
        %v2402 = vld [vmem:[#allocation7 + $0x168] sm:$0xf]
        %v2403 = vld [vmem:[#allocation7 + $0x16c] sm:$0xf]
        %v2404 = vld [vmem:[#allocation7 + $0x170] sm:$0xf]
        %v2405 = vld [vmem:[#allocation7 + $0x174] sm:$0xf]
        %v2406 = vld [vmem:[#allocation7 + $0x178] sm:$0xf]
        %v2407 = vld [vmem:[#allocation7 + $0x17c] sm:$0xf]
        %v2408 = vld [vmem:[#allocation7 + $0x180] sm:$0xf]
        %v2409 = vld [vmem:[#allocation7 + $0x184] sm:$0xf]
        %v2410 = vld [vmem:[#allocation7 + $0x188] sm:$0xf]
        %v2411 = vld [vmem:[#allocation7 + $0x18c] sm:$0xf]
        %v2412 = vld [vmem:[#allocation7 + $0x190] sm:$0xf]
        %v2413 = vld [vmem:[#allocation7 + $0x194] sm:$0xf]
        %v2414 = vld [vmem:[#allocation7 + $0x198] sm:$0xf]
        %v2415 = vld [vmem:[#allocation7 + $0x19c] sm:$0xf]
        %v2416 = vld [vmem:[#allocation7 + $0x1a0] sm:$0xf]
        %v2417 = vld [vmem:[#allocation7 + $0x1a4] sm:$0xf]
        %v2418 = vld [vmem:[#allocation7 + $0x1a8] sm:$0xf]
        %v2419 = vld [vmem:[#allocation7 + $0x1ac] sm:$0xf]
        %v2420 = vld [vmem:[#allocation7 + $0x1b0] sm:$0xf]
        %v2421 = vld [vmem:[#allocation7 + $0x1b4] sm:$0xf]
        %v2422 = vld [vmem:[#allocation7 + $0x1b8] sm:$0xf]
        %v2423 = vld [vmem:[#allocation7 + $0x1bc] sm:$0xf]
        %v2424 = vld [vmem:[#allocation7 + $0x1c0] sm:$0xf]
        %v2425 = vld [vmem:[#allocation7 + $0x1c4] sm:$0xf]
        %v2426 = vld [vmem:[#allocation7 + $0x1c8] sm:$0xf]
        %v2427 = vld [vmem:[#allocation7 + $0x1cc] sm:$0xf]
        %v2428 = vld [vmem:[#allocation7 + $0x1d0] sm:$0xf]
        %v2429 = vld [vmem:[#allocation7 + $0x1d4] sm:$0xf]
        %v2430 = vld [vmem:[#allocation7 + $0x1d8] sm:$0xf]
        %v2431 = vld [vmem:[#allocation7 + $0x1dc] sm:$0xf]
        %v2432 = vld [vmem:[#allocation7 + $0x1e0] sm:$0xf]
        %v2433 = vld [vmem:[#allocation7 + $0x1e4] sm:$0xf]
        %v2434 = vld [vmem:[#allocation7 + $0x1e8] sm:$0xf]
        %v2435 = vld [vmem:[#allocation7 + $0x1ec] sm:$0xf]
        %v2436 = vld [vmem:[#allocation7 + $0x1f0] sm:$0xf]
        %v2437 = vld [vmem:[#allocation7 + $0x1f4] sm:$0xf]
        %v2438 = vld [vmem:[#allocation7 + $0x1f8] sm:$0xf]
        %v2439 = vld [vmem:[#allocation7 + $0x1fc] sm:$0xf]
        %v2440 = vld [vmem:[#allocation7 + $0x200] sm:$0xf]
        %v2441 = vld [vmem:[#allocation7 + $0x204] sm:$0xf]
        %v2442 = vld [vmem:[#allocation7 + $0x208] sm:$0xf]
        %v2443 = vld [vmem:[#allocation7 + $0x20c] sm:$0xf]
        %v2444 = vld [vmem:[#allocation7 + $0x210] sm:$0xf]
        %v2445 = vld [vmem:[#allocation7 + $0x214] sm:$0xf]
        %v2446 = vld [vmem:[#allocation7 + $0x218] sm:$0xf]
        %v2447 = vld [vmem:[#allocation7 + $0x21c] sm:$0xf]
        %v2448 = vld [vmem:[#allocation7 + $0x220] sm:$0xf]
        %v2449 = vld [vmem:[#allocation7 + $0x224] sm:$0xf]
        %v2450 = vld [vmem:[#allocation7 + $0x228] sm:$0xf]
        %v2451 = vld [vmem:[#allocation7 + $0x22c] sm:$0xf]
        %v2452 = vld [vmem:[#allocation7 + $0x230] sm:$0xf]
        %v2453 = vld [vmem:[#allocation7 + $0x234] sm:$0xf]
        %v2454 = vld [vmem:[#allocation7 + $0x238] sm:$0xf]
        %v2455 = vld [vmem:[#allocation7 + $0x23c] sm:$0xf]
        %v2616 = vunpack.c.l.b16 %v2152
        %v2617 = vunpack.c.h.b16 %v2152
        %v2618 = vunpack.c.l.b16 %v2153
        %v2619 = vunpack.c.h.b16 %v2153
        %v2620 = vunpack.c.l.b16 %v2154
        %v2621 = vunpack.c.h.b16 %v2154
        %v2622 = vunpack.c.l.b16 %v2155
        %v2623 = vunpack.c.h.b16 %v2155
        %v2624 = vunpack.c.l.b16 %v2156
        %v2625 = vunpack.c.l.b16 %v2157
        %v2626 = vunpack.c.h.b16 %v2157
        %v2627 = vunpack.c.l.b16 %v2158
        %v2628 = vunpack.c.h.b16 %v2158
        %v2629 = vunpack.c.l.b16 %v2159
        %v2630 = vunpack.c.h.b16 %v2159
        %v2631 = vunpack.c.l.b16 %v2160
        %v2632 = vunpack.c.h.b16 %v2160
        %v2633 = vunpack.c.l.b16 %v2161
        %v2634 = vunpack.c.l.b16 %v2162
        %v2635 = vunpack.c.h.b16 %v2162
        %v2636 = vunpack.c.l.b16 %v2163
        %v2637 = vunpack.c.h.b16 %v2163
        %v2638 = vunpack.c.l.b16 %v2164
        %v2639 = vunpack.c.h.b16 %v2164
        %v2640 = vunpack.c.l.b16 %v2165
        %v2641 = vunpack.c.h.b16 %v2165
        %v2642 = vunpack.c.l.b16 %v2166
        %v2643 = vunpack.c.l.b16 %v2167
        %v2644 = vunpack.c.h.b16 %v2167
        %v2645 = vunpack.c.l.b16 %v2168
        %v2646 = vunpack.c.h.b16 %v2168
        %v2647 = vunpack.c.l.b16 %v2169
        %v2648 = vunpack.c.h.b16 %v2169
        %v2649 = vunpack.c.l.b16 %v2170
        %v2650 = vunpack.c.h.b16 %v2170
        %v2651 = vunpack.c.l.b16 %v2171
        %v2652 = vunpack.c.l.b16 %v2172
        %v2653 = vunpack.c.h.b16 %v2172
        %v2654 = vunpack.c.l.b16 %v2173
        %v2655 = vunpack.c.h.b16 %v2173
        %v2656 = vunpack.c.l.b16 %v2174
        %v2657 = vunpack.c.h.b16 %v2174
        %v2658 = vunpack.c.l.b16 %v2175
        %v2659 = vunpack.c.h.b16 %v2175
        %v2660 = vunpack.c.l.b16 %v2176
        %v2661 = vunpack.c.l.b16 %v2177
        %v2662 = vunpack.c.h.b16 %v2177
        %v2663 = vunpack.c.l.b16 %v2178
        %v2664 = vunpack.c.h.b16 %v2178
        %v2665 = vunpack.c.l.b16 %v2179
        %v2666 = vunpack.c.h.b16 %v2179
        %v2667 = vunpack.c.l.b16 %v2180
        %v2668 = vunpack.c.h.b16 %v2180
        %v2669 = vunpack.c.l.b16 %v2181
        %v2670 = vunpack.c.l.b16 %v2182
        %v2671 = vunpack.c.h.b16 %v2182
        %v2672 = vunpack.c.l.b16 %v2183
        %v2673 = vunpack.c.h.b16 %v2183
        %v2674 = vunpack.c.l.b16 %v2184
        %v2675 = vunpack.c.h.b16 %v2184
        %v2676 = vunpack.c.l.b16 %v2185
        %v2677 = vunpack.c.h.b16 %v2185
        %v2678 = vunpack.c.l.b16 %v2186
        %v2679 = vunpack.c.l.b16 %v2187
        %v2680 = vunpack.c.h.b16 %v2187
        %v2681 = vunpack.c.l.b16 %v2188
        %v2682 = vunpack.c.h.b16 %v2188
        %v2683 = vunpack.c.l.b16 %v2189
        %v2684 = vunpack.c.h.b16 %v2189
        %v2685 = vunpack.c.l.b16 %v2190
        %v2686 = vunpack.c.h.b16 %v2190
        %v2687 = vunpack.c.l.b16 %v2191
        %v2688 = vunpack.c.l.b16 %v2192
        %v2689 = vunpack.c.h.b16 %v2192
        %v2690 = vunpack.c.l.b16 %v2193
        %v2691 = vunpack.c.h.b16 %v2193
        %v2692 = vunpack.c.l.b16 %v2194
        %v2693 = vunpack.c.h.b16 %v2194
        %v2694 = vunpack.c.l.b16 %v2195
        %v2695 = vunpack.c.h.b16 %v2195
        %v2696 = vunpack.c.l.b16 %v2196
        %v2697 = vunpack.c.l.b16 %v2197
        %v2698 = vunpack.c.h.b16 %v2197
        %v2699 = vunpack.c.l.b16 %v2198
        %v2700 = vunpack.c.h.b16 %v2198
        %v2701 = vunpack.c.l.b16 %v2199
        %v2702 = vunpack.c.h.b16 %v2199
        %v2703 = vunpack.c.l.b16 %v2200
        %v2704 = vunpack.c.h.b16 %v2200
        %v2705 = vunpack.c.l.b16 %v2201
        %v2706 = vunpack.c.l.b16 %v2202
        %v2707 = vunpack.c.h.b16 %v2202
        %v2708 = vunpack.c.l.b16 %v2203
        %v2709 = vunpack.c.h.b16 %v2203
        %v2710 = vunpack.c.l.b16 %v2204
        %v2711 = vunpack.c.h.b16 %v2204
        %v2712 = vunpack.c.l.b16 %v2205
        %v2713 = vunpack.c.h.b16 %v2205
        %v2714 = vunpack.c.l.b16 %v2206
        %v2715 = vunpack.c.l.b16 %v2207
        %v2716 = vunpack.c.h.b16 %v2207
        %v2717 = vunpack.c.l.b16 %v2208
        %v2718 = vunpack.c.h.b16 %v2208
        %v2719 = vunpack.c.l.b16 %v2209
        %v2720 = vunpack.c.h.b16 %v2209
        %v2721 = vunpack.c.l.b16 %v2210
        %v2722 = vunpack.c.h.b16 %v2210
        %v2723 = vunpack.c.l.b16 %v2211
        %v2724 = vunpack.c.l.b16 %v2212
        %v2725 = vunpack.c.h.b16 %v2212
        %v2726 = vunpack.c.l.b16 %v2213
        %v2727 = vunpack.c.h.b16 %v2213
        %v2728 = vunpack.c.l.b16 %v2214
        %v2729 = vunpack.c.h.b16 %v2214
        %v2730 = vunpack.c.l.b16 %v2215
        %v2731 = vunpack.c.h.b16 %v2215
        %v2732 = vunpack.c.l.b16 %v2216
        %v2733 = vunpack.c.l.b16 %v2217
        %v2734 = vunpack.c.h.b16 %v2217
        %v2735 = vunpack.c.l.b16 %v2218
        %v2736 = vunpack.c.h.b16 %v2218
        %v2737 = vunpack.c.l.b16 %v2219
        %v2738 = vunpack.c.h.b16 %v2219
        %v2739 = vunpack.c.l.b16 %v2220
        %v2740 = vunpack.c.h.b16 %v2220
        %v2741 = vunpack.c.l.b16 %v2221
        %v2742 = vunpack.c.l.b16 %v2222
        %v2743 = vunpack.c.h.b16 %v2222
        %v2744 = vunpack.c.l.b16 %v2223
        %v2745 = vunpack.c.h.b16 %v2223
        %v2746 = vunpack.c.l.b16 %v2224
        %v2747 = vunpack.c.h.b16 %v2224
        %v2748 = vunpack.c.l.b16 %v2225
        %v2749 = vunpack.c.h.b16 %v2225
        %v2750 = vunpack.c.l.b16 %v2226
        %v2751 = vunpack.c.l.b16 %v2227
        %v2752 = vunpack.c.h.b16 %v2227
        %v2753 = vunpack.c.l.b16 %v2228
        %v2754 = vunpack.c.h.b16 %v2228
        %v2755 = vunpack.c.l.b16 %v2229
        %v2756 = vunpack.c.h.b16 %v2229
        %v2757 = vunpack.c.l.b16 %v2230
        %v2758 = vunpack.c.h.b16 %v2230
        %v2759 = vunpack.c.l.b16 %v2231
        %v2760 = vunpack.c.l.b16 %v2232
        %v2761 = vunpack.c.h.b16 %v2232
        %v2762 = vunpack.c.l.b16 %v2233
        %v2763 = vunpack.c.h.b16 %v2233
        %v2764 = vunpack.c.l.b16 %v2234
        %v2765 = vunpack.c.h.b16 %v2234
        %v2766 = vunpack.c.l.b16 %v2235
        %v2767 = vunpack.c.h.b16 %v2235
        %v2768 = vunpack.c.l.b16 %v2236
        %v2769 = vunpack.c.l.b16 %v2237
        %v2770 = vunpack.c.h.b16 %v2237
        %v2771 = vunpack.c.l.b16 %v2238
        %v2772 = vunpack.c.h.b16 %v2238
        %v2773 = vunpack.c.l.b16 %v2239
        %v2774 = vunpack.c.h.b16 %v2239
        %v2775 = vunpack.c.l.b16 %v2240
        %v2776 = vunpack.c.h.b16 %v2240
        %v2777 = vunpack.c.l.b16 %v2241
        %v2778 = vunpack.c.l.b16 %v2242
        %v2779 = vunpack.c.h.b16 %v2242
        %v2780 = vunpack.c.l.b16 %v2243
        %v2781 = vunpack.c.h.b16 %v2243
        %v2782 = vunpack.c.l.b16 %v2244
        %v2783 = vunpack.c.h.b16 %v2244
        %v2784 = vunpack.c.l.b16 %v2245
        %v2785 = vunpack.c.h.b16 %v2245
        %v2786 = vunpack.c.l.b16 %v2246
        %v2787 = vunpack.c.l.b16 %v2247
        %v2788 = vunpack.c.h.b16 %v2247
        %v2789 = vunpack.c.l.b16 %v2248
        %v2790 = vunpack.c.h.b16 %v2248
        %v2791 = vunpack.c.l.b16 %v2249
        %v2792 = vunpack.c.h.b16 %v2249
        %v2793 = vunpack.c.l.b16 %v2250
        %v2794 = vunpack.c.h.b16 %v2250
        %v2795 = vunpack.c.l.b16 %v2251
        %v2796 = vunpack.c.l.b16 %v2252
        %v2797 = vunpack.c.h.b16 %v2252
        %v2798 = vunpack.c.l.b16 %v2253
        %v2799 = vunpack.c.h.b16 %v2253
        %v2800 = vunpack.c.l.b16 %v2254
        %v2801 = vunpack.c.h.b16 %v2254
        %v2802 = vunpack.c.l.b16 %v2255
        %v2803 = vunpack.c.h.b16 %v2255
        %v2804 = vunpack.c.l.b16 %v2256
        %v2805 = vunpack.c.l.b16 %v2257
        %v2806 = vunpack.c.h.b16 %v2257
        %v2807 = vunpack.c.l.b16 %v2258
        %v2808 = vunpack.c.h.b16 %v2258
        %v2809 = vunpack.c.l.b16 %v2259
        %v2810 = vunpack.c.h.b16 %v2259
        %v2811 = vunpack.c.l.b16 %v2260
        %v2812 = vunpack.c.h.b16 %v2260
        %v2813 = vunpack.c.l.b16 %v2261
        %v2814 = vunpack.c.l.b16 %v2262
        %v2815 = vunpack.c.h.b16 %v2262
        %v2816 = vunpack.c.l.b16 %v2263
        %v2817 = vunpack.c.h.b16 %v2263
        %v2818 = vunpack.c.l.b16 %v2264
        %v2819 = vunpack.c.h.b16 %v2264
        %v2820 = vunpack.c.l.b16 %v2265
        %v2821 = vunpack.c.h.b16 %v2265
        %v2822 = vunpack.c.l.b16 %v2266
        %v2823 = vunpack.c.l.b16 %v2267
        %v2824 = vunpack.c.h.b16 %v2267
        %v2825 = vunpack.c.l.b16 %v2268
        %v2826 = vunpack.c.h.b16 %v2268
        %v2827 = vunpack.c.l.b16 %v2269
        %v2828 = vunpack.c.h.b16 %v2269
        %v2829 = vunpack.c.l.b16 %v2270
        %v2830 = vunpack.c.h.b16 %v2270
        %v2831 = vunpack.c.l.b16 %v2271
        %v2832 = vunpack.c.l.b16 %v2272
        %v2833 = vunpack.c.h.b16 %v2272
        %v2834 = vunpack.c.l.b16 %v2273
        %v2835 = vunpack.c.h.b16 %v2273
        %v2836 = vunpack.c.l.b16 %v2274
        %v2837 = vunpack.c.h.b16 %v2274
        %v2838 = vunpack.c.l.b16 %v2275
        %v2839 = vunpack.c.h.b16 %v2275
        %v2840 = vunpack.c.l.b16 %v2276
        %v2841 = vunpack.c.l.b16 %v2277
        %v2842 = vunpack.c.h.b16 %v2277
        %v2843 = vunpack.c.l.b16 %v2278
        %v2844 = vunpack.c.h.b16 %v2278
        %v2845 = vunpack.c.l.b16 %v2279
        %v2846 = vunpack.c.h.b16 %v2279
        %v2847 = vunpack.c.l.b16 %v2280
        %v2848 = vunpack.c.h.b16 %v2280
        %v2849 = vunpack.c.l.b16 %v2281
        %v2850 = vunpack.c.l.b16 %v2282
        %v2851 = vunpack.c.h.b16 %v2282
        %v2852 = vunpack.c.l.b16 %v2283
        %v2853 = vunpack.c.h.b16 %v2283
        %v2854 = vunpack.c.l.b16 %v2284
        %v2855 = vunpack.c.h.b16 %v2284
        %v2856 = vunpack.c.l.b16 %v2285
        %v2857 = vunpack.c.h.b16 %v2285
        %v2858 = vunpack.c.l.b16 %v2286
        %v2859 = vunpack.c.l.b16 %v2287
        %v2860 = vunpack.c.h.b16 %v2287
        %v2861 = vunpack.c.l.b16 %v2288
        %v2862 = vunpack.c.h.b16 %v2288
        %v2863 = vunpack.c.l.b16 %v2289
        %v2864 = vunpack.c.h.b16 %v2289
        %v2865 = vunpack.c.l.b16 %v2290
        %v2866 = vunpack.c.h.b16 %v2290
        %v2867 = vunpack.c.l.b16 %v2291
        %v2868 = vunpack.c.l.b16 %v2292
        %v2869 = vunpack.c.h.b16 %v2292
        %v2870 = vunpack.c.l.b16 %v2293
        %v2871 = vunpack.c.h.b16 %v2293
        %v2872 = vunpack.c.l.b16 %v2294
        %v2873 = vunpack.c.h.b16 %v2294
        %v2874 = vunpack.c.l.b16 %v2295
        %v2875 = vunpack.c.h.b16 %v2295
        %v2876 = vunpack.c.l.b16 %v2296
        %v2877 = vunpack.c.l.b16 %v2297
        %v2878 = vunpack.c.h.b16 %v2297
        %v2879 = vunpack.c.l.b16 %v2298
        %v2880 = vunpack.c.h.b16 %v2298
        %v2881 = vunpack.c.l.b16 %v2299
        %v2882 = vunpack.c.h.b16 %v2299
        %v2883 = vunpack.c.l.b16 %v2300
        %v2884 = vunpack.c.h.b16 %v2300
        %v2885 = vunpack.c.l.b16 %v2301
        %v2886 = vunpack.c.l.b16 %v2302
        %v2887 = vunpack.c.h.b16 %v2302
        %v2888 = vunpack.c.l.b16 %v2303
        %v2889 = vunpack.c.h.b16 %v2303
        %v2890 = vunpack.c.l.b16 %v2304
        %v2891 = vunpack.c.h.b16 %v2304
        %v2892 = vunpack.c.l.b16 %v2305
        %v2893 = vunpack.c.h.b16 %v2305
        %v2894 = vunpack.c.l.b16 %v2306
        %v2895 = vunpack.c.l.b16 %v2307
        %v2896 = vunpack.c.h.b16 %v2307
        %v2897 = vunpack.c.l.b16 %v2308
        %v2898 = vunpack.c.h.b16 %v2308
        %v2899 = vunpack.c.l.b16 %v2309
        %v2900 = vunpack.c.h.b16 %v2309
        %v2901 = vunpack.c.l.b16 %v2310
        %v2902 = vunpack.c.h.b16 %v2310
        %v2903 = vunpack.c.l.b16 %v2311
        %v2904 = vpack.c.b16 %v2625, %v2616
        %v2905 = vpack.c.b16 %v2626, %v2617
        %v2906 = vpack.c.b16 %v2627, %v2618
        %v2907 = vpack.c.b16 %v2628, %v2619
        %v2908 = vpack.c.b16 %v2629, %v2620
        %v2909 = vpack.c.b16 %v2630, %v2621
        %v2910 = vpack.c.b16 %v2631, %v2622
        %v2911 = vpack.c.b16 %v2632, %v2623
        %v2912 = vpack.c.b16 %v2633, %v2624
        %v2913 = vpack.c.b16 %v2643, %v2634
        %v2914 = vpack.c.b16 %v2644, %v2635
        %v2915 = vpack.c.b16 %v2645, %v2636
        %v2916 = vpack.c.b16 %v2646, %v2637
        %v2917 = vpack.c.b16 %v2647, %v2638
        %v2918 = vpack.c.b16 %v2648, %v2639
        %v2919 = vpack.c.b16 %v2649, %v2640
        %v2920 = vpack.c.b16 %v2650, %v2641
        %v2921 = vpack.c.b16 %v2651, %v2642
        %v2922 = vpack.c.b16 %v2661, %v2652
        %v2923 = vpack.c.b16 %v2662, %v2653
        %v2924 = vpack.c.b16 %v2663, %v2654
        %v2925 = vpack.c.b16 %v2664, %v2655
        %v2926 = vpack.c.b16 %v2665, %v2656
        %v2927 = vpack.c.b16 %v2666, %v2657
        %v2928 = vpack.c.b16 %v2667, %v2658
        %v2929 = vpack.c.b16 %v2668, %v2659
        %v2930 = vpack.c.b16 %v2669, %v2660
        %v2931 = vpack.c.b16 %v2679, %v2670
        %v2932 = vpack.c.b16 %v2680, %v2671
        %v2933 = vpack.c.b16 %v2681, %v2672
        %v2934 = vpack.c.b16 %v2682, %v2673
        %v2935 = vpack.c.b16 %v2683, %v2674
        %v2936 = vpack.c.b16 %v2684, %v2675
        %v2937 = vpack.c.b16 %v2685, %v2676
        %v2938 = vpack.c.b16 %v2686, %v2677
        %v2939 = vpack.c.b16 %v2687, %v2678
        %v2940 = vpack.c.b16 %v2697, %v2688
        %v2941 = vpack.c.b16 %v2698, %v2689
        %v2942 = vpack.c.b16 %v2699, %v2690
        %v2943 = vpack.c.b16 %v2700, %v2691
        %v2944 = vpack.c.b16 %v2701, %v2692
        %v2945 = vpack.c.b16 %v2702, %v2693
        %v2946 = vpack.c.b16 %v2703, %v2694
        %v2947 = vpack.c.b16 %v2704, %v2695
        %v2948 = vpack.c.b16 %v2705, %v2696
        %v2949 = vpack.c.b16 %v2715, %v2706
        %v2950 = vpack.c.b16 %v2716, %v2707
        %v2951 = vpack.c.b16 %v2717, %v2708
        %v2952 = vpack.c.b16 %v2718, %v2709
        %v2953 = vpack.c.b16 %v2719, %v2710
        %v2954 = vpack.c.b16 %v2720, %v2711
        %v2955 = vpack.c.b16 %v2721, %v2712
        %v2956 = vpack.c.b16 %v2722, %v2713
        %v2957 = vpack.c.b16 %v2723, %v2714
        %v2958 = vpack.c.b16 %v2733, %v2724
        %v2959 = vpack.c.b16 %v2734, %v2725
        %v2960 = vpack.c.b16 %v2735, %v2726
        %v2961 = vpack.c.b16 %v2736, %v2727
        %v2962 = vpack.c.b16 %v2737, %v2728
        %v2963 = vpack.c.b16 %v2738, %v2729
        %v2964 = vpack.c.b16 %v2739, %v2730
        %v2965 = vpack.c.b16 %v2740, %v2731
        %v2966 = vpack.c.b16 %v2741, %v2732
        %v2967 = vpack.c.b16 %v2751, %v2742
        %v2968 = vpack.c.b16 %v2752, %v2743
        %v2969 = vpack.c.b16 %v2753, %v2744
        %v2970 = vpack.c.b16 %v2754, %v2745
        %v2971 = vpack.c.b16 %v2755, %v2746
        %v2972 = vpack.c.b16 %v2756, %v2747
        %v2973 = vpack.c.b16 %v2757, %v2748
        %v2974 = vpack.c.b16 %v2758, %v2749
        %v2975 = vpack.c.b16 %v2759, %v2750
        %v2976 = vpack.c.b16 %v2769, %v2760
        %v2977 = vpack.c.b16 %v2770, %v2761
        %v2978 = vpack.c.b16 %v2771, %v2762
        %v2979 = vpack.c.b16 %v2772, %v2763
        %v2980 = vpack.c.b16 %v2773, %v2764
        %v2981 = vpack.c.b16 %v2774, %v2765
        %v2982 = vpack.c.b16 %v2775, %v2766
        %v2983 = vpack.c.b16 %v2776, %v2767
        %v2984 = vpack.c.b16 %v2777, %v2768
        %v2985 = vpack.c.b16 %v2787, %v2778
        %v2986 = vpack.c.b16 %v2788, %v2779
        %v2987 = vpack.c.b16 %v2789, %v2780
        %v2988 = vpack.c.b16 %v2790, %v2781
        %v2989 = vpack.c.b16 %v2791, %v2782
        %v2990 = vpack.c.b16 %v2792, %v2783
        %v2991 = vpack.c.b16 %v2793, %v2784
        %v2992 = vpack.c.b16 %v2794, %v2785
        %v2993 = vpack.c.b16 %v2795, %v2786
        %v2994 = vpack.c.b16 %v2805, %v2796
        %v2995 = vpack.c.b16 %v2806, %v2797
        %v2996 = vpack.c.b16 %v2807, %v2798
        %v2997 = vpack.c.b16 %v2808, %v2799
        %v2998 = vpack.c.b16 %v2809, %v2800
        %v2999 = vpack.c.b16 %v2810, %v2801
        %v3000 = vpack.c.b16 %v2811, %v2802
        %v3001 = vpack.c.b16 %v2812, %v2803
        %v3002 = vpack.c.b16 %v2813, %v2804
        %v3003 = vpack.c.b16 %v2823, %v2814
        %v3004 = vpack.c.b16 %v2824, %v2815
        %v3005 = vpack.c.b16 %v2825, %v2816
        %v3006 = vpack.c.b16 %v2826, %v2817
        %v3007 = vpack.c.b16 %v2827, %v2818
        %v3008 = vpack.c.b16 %v2828, %v2819
        %v3009 = vpack.c.b16 %v2829, %v2820
        %v3010 = vpack.c.b16 %v2830, %v2821
        %v3011 = vpack.c.b16 %v2831, %v2822
        %v3012 = vpack.c.b16 %v2841, %v2832
        %v3013 = vpack.c.b16 %v2842, %v2833
        %v3014 = vpack.c.b16 %v2843, %v2834
        %v3015 = vpack.c.b16 %v2844, %v2835
        %v3016 = vpack.c.b16 %v2845, %v2836
        %v3017 = vpack.c.b16 %v2846, %v2837
        %v3018 = vpack.c.b16 %v2847, %v2838
        %v3019 = vpack.c.b16 %v2848, %v2839
        %v3020 = vpack.c.b16 %v2849, %v2840
        %v3021 = vpack.c.b16 %v2859, %v2850
        %v3022 = vpack.c.b16 %v2860, %v2851
        %v3023 = vpack.c.b16 %v2861, %v2852
        %v3024 = vpack.c.b16 %v2862, %v2853
        %v3025 = vpack.c.b16 %v2863, %v2854
        %v3026 = vpack.c.b16 %v2864, %v2855
        %v3027 = vpack.c.b16 %v2865, %v2856
        %v3028 = vpack.c.b16 %v2866, %v2857
        %v3029 = vpack.c.b16 %v2867, %v2858
        %v3030 = vpack.c.b16 %v2877, %v2868
        %v3031 = vpack.c.b16 %v2878, %v2869
        %v3032 = vpack.c.b16 %v2879, %v2870
        %v3033 = vpack.c.b16 %v2880, %v2871
        %v3034 = vpack.c.b16 %v2881, %v2872
        %v3035 = vpack.c.b16 %v2882, %v2873
        %v3036 = vpack.c.b16 %v2883, %v2874
        %v3037 = vpack.c.b16 %v2884, %v2875
        %v3038 = vpack.c.b16 %v2885, %v2876
        %v3039 = vpack.c.b16 %v2895, %v2886
        %v3040 = vpack.c.b16 %v2896, %v2887
        %v3041 = vpack.c.b16 %v2897, %v2888
        %v3042 = vpack.c.b16 %v2898, %v2889
        %v3043 = vpack.c.b16 %v2899, %v2890
        %v3044 = vpack.c.b16 %v2900, %v2891
        %v3045 = vpack.c.b16 %v2901, %v2892
        %v3046 = vpack.c.b16 %v2902, %v2893
        %v3047 = vpack.c.b16 %v2903, %v2894
        %v3336 = vunpack.c.l.b16 %v2312
        %v3337 = vunpack.c.l.b16 %v2313
        %v3338 = vunpack.c.l.b16 %v2314
        %v3339 = vunpack.c.l.b16 %v2315
        %v3340 = vunpack.c.l.b16 %v2316
        %v3341 = vunpack.c.l.b16 %v2317
        %v3342 = vunpack.c.l.b16 %v2318
        %v3343 = vunpack.c.l.b16 %v2319
        %v3344 = vunpack.c.l.b16 %v2320
        %v3345 = vunpack.c.l.b16 %v2321
        %v3346 = vunpack.c.l.b16 %v2322
        %v3347 = vunpack.c.l.b16 %v2323
        %v3348 = vunpack.c.l.b16 %v2324
        %v3349 = vunpack.c.l.b16 %v2325
        %v3350 = vunpack.c.l.b16 %v2326
        %v3351 = vunpack.c.l.b16 %v2327
        %v3352 = vunpack.c.l.b16 %v2328
        %v3353 = vunpack.c.l.b16 %v2329
        %v3354 = vunpack.c.l.b16 %v2330
        %v3355 = vunpack.c.l.b16 %v2331
        %v3356 = vunpack.c.l.b16 %v2332
        %v3357 = vunpack.c.l.b16 %v2333
        %v3358 = vunpack.c.l.b16 %v2334
        %v3359 = vunpack.c.l.b16 %v2335
        %v3360 = vunpack.c.l.b16 %v2336
        %v3361 = vunpack.c.l.b16 %v2337
        %v3362 = vunpack.c.l.b16 %v2338
        %v3363 = vunpack.c.l.b16 %v2339
        %v3364 = vunpack.c.l.b16 %v2340
        %v3365 = vunpack.c.l.b16 %v2341
        %v3366 = vunpack.c.l.b16 %v2342
        %v3367 = vunpack.c.l.b16 %v2343
        %v3368 = vunpack.c.l.b16 %v2344
        %v3369 = vunpack.c.l.b16 %v2345
        %v3370 = vunpack.c.l.b16 %v2346
        %v3371 = vunpack.c.l.b16 %v2347
        %v3372 = vunpack.c.l.b16 %v2348
        %v3373 = vunpack.c.l.b16 %v2349
        %v3374 = vunpack.c.l.b16 %v2350
        %v3375 = vunpack.c.l.b16 %v2351
        %v3376 = vunpack.c.l.b16 %v2352
        %v3377 = vunpack.c.l.b16 %v2353
        %v3378 = vunpack.c.l.b16 %v2354
        %v3379 = vunpack.c.l.b16 %v2355
        %v3380 = vunpack.c.l.b16 %v2356
        %v3381 = vunpack.c.l.b16 %v2357
        %v3382 = vunpack.c.l.b16 %v2358
        %v3383 = vunpack.c.l.b16 %v2359
        %v3384 = vunpack.c.l.b16 %v2360
        %v3385 = vunpack.c.l.b16 %v2361
        %v3386 = vunpack.c.l.b16 %v2362
        %v3387 = vunpack.c.l.b16 %v2363
        %v3388 = vunpack.c.l.b16 %v2364
        %v3389 = vunpack.c.l.b16 %v2365
        %v3390 = vunpack.c.l.b16 %v2366
        %v3391 = vunpack.c.l.b16 %v2367
        %v3392 = vunpack.c.l.b16 %v2368
        %v3393 = vunpack.c.l.b16 %v2369
        %v3394 = vunpack.c.l.b16 %v2370
        %v3395 = vunpack.c.l.b16 %v2371
        %v3396 = vunpack.c.l.b16 %v2372
        %v3397 = vunpack.c.l.b16 %v2373
        %v3398 = vunpack.c.l.b16 %v2374
        %v3399 = vunpack.c.l.b16 %v2375
        %v3400 = vunpack.c.l.b16 %v2376
        %v3401 = vunpack.c.l.b16 %v2377
        %v3402 = vunpack.c.l.b16 %v2378
        %v3403 = vunpack.c.l.b16 %v2379
        %v3404 = vunpack.c.l.b16 %v2380
        %v3405 = vunpack.c.l.b16 %v2381
        %v3406 = vunpack.c.l.b16 %v2382
        %v3407 = vunpack.c.l.b16 %v2383
        %v3408 = vunpack.c.l.b16 %v2384
        %v3409 = vunpack.c.l.b16 %v2385
        %v3410 = vunpack.c.l.b16 %v2386
        %v3411 = vunpack.c.l.b16 %v2387
        %v3412 = vunpack.c.l.b16 %v2388
        %v3413 = vunpack.c.l.b16 %v2389
        %v3414 = vunpack.c.l.b16 %v2390
        %v3415 = vunpack.c.l.b16 %v2391
        %v3416 = vunpack.c.l.b16 %v2392
        %v3417 = vunpack.c.l.b16 %v2393
        %v3418 = vunpack.c.l.b16 %v2394
        %v3419 = vunpack.c.l.b16 %v2395
        %v3420 = vunpack.c.l.b16 %v2396
        %v3421 = vunpack.c.l.b16 %v2397
        %v3422 = vunpack.c.l.b16 %v2398
        %v3423 = vunpack.c.l.b16 %v2399
        %v3424 = vunpack.c.l.b16 %v2400
        %v3425 = vunpack.c.l.b16 %v2401
        %v3426 = vunpack.c.l.b16 %v2402
        %v3427 = vunpack.c.l.b16 %v2403
        %v3428 = vunpack.c.l.b16 %v2404
        %v3429 = vunpack.c.l.b16 %v2405
        %v3430 = vunpack.c.l.b16 %v2406
        %v3431 = vunpack.c.l.b16 %v2407
        %v3432 = vunpack.c.l.b16 %v2408
        %v3433 = vunpack.c.l.b16 %v2409
        %v3434 = vunpack.c.l.b16 %v2410
        %v3435 = vunpack.c.l.b16 %v2411
        %v3436 = vunpack.c.l.b16 %v2412
        %v3437 = vunpack.c.l.b16 %v2413
        %v3438 = vunpack.c.l.b16 %v2414
        %v3439 = vunpack.c.l.b16 %v2415
        %v3440 = vunpack.c.l.b16 %v2416
        %v3441 = vunpack.c.l.b16 %v2417
        %v3442 = vunpack.c.l.b16 %v2418
        %v3443 = vunpack.c.l.b16 %v2419
        %v3444 = vunpack.c.l.b16 %v2420
        %v3445 = vunpack.c.l.b16 %v2421
        %v3446 = vunpack.c.l.b16 %v2422
        %v3447 = vunpack.c.l.b16 %v2423
        %v3448 = vunpack.c.l.b16 %v2424
        %v3449 = vunpack.c.l.b16 %v2425
        %v3450 = vunpack.c.l.b16 %v2426
        %v3451 = vunpack.c.l.b16 %v2427
        %v3452 = vunpack.c.l.b16 %v2428
        %v3453 = vunpack.c.l.b16 %v2429
        %v3454 = vunpack.c.l.b16 %v2430
        %v3455 = vunpack.c.l.b16 %v2431
        %v3456 = vunpack.c.l.b16 %v2432
        %v3457 = vunpack.c.l.b16 %v2433
        %v3458 = vunpack.c.l.b16 %v2434
        %v3459 = vunpack.c.l.b16 %v2435
        %v3460 = vunpack.c.l.b16 %v2436
        %v3461 = vunpack.c.l.b16 %v2437
        %v3462 = vunpack.c.l.b16 %v2438
        %v3463 = vunpack.c.l.b16 %v2439
        %v3464 = vunpack.c.l.b16 %v2440
        %v3465 = vunpack.c.l.b16 %v2441
        %v3466 = vunpack.c.l.b16 %v2442
        %v3467 = vunpack.c.l.b16 %v2443
        %v3468 = vunpack.c.l.b16 %v2444
        %v3469 = vunpack.c.l.b16 %v2445
        %v3470 = vunpack.c.l.b16 %v2446
        %v3471 = vunpack.c.l.b16 %v2447
        %v3472 = vunpack.c.l.b16 %v2448
        %v3473 = vunpack.c.l.b16 %v2449
        %v3474 = vunpack.c.l.b16 %v2450
        %v3475 = vunpack.c.l.b16 %v2451
        %v3476 = vunpack.c.l.b16 %v2452
        %v3477 = vunpack.c.l.b16 %v2453
        %v3478 = vunpack.c.l.b16 %v2454
        %v3479 = vunpack.c.l.b16 %v2455
        %v3480 = vpack.c.b16 %v3337, %v3336
        %v3481 = vpack.c.b16 %v3339, %v3338
        %v3482 = vpack.c.b16 %v3341, %v3340
        %v3483 = vpack.c.b16 %v3343, %v3342
        %v3484 = vpack.c.b16 %v3345, %v3344
        %v3485 = vpack.c.b16 %v3347, %v3346
        %v3486 = vpack.c.b16 %v3349, %v3348
        %v3487 = vpack.c.b16 %v3351, %v3350
        %v3488 = vpack.c.b16 %v3353, %v3352
        %v3489 = vpack.c.b16 %v3355, %v3354
        %v3490 = vpack.c.b16 %v3357, %v3356
        %v3491 = vpack.c.b16 %v3359, %v3358
        %v3492 = vpack.c.b16 %v3361, %v3360
        %v3493 = vpack.c.b16 %v3363, %v3362
        %v3494 = vpack.c.b16 %v3365, %v3364
        %v3495 = vpack.c.b16 %v3367, %v3366
        %v3496 = vpack.c.b16 %v3369, %v3368
        %v3497 = vpack.c.b16 %v3371, %v3370
        %v3498 = vpack.c.b16 %v3373, %v3372
        %v3499 = vpack.c.b16 %v3375, %v3374
        %v3500 = vpack.c.b16 %v3377, %v3376
        %v3501 = vpack.c.b16 %v3379, %v3378
        %v3502 = vpack.c.b16 %v3381, %v3380
        %v3503 = vpack.c.b16 %v3383, %v3382
        %v3504 = vpack.c.b16 %v3385, %v3384
        %v3505 = vpack.c.b16 %v3387, %v3386
        %v3506 = vpack.c.b16 %v3389, %v3388
        %v3507 = vpack.c.b16 %v3391, %v3390
        %v3508 = vpack.c.b16 %v3393, %v3392
        %v3509 = vpack.c.b16 %v3395, %v3394
        %v3510 = vpack.c.b16 %v3397, %v3396
        %v3511 = vpack.c.b16 %v3399, %v3398
        %v3512 = vpack.c.b16 %v3401, %v3400
        %v3513 = vpack.c.b16 %v3403, %v3402
        %v3514 = vpack.c.b16 %v3405, %v3404
        %v3515 = vpack.c.b16 %v3407, %v3406
        %v3516 = vpack.c.b16 %v3409, %v3408
        %v3517 = vpack.c.b16 %v3411, %v3410
        %v3518 = vpack.c.b16 %v3413, %v3412
        %v3519 = vpack.c.b16 %v3415, %v3414
        %v3520 = vpack.c.b16 %v3417, %v3416
        %v3521 = vpack.c.b16 %v3419, %v3418
        %v3522 = vpack.c.b16 %v3421, %v3420
        %v3523 = vpack.c.b16 %v3423, %v3422
        %v3524 = vpack.c.b16 %v3425, %v3424
        %v3525 = vpack.c.b16 %v3427, %v3426
        %v3526 = vpack.c.b16 %v3429, %v3428
        %v3527 = vpack.c.b16 %v3431, %v3430
        %v3528 = vpack.c.b16 %v3433, %v3432
        %v3529 = vpack.c.b16 %v3435, %v3434
        %v3530 = vpack.c.b16 %v3437, %v3436
        %v3531 = vpack.c.b16 %v3439, %v3438
        %v3532 = vpack.c.b16 %v3441, %v3440
        %v3533 = vpack.c.b16 %v3443, %v3442
        %v3534 = vpack.c.b16 %v3445, %v3444
        %v3535 = vpack.c.b16 %v3447, %v3446
        %v3536 = vpack.c.b16 %v3449, %v3448
        %v3537 = vpack.c.b16 %v3451, %v3450
        %v3538 = vpack.c.b16 %v3453, %v3452
        %v3539 = vpack.c.b16 %v3455, %v3454
        %v3540 = vpack.c.b16 %v3457, %v3456
        %v3541 = vpack.c.b16 %v3459, %v3458
        %v3542 = vpack.c.b16 %v3461, %v3460
        %v3543 = vpack.c.b16 %v3463, %v3462
        %v3544 = vpack.c.b16 %v3465, %v3464
        %v3545 = vpack.c.b16 %v3467, %v3466
        %v3546 = vpack.c.b16 %v3469, %v3468
        %v3547 = vpack.c.b16 %v3471, %v3470
        %v3548 = vpack.c.b16 %v3473, %v3472
        %v3549 = vpack.c.b16 %v3475, %v3474
        %v3550 = vpack.c.b16 %v3477, %v3476
        %v3551 = vpack.c.b16 %v3479, %v3478
        %3624 = vmatprep.subr.bf16.mxu0 0
        %3625 = vmatpush1.bf16.msra.mxu0 %v3487
        %3626 = vmatprep.subr.bf16.mxu0 0
        %3627 = vmatpush1.bf16.msra.mxu0 %v3486
        %3628 = vmatprep.subr.bf16.mxu0 0
        %3629 = vmatpush1.bf16.msra.mxu0 %v3485
        %3630 = vmatprep.subr.bf16.mxu0 0
        %3631 = vmatpush1.bf16.msra.mxu0 %v3484
        %3632 = vmatprep.subr.bf16.mxu0 0
        %3633 = vmatpush1.bf16.msra.mxu0 %v3483
        %3634 = vmatprep.subr.bf16.mxu0 0
        %3635 = vmatpush1.bf16.msra.mxu0 %v3482
        %3636 = vmatprep.subr.bf16.mxu0 0
        %3637 = vmatpush1.bf16.msra.mxu0 %v3481
        %3638 = vmatprep.subr.bf16.mxu0 0
        %3639 = vmatpush1.bf16.msra.mxu0 %v3480
        %3640 = vmatprep.subr.bf16.mxu0 0
        %3641 = vmatpush2.bf16.msra.mxu0 %v3495
        %3642 = vmatprep.subr.bf16.mxu0 0
        %3643 = vmatpush2.bf16.msra.mxu0 %v3494
        %3644 = vmatprep.subr.bf16.mxu0 0
        %3645 = vmatpush2.bf16.msra.mxu0 %v3493
        %3646 = vmatprep.subr.bf16.mxu0 0
        %3647 = vmatpush2.bf16.msra.mxu0 %v3492
        %3648 = vmatprep.subr.bf16.mxu0 0
        %3649 = vmatpush2.bf16.msra.mxu0 %v3491
        %3650 = vmatprep.subr.bf16.mxu0 0
        %3651 = vmatpush2.bf16.msra.mxu0 %v3490
        %3652 = vmatprep.subr.bf16.mxu0 0
        %3653 = vmatpush2.bf16.msra.mxu0 %v3489
        %3654 = vmatprep.subr.bf16.mxu0 0
        %3655 = vmatpush2.bf16.msra.mxu0 %v3488
        %3656 = vmatprep.mubr.bf16.mxu0 %v2905
        %3657 = vmatmul.mubr.bf16.gmra.mxu0 %v2904
        %v3658 = vpop.f32.mrf.mxu0
        %v3659 = vadd.f32 0.0, %v3658
        %v3660 = vpop.f32.mrf.mxu0
        %v3661 = vpop.f32.mrf.mxu0
        %v3662 = vadd.f32 0.0, %v3661
        %v3663 = vpop.f32.mrf.mxu0
        %3664 = vmatprep.mubr.bf16.mxu0 %v2914
        %3665 = vmatmul.mubr.bf16.gmra.mxu0 %v2913
        %v3666 = vpop.f32.mrf.mxu0
        %v3667 = vadd.f32 0.0, %v3666
        %v3668 = vpop.f32.mrf.mxu0
        %v3669 = vpop.f32.mrf.mxu0
        %v3670 = vadd.f32 0.0, %v3669
        %v3671 = vpop.f32.mrf.mxu0
        %3672 = vmatprep.mubr.bf16.mxu0 %v2923
        %3673 = vmatmul.mubr.bf16.gmra.mxu0 %v2922
        %v3674 = vpop.f32.mrf.mxu0
        %v3675 = vadd.f32 0.0, %v3674
        %v3676 = vpop.f32.mrf.mxu0
        %v3677 = vpop.f32.mrf.mxu0
        %v3678 = vadd.f32 0.0, %v3677
        %v3679 = vpop.f32.mrf.mxu0
        %3680 = vmatprep.mubr.bf16.mxu0 %v2932
        %3681 = vmatmul.mubr.bf16.gmra.mxu0 %v2931
        %v3682 = vpop.f32.mrf.mxu0
        %v3683 = vadd.f32 0.0, %v3682
        %v3684 = vpop.f32.mrf.mxu0
        %v3685 = vpop.f32.mrf.mxu0
        %v3686 = vadd.f32 0.0, %v3685
        %v3687 = vpop.f32.mrf.mxu0
        %3688 = vmatprep.mubr.bf16.mxu0 %v2941
        %3689 = vmatmul.mubr.bf16.gmra.mxu0 %v2940
        %v3690 = vpop.f32.mrf.mxu0
        %v3691 = vadd.f32 0.0, %v3690
        %v3692 = vpop.f32.mrf.mxu0
        %v3693 = vpop.f32.mrf.mxu0
        %v3694 = vadd.f32 0.0, %v3693
        %v3695 = vpop.f32.mrf.mxu0
        %3696 = vmatprep.mubr.bf16.mxu0 %v2950
        %3697 = vmatmul.mubr.bf16.gmra.mxu0 %v2949
        %v3698 = vpop.f32.mrf.mxu0
        %v3699 = vadd.f32 0.0, %v3698
        %v3700 = vpop.f32.mrf.mxu0
        %v3701 = vpop.f32.mrf.mxu0
        %v3702 = vadd.f32 0.0, %v3701
        %v3703 = vpop.f32.mrf.mxu0
        %3704 = vmatprep.mubr.bf16.mxu0 %v2959
        %3705 = vmatmul.mubr.bf16.gmra.mxu0 %v2958
        %v3706 = vpop.f32.mrf.mxu0
        %v3707 = vadd.f32 0.0, %v3706
        %v3708 = vpop.f32.mrf.mxu0
        %v3709 = vpop.f32.mrf.mxu0
        %v3710 = vadd.f32 0.0, %v3709
        %v3711 = vpop.f32.mrf.mxu0
        %3712 = vmatprep.mubr.bf16.mxu0 %v2968
        %3713 = vmatmul.mubr.bf16.gmra.mxu0 %v2967
        %v3714 = vpop.f32.mrf.mxu0
        %v3715 = vadd.f32 0.0, %v3714
        %v3716 = vpop.f32.mrf.mxu0
        %v3717 = vpop.f32.mrf.mxu0
        %v3718 = vadd.f32 0.0, %v3717
        %v3719 = vpop.f32.mrf.mxu0
        %3720 = vmatprep.mubr.bf16.mxu0 %v2977
        %3721 = vmatmul.mubr.bf16.gmra.mxu0 %v2976
        %v3722 = vpop.f32.mrf.mxu0
        %v3723 = vadd.f32 0.0, %v3722
        %v3724 = vpop.f32.mrf.mxu0
        %v3725 = vpop.f32.mrf.mxu0
        %v3726 = vadd.f32 0.0, %v3725
        %v3727 = vpop.f32.mrf.mxu0
        %3728 = vmatprep.mubr.bf16.mxu0 %v2986
        %3729 = vmatmul.mubr.bf16.gmra.mxu0 %v2985
        %v3730 = vpop.f32.mrf.mxu0
        %v3731 = vadd.f32 0.0, %v3730
        %v3732 = vpop.f32.mrf.mxu0
        %v3733 = vpop.f32.mrf.mxu0
        %v3734 = vadd.f32 0.0, %v3733
        %v3735 = vpop.f32.mrf.mxu0
        %3736 = vmatprep.mubr.bf16.mxu0 %v2995
        %3737 = vmatmul.mubr.bf16.gmra.mxu0 %v2994
        %v3738 = vpop.f32.mrf.mxu0
        %v3739 = vadd.f32 0.0, %v3738
        %v3740 = vpop.f32.mrf.mxu0
        %v3741 = vpop.f32.mrf.mxu0
        %v3742 = vadd.f32 0.0, %v3741
        %v3743 = vpop.f32.mrf.mxu0
        %3744 = vmatprep.mubr.bf16.mxu0 %v3004
        %3745 = vmatmul.mubr.bf16.gmra.mxu0 %v3003
        %v3746 = vpop.f32.mrf.mxu0
        %v3747 = vadd.f32 0.0, %v3746
        %v3748 = vpop.f32.mrf.mxu0
        %v3749 = vpop.f32.mrf.mxu0
        %v3750 = vadd.f32 0.0, %v3749
        %v3751 = vpop.f32.mrf.mxu0
        %3752 = vmatprep.mubr.bf16.mxu0 %v3013
        %3753 = vmatmul.mubr.bf16.gmra.mxu0 %v3012
        %v3754 = vpop.f32.mrf.mxu0
        %v3755 = vadd.f32 0.0, %v3754
        %v3756 = vpop.f32.mrf.mxu0
        %v3757 = vpop.f32.mrf.mxu0
        %v3758 = vadd.f32 0.0, %v3757
        %v3759 = vpop.f32.mrf.mxu0
        %3760 = vmatprep.mubr.bf16.mxu0 %v3022
        %3761 = vmatmul.mubr.bf16.gmra.mxu0 %v3021
        %v3762 = vpop.f32.mrf.mxu0
        %v3763 = vadd.f32 0.0, %v3762
        %v3764 = vpop.f32.mrf.mxu0
        %v3765 = vpop.f32.mrf.mxu0
        %v3766 = vadd.f32 0.0, %v3765
        %v3767 = vpop.f32.mrf.mxu0
        %3768 = vmatprep.mubr.bf16.mxu0 %v3031
        %3769 = vmatmul.mubr.bf16.gmra.mxu0 %v3030
        %v3770 = vpop.f32.mrf.mxu0
        %v3771 = vadd.f32 0.0, %v3770
        %v3772 = vpop.f32.mrf.mxu0
        %v3773 = vpop.f32.mrf.mxu0
        %v3774 = vadd.f32 0.0, %v3773
        %v3775 = vpop.f32.mrf.mxu0
        %3776 = vmatprep.mubr.bf16.mxu0 %v3040
        %3777 = vmatmul.mubr.bf16.gmra.mxu0 %v3039
        %v3778 = vpop.f32.mrf.mxu0
        %v3779 = vadd.f32 0.0, %v3778
        %v3780 = vpop.f32.mrf.mxu0
        %v3781 = vpop.f32.mrf.mxu0
        %v3782 = vadd.f32 0.0, %v3781
        %v3783 = vpop.f32.mrf.mxu0
        %3784 = vdwg.mxu0
        %3785 = vmatprep.subr.bf16.mxu0 0
        %3786 = vmatpush1.bf16.msra.mxu0 %v3503
        %3787 = vmatprep.subr.bf16.mxu0 0
        %3788 = vmatpush1.bf16.msra.mxu0 %v3502
        %3789 = vmatprep.subr.bf16.mxu0 0
        %3790 = vmatpush1.bf16.msra.mxu0 %v3501
        %3791 = vmatprep.subr.bf16.mxu0 0
        %3792 = vmatpush1.bf16.msra.mxu0 %v3500
        %3793 = vmatprep.subr.bf16.mxu0 0
        %3794 = vmatpush1.bf16.msra.mxu0 %v3499
        %3795 = vmatprep.subr.bf16.mxu0 0
        %3796 = vmatpush1.bf16.msra.mxu0 %v3498
        %3797 = vmatprep.subr.bf16.mxu0 0
        %3798 = vmatpush1.bf16.msra.mxu0 %v3497
        %3799 = vmatprep.subr.bf16.mxu0 0
        %3800 = vmatpush1.bf16.msra.mxu0 %v3496
        %3801 = vmatprep.subr.bf16.mxu0 0
        %3802 = vmatpush2.bf16.msra.mxu0 %v3511
        %3803 = vmatprep.subr.bf16.mxu0 0
        %3804 = vmatpush2.bf16.msra.mxu0 %v3510
        %3805 = vmatprep.subr.bf16.mxu0 0
        %3806 = vmatpush2.bf16.msra.mxu0 %v3509
        %3807 = vmatprep.subr.bf16.mxu0 0
        %3808 = vmatpush2.bf16.msra.mxu0 %v3508
        %3809 = vmatprep.subr.bf16.mxu0 0
        %3810 = vmatpush2.bf16.msra.mxu0 %v3507
        %3811 = vmatprep.subr.bf16.mxu0 0
        %3812 = vmatpush2.bf16.msra.mxu0 %v3506
        %3813 = vmatprep.subr.bf16.mxu0 0
        %3814 = vmatpush2.bf16.msra.mxu0 %v3505
        %3815 = vmatprep.subr.bf16.mxu0 0
        %3816 = vmatpush2.bf16.msra.mxu0 %v3504
        %3817 = vmatprep.mubr.bf16.mxu0 %v2907
        %3818 = vmatmul.mubr.bf16.gmra.mxu0 %v2906
        %v3819 = vpop.f32.mrf.mxu0
        %v3820 = vadd.f32 %v3659, %v3819
        %v3821 = vpop.f32.mrf.mxu0
        %v3822 = vpop.f32.mrf.mxu0
        %v3823 = vadd.f32 %v3662, %v3822
        %v3824 = vpop.f32.mrf.mxu0
        %3825 = vmatprep.mubr.bf16.mxu0 %v2916
        %3826 = vmatmul.mubr.bf16.gmra.mxu0 %v2915
        %v3827 = vpop.f32.mrf.mxu0
        %v3828 = vadd.f32 %v3667, %v3827
        %v3829 = vpop.f32.mrf.mxu0
        %v3830 = vpop.f32.mrf.mxu0
        %v3831 = vadd.f32 %v3670, %v3830
        %v3832 = vpop.f32.mrf.mxu0
        %3833 = vmatprep.mubr.bf16.mxu0 %v2925
        %3834 = vmatmul.mubr.bf16.gmra.mxu0 %v2924
        %v3835 = vpop.f32.mrf.mxu0
        %v3836 = vadd.f32 %v3675, %v3835
        %v3837 = vpop.f32.mrf.mxu0
        %v3838 = vpop.f32.mrf.mxu0
        %v3839 = vadd.f32 %v3678, %v3838
        %v3840 = vpop.f32.mrf.mxu0
        %3841 = vmatprep.mubr.bf16.mxu0 %v2934
        %3842 = vmatmul.mubr.bf16.gmra.mxu0 %v2933
        %v3843 = vpop.f32.mrf.mxu0
        %v3844 = vadd.f32 %v3683, %v3843
        %v3845 = vpop.f32.mrf.mxu0
        %v3846 = vpop.f32.mrf.mxu0
        %v3847 = vadd.f32 %v3686, %v3846
        %v3848 = vpop.f32.mrf.mxu0
        %3849 = vmatprep.mubr.bf16.mxu0 %v2943
        %3850 = vmatmul.mubr.bf16.gmra.mxu0 %v2942
        %v3851 = vpop.f32.mrf.mxu0
        %v3852 = vadd.f32 %v3691, %v3851
        %v3853 = vpop.f32.mrf.mxu0
        %v3854 = vpop.f32.mrf.mxu0
        %v3855 = vadd.f32 %v3694, %v3854
        %v3856 = vpop.f32.mrf.mxu0
        %3857 = vmatprep.mubr.bf16.mxu0 %v2952
        %3858 = vmatmul.mubr.bf16.gmra.mxu0 %v2951
        %v3859 = vpop.f32.mrf.mxu0
        %v3860 = vadd.f32 %v3699, %v3859
        %v3861 = vpop.f32.mrf.mxu0
        %v3862 = vpop.f32.mrf.mxu0
        %v3863 = vadd.f32 %v3702, %v3862
        %v3864 = vpop.f32.mrf.mxu0
        %3865 = vmatprep.mubr.bf16.mxu0 %v2961
        %3866 = vmatmul.mubr.bf16.gmra.mxu0 %v2960
        %v3867 = vpop.f32.mrf.mxu0
        %v3868 = vadd.f32 %v3707, %v3867
        %v3869 = vpop.f32.mrf.mxu0
        %v3870 = vpop.f32.mrf.mxu0
        %v3871 = vadd.f32 %v3710, %v3870
        %v3872 = vpop.f32.mrf.mxu0
        %3873 = vmatprep.mubr.bf16.mxu0 %v2970
        %3874 = vmatmul.mubr.bf16.gmra.mxu0 %v2969
        %v3875 = vpop.f32.mrf.mxu0
        %v3876 = vadd.f32 %v3715, %v3875
        %v3877 = vpop.f32.mrf.mxu0
        %v3878 = vpop.f32.mrf.mxu0
        %v3879 = vadd.f32 %v3718, %v3878
        %v3880 = vpop.f32.mrf.mxu0
        %3881 = vmatprep.mubr.bf16.mxu0 %v2979
        %3882 = vmatmul.mubr.bf16.gmra.mxu0 %v2978
        %v3883 = vpop.f32.mrf.mxu0
        %v3884 = vadd.f32 %v3723, %v3883
        %v3885 = vpop.f32.mrf.mxu0
        %v3886 = vpop.f32.mrf.mxu0
        %v3887 = vadd.f32 %v3726, %v3886
        %v3888 = vpop.f32.mrf.mxu0
        %3889 = vmatprep.mubr.bf16.mxu0 %v2988
        %3890 = vmatmul.mubr.bf16.gmra.mxu0 %v2987
        %v3891 = vpop.f32.mrf.mxu0
        %v3892 = vadd.f32 %v3731, %v3891
        %v3893 = vpop.f32.mrf.mxu0
        %v3894 = vpop.f32.mrf.mxu0
        %v3895 = vadd.f32 %v3734, %v3894
        %v3896 = vpop.f32.mrf.mxu0
        %3897 = vmatprep.mubr.bf16.mxu0 %v2997
        %3898 = vmatmul.mubr.bf16.gmra.mxu0 %v2996
        %v3899 = vpop.f32.mrf.mxu0
        %v3900 = vadd.f32 %v3739, %v3899
        %v3901 = vpop.f32.mrf.mxu0
        %v3902 = vpop.f32.mrf.mxu0
        %v3903 = vadd.f32 %v3742, %v3902
        %v3904 = vpop.f32.mrf.mxu0
        %3905 = vmatprep.mubr.bf16.mxu0 %v3006
        %3906 = vmatmul.mubr.bf16.gmra.mxu0 %v3005
        %v3907 = vpop.f32.mrf.mxu0
        %v3908 = vadd.f32 %v3747, %v3907
        %v3909 = vpop.f32.mrf.mxu0
        %v3910 = vpop.f32.mrf.mxu0
        %v3911 = vadd.f32 %v3750, %v3910
        %v3912 = vpop.f32.mrf.mxu0
        %3913 = vmatprep.mubr.bf16.mxu0 %v3015
        %3914 = vmatmul.mubr.bf16.gmra.mxu0 %v3014
        %v3915 = vpop.f32.mrf.mxu0
        %v3916 = vadd.f32 %v3755, %v3915
        %v3917 = vpop.f32.mrf.mxu0
        %v3918 = vpop.f32.mrf.mxu0
        %v3919 = vadd.f32 %v3758, %v3918
        %v3920 = vpop.f32.mrf.mxu0
        %3921 = vmatprep.mubr.bf16.mxu0 %v3024
        %3922 = vmatmul.mubr.bf16.gmra.mxu0 %v3023
        %v3923 = vpop.f32.mrf.mxu0
        %v3924 = vadd.f32 %v3763, %v3923
        %v3925 = vpop.f32.mrf.mxu0
        %v3926 = vpop.f32.mrf.mxu0
        %v3927 = vadd.f32 %v3766, %v3926
        %v3928 = vpop.f32.mrf.mxu0
        %3929 = vmatprep.mubr.bf16.mxu0 %v3033
        %3930 = vmatmul.mubr.bf16.gmra.mxu0 %v3032
        %v3931 = vpop.f32.mrf.mxu0
        %v3932 = vadd.f32 %v3771, %v3931
        %v3933 = vpop.f32.mrf.mxu0
        %v3934 = vpop.f32.mrf.mxu0
        %v3935 = vadd.f32 %v3774, %v3934
        %v3936 = vpop.f32.mrf.mxu0
        %3937 = vmatprep.mubr.bf16.mxu0 %v3042
        %3938 = vmatmul.mubr.bf16.gmra.mxu0 %v3041
        %v3939 = vpop.f32.mrf.mxu0
        %v3940 = vadd.f32 %v3779, %v3939
        %v3941 = vpop.f32.mrf.mxu0
        %v3942 = vpop.f32.mrf.mxu0
        %v3943 = vadd.f32 %v3782, %v3942
        %v3944 = vpop.f32.mrf.mxu0
        %3945 = vdwg.mxu0
        %3946 = vmatprep.subr.bf16.mxu0 0
        %3947 = vmatpush1.bf16.msra.mxu0 %v3519
        %3948 = vmatprep.subr.bf16.mxu0 0
        %3949 = vmatpush1.bf16.msra.mxu0 %v3518
        %3950 = vmatprep.subr.bf16.mxu0 0
        %3951 = vmatpush1.bf16.msra.mxu0 %v3517
        %3952 = vmatprep.subr.bf16.mxu0 0
        %3953 = vmatpush1.bf16.msra.mxu0 %v3516
        %3954 = vmatprep.subr.bf16.mxu0 0
        %3955 = vmatpush1.bf16.msra.mxu0 %v3515
        %3956 = vmatprep.subr.bf16.mxu0 0
        %3957 = vmatpush1.bf16.msra.mxu0 %v3514
        %3958 = vmatprep.subr.bf16.mxu0 0
        %3959 = vmatpush1.bf16.msra.mxu0 %v3513
        %3960 = vmatprep.subr.bf16.mxu0 0
        %3961 = vmatpush1.bf16.msra.mxu0 %v3512
        %3962 = vmatprep.subr.bf16.mxu0 0
        %3963 = vmatpush2.bf16.msra.mxu0 %v3527
        %3964 = vmatprep.subr.bf16.mxu0 0
        %3965 = vmatpush2.bf16.msra.mxu0 %v3526
        %3966 = vmatprep.subr.bf16.mxu0 0
        %3967 = vmatpush2.bf16.msra.mxu0 %v3525
        %3968 = vmatprep.subr.bf16.mxu0 0
        %3969 = vmatpush2.bf16.msra.mxu0 %v3524
        %3970 = vmatprep.subr.bf16.mxu0 0
        %3971 = vmatpush2.bf16.msra.mxu0 %v3523
        %3972 = vmatprep.subr.bf16.mxu0 0
        %3973 = vmatpush2.bf16.msra.mxu0 %v3522
        %3974 = vmatprep.subr.bf16.mxu0 0
        %3975 = vmatpush2.bf16.msra.mxu0 %v3521
        %3976 = vmatprep.subr.bf16.mxu0 0
        %3977 = vmatpush2.bf16.msra.mxu0 %v3520
        %3978 = vmatprep.mubr.bf16.mxu0 %v2909
        %3979 = vmatmul.mubr.bf16.gmra.mxu0 %v2908
        %v3980 = vpop.f32.mrf.mxu0
        %v3981 = vadd.f32 %v3820, %v3980
        %v3982 = vpop.f32.mrf.mxu0
        %v3983 = vpop.f32.mrf.mxu0
        %v3984 = vadd.f32 %v3823, %v3983
        %v3985 = vpop.f32.mrf.mxu0
        %3986 = vmatprep.mubr.bf16.mxu0 %v2918
        %3987 = vmatmul.mubr.bf16.gmra.mxu0 %v2917
        %v3988 = vpop.f32.mrf.mxu0
        %v3989 = vadd.f32 %v3828, %v3988
        %v3990 = vpop.f32.mrf.mxu0
        %v3991 = vpop.f32.mrf.mxu0
        %v3992 = vadd.f32 %v3831, %v3991
        %v3993 = vpop.f32.mrf.mxu0
        %3994 = vmatprep.mubr.bf16.mxu0 %v2927
        %3995 = vmatmul.mubr.bf16.gmra.mxu0 %v2926
        %v3996 = vpop.f32.mrf.mxu0
        %v3997 = vadd.f32 %v3836, %v3996
        %v3998 = vpop.f32.mrf.mxu0
        %v3999 = vpop.f32.mrf.mxu0
        %v4000 = vadd.f32 %v3839, %v3999
        %v4001 = vpop.f32.mrf.mxu0
        %4002 = vmatprep.mubr.bf16.mxu0 %v2936
        %4003 = vmatmul.mubr.bf16.gmra.mxu0 %v2935
        %v4004 = vpop.f32.mrf.mxu0
        %v4005 = vadd.f32 %v3844, %v4004
        %v4006 = vpop.f32.mrf.mxu0
        %v4007 = vpop.f32.mrf.mxu0
        %v4008 = vadd.f32 %v3847, %v4007
        %v4009 = vpop.f32.mrf.mxu0
        %4010 = vmatprep.mubr.bf16.mxu0 %v2945
        %4011 = vmatmul.mubr.bf16.gmra.mxu0 %v2944
        %v4012 = vpop.f32.mrf.mxu0
        %v4013 = vadd.f32 %v3852, %v4012
        %v4014 = vpop.f32.mrf.mxu0
        %v4015 = vpop.f32.mrf.mxu0
        %v4016 = vadd.f32 %v3855, %v4015
        %v4017 = vpop.f32.mrf.mxu0
        %4018 = vmatprep.mubr.bf16.mxu0 %v2954
        %4019 = vmatmul.mubr.bf16.gmra.mxu0 %v2953
        %v4020 = vpop.f32.mrf.mxu0
        %v4021 = vadd.f32 %v3860, %v4020
        %v4022 = vpop.f32.mrf.mxu0
        %v4023 = vpop.f32.mrf.mxu0
        %v4024 = vadd.f32 %v3863, %v4023
        %v4025 = vpop.f32.mrf.mxu0
        %4026 = vmatprep.mubr.bf16.mxu0 %v2963
        %4027 = vmatmul.mubr.bf16.gmra.mxu0 %v2962
        %v4028 = vpop.f32.mrf.mxu0
        %v4029 = vadd.f32 %v3868, %v4028
        %v4030 = vpop.f32.mrf.mxu0
        %v4031 = vpop.f32.mrf.mxu0
        %v4032 = vadd.f32 %v3871, %v4031
        %v4033 = vpop.f32.mrf.mxu0
        %4034 = vmatprep.mubr.bf16.mxu0 %v2972
        %4035 = vmatmul.mubr.bf16.gmra.mxu0 %v2971
        %v4036 = vpop.f32.mrf.mxu0
        %v4037 = vadd.f32 %v3876, %v4036
        %v4038 = vpop.f32.mrf.mxu0
        %v4039 = vpop.f32.mrf.mxu0
        %v4040 = vadd.f32 %v3879, %v4039
        %v4041 = vpop.f32.mrf.mxu0
        %4042 = vmatprep.mubr.bf16.mxu0 %v2981
        %4043 = vmatmul.mubr.bf16.gmra.mxu0 %v2980
        %v4044 = vpop.f32.mrf.mxu0
        %v4045 = vadd.f32 %v3884, %v4044
        %v4046 = vpop.f32.mrf.mxu0
        %v4047 = vpop.f32.mrf.mxu0
        %v4048 = vadd.f32 %v3887, %v4047
        %v4049 = vpop.f32.mrf.mxu0
        %4050 = vmatprep.mubr.bf16.mxu0 %v2990
        %4051 = vmatmul.mubr.bf16.gmra.mxu0 %v2989
        %v4052 = vpop.f32.mrf.mxu0
        %v4053 = vadd.f32 %v3892, %v4052
        %v4054 = vpop.f32.mrf.mxu0
        %v4055 = vpop.f32.mrf.mxu0
        %v4056 = vadd.f32 %v3895, %v4055
        %v4057 = vpop.f32.mrf.mxu0
        %4058 = vmatprep.mubr.bf16.mxu0 %v2999
        %4059 = vmatmul.mubr.bf16.gmra.mxu0 %v2998
        %v4060 = vpop.f32.mrf.mxu0
        %v4061 = vadd.f32 %v3900, %v4060
        %v4062 = vpop.f32.mrf.mxu0
        %v4063 = vpop.f32.mrf.mxu0
        %v4064 = vadd.f32 %v3903, %v4063
        %v4065 = vpop.f32.mrf.mxu0
        %4066 = vmatprep.mubr.bf16.mxu0 %v3008
        %4067 = vmatmul.mubr.bf16.gmra.mxu0 %v3007
        %v4068 = vpop.f32.mrf.mxu0
        %v4069 = vadd.f32 %v3908, %v4068
        %v4070 = vpop.f32.mrf.mxu0
        %v4071 = vpop.f32.mrf.mxu0
        %v4072 = vadd.f32 %v3911, %v4071
        %v4073 = vpop.f32.mrf.mxu0
        %4074 = vmatprep.mubr.bf16.mxu0 %v3017
        %4075 = vmatmul.mubr.bf16.gmra.mxu0 %v3016
        %v4076 = vpop.f32.mrf.mxu0
        %v4077 = vadd.f32 %v3916, %v4076
        %v4078 = vpop.f32.mrf.mxu0
        %v4079 = vpop.f32.mrf.mxu0
        %v4080 = vadd.f32 %v3919, %v4079
        %v4081 = vpop.f32.mrf.mxu0
        %4082 = vmatprep.mubr.bf16.mxu0 %v3026
        %4083 = vmatmul.mubr.bf16.gmra.mxu0 %v3025
        %v4084 = vpop.f32.mrf.mxu0
        %v4085 = vadd.f32 %v3924, %v4084
        %v4086 = vpop.f32.mrf.mxu0
        %v4087 = vpop.f32.mrf.mxu0
        %v4088 = vadd.f32 %v3927, %v4087
        %v4089 = vpop.f32.mrf.mxu0
        %4090 = vmatprep.mubr.bf16.mxu0 %v3035
        %4091 = vmatmul.mubr.bf16.gmra.mxu0 %v3034
        %v4092 = vpop.f32.mrf.mxu0
        %v4093 = vadd.f32 %v3932, %v4092
        %v4094 = vpop.f32.mrf.mxu0
        %v4095 = vpop.f32.mrf.mxu0
        %v4096 = vadd.f32 %v3935, %v4095
        %v4097 = vpop.f32.mrf.mxu0
        %4098 = vmatprep.mubr.bf16.mxu0 %v3044
        %4099 = vmatmul.mubr.bf16.gmra.mxu0 %v3043
        %v4100 = vpop.f32.mrf.mxu0
        %v4101 = vadd.f32 %v3940, %v4100
        %v4102 = vpop.f32.mrf.mxu0
        %v4103 = vpop.f32.mrf.mxu0
        %v4104 = vadd.f32 %v3943, %v4103
        %v4105 = vpop.f32.mrf.mxu0
        %4106 = vdwg.mxu0
        %4107 = vmatprep.subr.bf16.mxu0 0
        %4108 = vmatpush1.bf16.msra.mxu0 %v3535
        %4109 = vmatprep.subr.bf16.mxu0 0
        %4110 = vmatpush1.bf16.msra.mxu0 %v3534
        %4111 = vmatprep.subr.bf16.mxu0 0
        %4112 = vmatpush1.bf16.msra.mxu0 %v3533
        %4113 = vmatprep.subr.bf16.mxu0 0
        %4114 = vmatpush1.bf16.msra.mxu0 %v3532
        %4115 = vmatprep.subr.bf16.mxu0 0
        %4116 = vmatpush1.bf16.msra.mxu0 %v3531
        %4117 = vmatprep.subr.bf16.mxu0 0
        %4118 = vmatpush1.bf16.msra.mxu0 %v3530
        %4119 = vmatprep.subr.bf16.mxu0 0
        %4120 = vmatpush1.bf16.msra.mxu0 %v3529
        %4121 = vmatprep.subr.bf16.mxu0 0
        %4122 = vmatpush1.bf16.msra.mxu0 %v3528
        %4123 = vmatprep.subr.bf16.mxu0 0
        %4124 = vmatpush2.bf16.msra.mxu0 %v3543
        %4125 = vmatprep.subr.bf16.mxu0 0
        %4126 = vmatpush2.bf16.msra.mxu0 %v3542
        %4127 = vmatprep.subr.bf16.mxu0 0
        %4128 = vmatpush2.bf16.msra.mxu0 %v3541
        %4129 = vmatprep.subr.bf16.mxu0 0
        %4130 = vmatpush2.bf16.msra.mxu0 %v3540
        %4131 = vmatprep.subr.bf16.mxu0 0
        %4132 = vmatpush2.bf16.msra.mxu0 %v3539
        %4133 = vmatprep.subr.bf16.mxu0 0
        %4134 = vmatpush2.bf16.msra.mxu0 %v3538
        %4135 = vmatprep.subr.bf16.mxu0 0
        %4136 = vmatpush2.bf16.msra.mxu0 %v3537
        %4137 = vmatprep.subr.bf16.mxu0 0
        %4138 = vmatpush2.bf16.msra.mxu0 %v3536
        %4139 = vmatprep.mubr.bf16.mxu0 %v2911
        %4140 = vmatmul.mubr.bf16.gmra.mxu0 %v2910
        %v4141 = vpop.f32.mrf.mxu0
        %v4142 = vadd.f32 %v3981, %v4141
        %v4143 = vpop.f32.mrf.mxu0
        %v4144 = vpop.f32.mrf.mxu0
        %v4145 = vadd.f32 %v3984, %v4144
        %v4146 = vpop.f32.mrf.mxu0
        %4147 = vmatprep.mubr.bf16.mxu0 %v2920
        %4148 = vmatmul.mubr.bf16.gmra.mxu0 %v2919
        %v4149 = vpop.f32.mrf.mxu0
        %v4150 = vadd.f32 %v3989, %v4149
        %v4151 = vpop.f32.mrf.mxu0
        %v4152 = vpop.f32.mrf.mxu0
        %v4153 = vadd.f32 %v3992, %v4152
        %v4154 = vpop.f32.mrf.mxu0
        %4155 = vmatprep.mubr.bf16.mxu0 %v2929
        %4156 = vmatmul.mubr.bf16.gmra.mxu0 %v2928
        %v4157 = vpop.f32.mrf.mxu0
        %v4158 = vadd.f32 %v3997, %v4157
        %v4159 = vpop.f32.mrf.mxu0
        %v4160 = vpop.f32.mrf.mxu0
        %v4161 = vadd.f32 %v4000, %v4160
        %v4162 = vpop.f32.mrf.mxu0
        %4163 = vmatprep.mubr.bf16.mxu0 %v2938
        %4164 = vmatmul.mubr.bf16.gmra.mxu0 %v2937
        %v4165 = vpop.f32.mrf.mxu0
        %v4166 = vadd.f32 %v4005, %v4165
        %v4167 = vpop.f32.mrf.mxu0
        %v4168 = vpop.f32.mrf.mxu0
        %v4169 = vadd.f32 %v4008, %v4168
        %v4170 = vpop.f32.mrf.mxu0
        %4171 = vmatprep.mubr.bf16.mxu0 %v2947
        %4172 = vmatmul.mubr.bf16.gmra.mxu0 %v2946
        %v4173 = vpop.f32.mrf.mxu0
        %v4174 = vadd.f32 %v4013, %v4173
        %v4175 = vpop.f32.mrf.mxu0
        %v4176 = vpop.f32.mrf.mxu0
        %v4177 = vadd.f32 %v4016, %v4176
        %v4178 = vpop.f32.mrf.mxu0
        %4179 = vmatprep.mubr.bf16.mxu0 %v2956
        %4180 = vmatmul.mubr.bf16.gmra.mxu0 %v2955
        %v4181 = vpop.f32.mrf.mxu0
        %v4182 = vadd.f32 %v4021, %v4181
        %v4183 = vpop.f32.mrf.mxu0
        %v4184 = vpop.f32.mrf.mxu0
        %v4185 = vadd.f32 %v4024, %v4184
        %v4186 = vpop.f32.mrf.mxu0
        %4187 = vmatprep.mubr.bf16.mxu0 %v2965
        %4188 = vmatmul.mubr.bf16.gmra.mxu0 %v2964
        %v4189 = vpop.f32.mrf.mxu0
        %v4190 = vadd.f32 %v4029, %v4189
        %v4191 = vpop.f32.mrf.mxu0
        %v4192 = vpop.f32.mrf.mxu0
        %v4193 = vadd.f32 %v4032, %v4192
        %v4194 = vpop.f32.mrf.mxu0
        %4195 = vmatprep.mubr.bf16.mxu0 %v2974
        %4196 = vmatmul.mubr.bf16.gmra.mxu0 %v2973
        %v4197 = vpop.f32.mrf.mxu0
        %v4198 = vadd.f32 %v4037, %v4197
        %v4199 = vpop.f32.mrf.mxu0
        %v4200 = vpop.f32.mrf.mxu0
        %v4201 = vadd.f32 %v4040, %v4200
        %v4202 = vpop.f32.mrf.mxu0
        %4203 = vmatprep.mubr.bf16.mxu0 %v2983
        %4204 = vmatmul.mubr.bf16.gmra.mxu0 %v2982
        %v4205 = vpop.f32.mrf.mxu0
        %v4206 = vadd.f32 %v4045, %v4205
        %v4207 = vpop.f32.mrf.mxu0
        %v4208 = vpop.f32.mrf.mxu0
        %v4209 = vadd.f32 %v4048, %v4208
        %v4210 = vpop.f32.mrf.mxu0
        %4211 = vmatprep.mubr.bf16.mxu0 %v2992
        %4212 = vmatmul.mubr.bf16.gmra.mxu0 %v2991
        %v4213 = vpop.f32.mrf.mxu0
        %v4214 = vadd.f32 %v4053, %v4213
        %v4215 = vpop.f32.mrf.mxu0
        %v4216 = vpop.f32.mrf.mxu0
        %v4217 = vadd.f32 %v4056, %v4216
        %v4218 = vpop.f32.mrf.mxu0
        %4219 = vmatprep.mubr.bf16.mxu0 %v3001
        %4220 = vmatmul.mubr.bf16.gmra.mxu0 %v3000
        %v4221 = vpop.f32.mrf.mxu0
        %v4222 = vadd.f32 %v4061, %v4221
        %v4223 = vpop.f32.mrf.mxu0
        %v4224 = vpop.f32.mrf.mxu0
        %v4225 = vadd.f32 %v4064, %v4224
        %v4226 = vpop.f32.mrf.mxu0
        %4227 = vmatprep.mubr.bf16.mxu0 %v3010
        %4228 = vmatmul.mubr.bf16.gmra.mxu0 %v3009
        %v4229 = vpop.f32.mrf.mxu0
        %v4230 = vadd.f32 %v4069, %v4229
        %v4231 = vpop.f32.mrf.mxu0
        %v4232 = vpop.f32.mrf.mxu0
        %v4233 = vadd.f32 %v4072, %v4232
        %v4234 = vpop.f32.mrf.mxu0
        %4235 = vmatprep.mubr.bf16.mxu0 %v3019
        %4236 = vmatmul.mubr.bf16.gmra.mxu0 %v3018
        %v4237 = vpop.f32.mrf.mxu0
        %v4238 = vadd.f32 %v4077, %v4237
        %v4239 = vpop.f32.mrf.mxu0
        %v4240 = vpop.f32.mrf.mxu0
        %v4241 = vadd.f32 %v4080, %v4240
        %v4242 = vpop.f32.mrf.mxu0
        %4243 = vmatprep.mubr.bf16.mxu0 %v3028
        %4244 = vmatmul.mubr.bf16.gmra.mxu0 %v3027
        %v4245 = vpop.f32.mrf.mxu0
        %v4246 = vadd.f32 %v4085, %v4245
        %v4247 = vpop.f32.mrf.mxu0
        %v4248 = vpop.f32.mrf.mxu0
        %v4249 = vadd.f32 %v4088, %v4248
        %v4250 = vpop.f32.mrf.mxu0
        %4251 = vmatprep.mubr.bf16.mxu0 %v3037
        %4252 = vmatmul.mubr.bf16.gmra.mxu0 %v3036
        %v4253 = vpop.f32.mrf.mxu0
        %v4254 = vadd.f32 %v4093, %v4253
        %v4255 = vpop.f32.mrf.mxu0
        %v4256 = vpop.f32.mrf.mxu0
        %v4257 = vadd.f32 %v4096, %v4256
        %v4258 = vpop.f32.mrf.mxu0
        %4259 = vmatprep.mubr.bf16.mxu0 %v3046
        %4260 = vmatmul.mubr.bf16.gmra.mxu0 %v3045
        %v4261 = vpop.f32.mrf.mxu0
        %v4262 = vadd.f32 %v4101, %v4261
        %v4263 = vpop.f32.mrf.mxu0
        %v4264 = vpop.f32.mrf.mxu0
        %v4265 = vadd.f32 %v4104, %v4264
        %v4266 = vpop.f32.mrf.mxu0
        %4267 = vdwg.mxu0
        %4268 = vmatprep.subr.bf16.mxu0 0
        %4269 = vmatpush1.bf16.msra.mxu0 %v3551
        %4270 = vmatprep.subr.bf16.mxu0 0
        %4271 = vmatpush1.bf16.msra.mxu0 %v3550
        %4272 = vmatprep.subr.bf16.mxu0 0
        %4273 = vmatpush1.bf16.msra.mxu0 %v3549
        %4274 = vmatprep.subr.bf16.mxu0 0
        %4275 = vmatpush1.bf16.msra.mxu0 %v3548
        %4276 = vmatprep.subr.bf16.mxu0 0
        %4277 = vmatpush1.bf16.msra.mxu0 %v3547
        %4278 = vmatprep.subr.bf16.mxu0 0
        %4279 = vmatpush1.bf16.msra.mxu0 %v3546
        %4280 = vmatprep.subr.bf16.mxu0 0
        %4281 = vmatpush1.bf16.msra.mxu0 %v3545
        %4282 = vmatprep.subr.bf16.mxu0 0
        %4283 = vmatpush1.bf16.msra.mxu0 %v3544
        %4284 = vmatprep.subr.bf16.mxu0 0
        %4285 = vmatpush2.bf16.msra.mxu0 0
        %4286 = vmatprep.subr.bf16.mxu0 0
        %4287 = vmatpush2.bf16.msra.mxu0 0
        %4288 = vmatprep.subr.bf16.mxu0 0
        %4289 = vmatpush2.bf16.msra.mxu0 0
        %4290 = vmatprep.subr.bf16.mxu0 0
        %4291 = vmatpush2.bf16.msra.mxu0 0
        %4292 = vmatprep.subr.bf16.mxu0 0
        %4293 = vmatpush2.bf16.msra.mxu0 0
        %4294 = vmatprep.subr.bf16.mxu0 0
        %4295 = vmatpush2.bf16.msra.mxu0 0
        %4296 = vmatprep.subr.bf16.mxu0 0
        %4297 = vmatpush2.bf16.msra.mxu0 0
        %4298 = vmatprep.subr.bf16.mxu0 0
        %4299 = vmatpush2.bf16.msra.mxu0 0
        %4300 = vmatprep.mubr.bf16.mxu0 0
        %4301 = vmatmul.mubr.bf16.gmra.mxu0 %v2912
        %v4302 = vpop.f32.mrf.mxu0
        %v4303 = vadd.f32 %v4142, %v4302
        %v4304 = vpop.f32.mrf.mxu0
        %v4305 = vpop.f32.mrf.mxu0
        %v4306 = vadd.f32 %v4145, %v4305
        %v4307 = vpop.f32.mrf.mxu0
        %4308 = vmatprep.mubr.bf16.mxu0 0
        %4309 = vmatmul.mubr.bf16.gmra.mxu0 %v2921
        %v4310 = vpop.f32.mrf.mxu0
        %v4311 = vadd.f32 %v4150, %v4310
        %v4312 = vpop.f32.mrf.mxu0
        %v4313 = vpop.f32.mrf.mxu0
        %v4314 = vadd.f32 %v4153, %v4313
        %v4315 = vpop.f32.mrf.mxu0
        %4316 = vmatprep.mubr.bf16.mxu0 0
        %4317 = vmatmul.mubr.bf16.gmra.mxu0 %v2930
        %v4318 = vpop.f32.mrf.mxu0
        %v4319 = vadd.f32 %v4158, %v4318
        %v4320 = vpop.f32.mrf.mxu0
        %v4321 = vpop.f32.mrf.mxu0
        %v4322 = vadd.f32 %v4161, %v4321
        %v4323 = vpop.f32.mrf.mxu0
        %4324 = vmatprep.mubr.bf16.mxu0 0
        %4325 = vmatmul.mubr.bf16.gmra.mxu0 %v2939
        %v4326 = vpop.f32.mrf.mxu0
        %v4327 = vadd.f32 %v4166, %v4326
        %v4328 = vpop.f32.mrf.mxu0
        %v4329 = vpop.f32.mrf.mxu0
        %v4330 = vadd.f32 %v4169, %v4329
        %v4331 = vpop.f32.mrf.mxu0
        %4332 = vmatprep.mubr.bf16.mxu0 0
        %4333 = vmatmul.mubr.bf16.gmra.mxu0 %v2948
        %v4334 = vpop.f32.mrf.mxu0
        %v4335 = vadd.f32 %v4174, %v4334
        %v4336 = vpop.f32.mrf.mxu0
        %v4337 = vpop.f32.mrf.mxu0
        %v4338 = vadd.f32 %v4177, %v4337
        %v4339 = vpop.f32.mrf.mxu0
        %4340 = vmatprep.mubr.bf16.mxu0 0
        %4341 = vmatmul.mubr.bf16.gmra.mxu0 %v2957
        %v4342 = vpop.f32.mrf.mxu0
        %v4343 = vadd.f32 %v4182, %v4342
        %v4344 = vpop.f32.mrf.mxu0
        %v4345 = vpop.f32.mrf.mxu0
        %v4346 = vadd.f32 %v4185, %v4345
        %v4347 = vpop.f32.mrf.mxu0
        %4348 = vmatprep.mubr.bf16.mxu0 0
        %4349 = vmatmul.mubr.bf16.gmra.mxu0 %v2966
        %v4350 = vpop.f32.mrf.mxu0
        %v4351 = vadd.f32 %v4190, %v4350
        %v4352 = vpop.f32.mrf.mxu0
        %v4353 = vpop.f32.mrf.mxu0
        %v4354 = vadd.f32 %v4193, %v4353
        %v4355 = vpop.f32.mrf.mxu0
        %4356 = vmatprep.mubr.bf16.mxu0 0
        %4357 = vmatmul.mubr.bf16.gmra.mxu0 %v2975
        %v4358 = vpop.f32.mrf.mxu0
        %v4359 = vadd.f32 %v4198, %v4358
        %v4360 = vpop.f32.mrf.mxu0
        %v4361 = vpop.f32.mrf.mxu0
        %v4362 = vadd.f32 %v4201, %v4361
        %v4363 = vpop.f32.mrf.mxu0
        %4364 = vmatprep.mubr.bf16.mxu0 0
        %4365 = vmatmul.mubr.bf16.gmra.mxu0 %v2984
        %v4366 = vpop.f32.mrf.mxu0
        %v4367 = vadd.f32 %v4206, %v4366
        %v4368 = vpop.f32.mrf.mxu0
        %v4369 = vpop.f32.mrf.mxu0
        %v4370 = vadd.f32 %v4209, %v4369
        %v4371 = vpop.f32.mrf.mxu0
        %4372 = vmatprep.mubr.bf16.mxu0 0
        %4373 = vmatmul.mubr.bf16.gmra.mxu0 %v2993
        %v4374 = vpop.f32.mrf.mxu0
        %v4375 = vadd.f32 %v4214, %v4374
        %v4376 = vpop.f32.mrf.mxu0
        %v4377 = vpop.f32.mrf.mxu0
        %v4378 = vadd.f32 %v4217, %v4377
        %v4379 = vpop.f32.mrf.mxu0
        %4380 = vmatprep.mubr.bf16.mxu0 0
        %4381 = vmatmul.mubr.bf16.gmra.mxu0 %v3002
        %v4382 = vpop.f32.mrf.mxu0
        %v4383 = vadd.f32 %v4222, %v4382
        %v4384 = vpop.f32.mrf.mxu0
        %v4385 = vpop.f32.mrf.mxu0
        %v4386 = vadd.f32 %v4225, %v4385
        %v4387 = vpop.f32.mrf.mxu0
        %4388 = vmatprep.mubr.bf16.mxu0 0
        %4389 = vmatmul.mubr.bf16.gmra.mxu0 %v3011
        %v4390 = vpop.f32.mrf.mxu0
        %v4391 = vadd.f32 %v4230, %v4390
        %v4392 = vpop.f32.mrf.mxu0
        %v4393 = vpop.f32.mrf.mxu0
        %v4394 = vadd.f32 %v4233, %v4393
        %v4395 = vpop.f32.mrf.mxu0
        %4396 = vmatprep.mubr.bf16.mxu0 0
        %4397 = vmatmul.mubr.bf16.gmra.mxu0 %v3020
        %v4398 = vpop.f32.mrf.mxu0
        %v4399 = vadd.f32 %v4238, %v4398
        %v4400 = vpop.f32.mrf.mxu0
        %v4401 = vpop.f32.mrf.mxu0
        %v4402 = vadd.f32 %v4241, %v4401
        %v4403 = vpop.f32.mrf.mxu0
        %4404 = vmatprep.mubr.bf16.mxu0 0
        %4405 = vmatmul.mubr.bf16.gmra.mxu0 %v3029
        %v4406 = vpop.f32.mrf.mxu0
        %v4407 = vadd.f32 %v4246, %v4406
        %v4408 = vpop.f32.mrf.mxu0
        %v4409 = vpop.f32.mrf.mxu0
        %v4410 = vadd.f32 %v4249, %v4409
        %v4411 = vpop.f32.mrf.mxu0
        %4412 = vmatprep.mubr.bf16.mxu0 0
        %4413 = vmatmul.mubr.bf16.gmra.mxu0 %v3038
        %v4414 = vpop.f32.mrf.mxu0
        %v4415 = vadd.f32 %v4254, %v4414
        %v4416 = vpop.f32.mrf.mxu0
        %v4417 = vpop.f32.mrf.mxu0
        %v4418 = vadd.f32 %v4257, %v4417
        %v4419 = vpop.f32.mrf.mxu0
        %4420 = vmatprep.mubr.bf16.mxu0 0
        %4421 = vmatmul.mubr.bf16.gmra.mxu0 %v3047
        %v4422 = vpop.f32.mrf.mxu0
        %v4423 = vadd.f32 %v4262, %v4422
        %v4424 = vpop.f32.mrf.mxu0
        %v4425 = vpop.f32.mrf.mxu0
        %v4426 = vadd.f32 %v4265, %v4425
        %v4427 = vpop.f32.mrf.mxu0
        %4428 = vdwg.mxu0
        %v4429 = vld [vmem:[%s2] sm:$0x1]
        %v4431 = vlaneseq
        %v4432 = vshrl.u32 %v4431, 7
        %v4433 = vsub.s32 0, %v4432
        %v4434 = vrot.slane %v4429, %v4433
        %v4436 = vmul.f32 %v4303, %v4434
        %v4437 = vmul.f32 %v4306, %v4434
        %v4438 = vmul.f32 %v4311, %v4434
        %v4439 = vmul.f32 %v4314, %v4434
        %v4440 = vmul.f32 %v4319, %v4434
        %v4441 = vmul.f32 %v4322, %v4434
        %v4442 = vmul.f32 %v4327, %v4434
        %v4443 = vmul.f32 %v4330, %v4434
        %v4444 = vmul.f32 %v4335, %v4434
        %v4445 = vmul.f32 %v4338, %v4434
        %v4446 = vmul.f32 %v4343, %v4434
        %v4447 = vmul.f32 %v4346, %v4434
        %v4448 = vmul.f32 %v4351, %v4434
        %v4449 = vmul.f32 %v4354, %v4434
        %v4450 = vmul.f32 %v4359, %v4434
        %v4451 = vmul.f32 %v4362, %v4434
        %v4452 = vmul.f32 %v4367, %v4434
        %v4453 = vmul.f32 %v4370, %v4434
        %v4454 = vmul.f32 %v4375, %v4434
        %v4455 = vmul.f32 %v4378, %v4434
        %v4456 = vmul.f32 %v4383, %v4434
        %v4457 = vmul.f32 %v4386, %v4434
        %v4458 = vmul.f32 %v4391, %v4434
        %v4459 = vmul.f32 %v4394, %v4434
        %v4460 = vmul.f32 %v4399, %v4434
        %v4461 = vmul.f32 %v4402, %v4434
        %v4462 = vmul.f32 %v4407, %v4434
        %v4463 = vmul.f32 %v4410, %v4434
        %v4464 = vmul.f32 %v4415, %v4434
        %v4465 = vmul.f32 %v4418, %v4434
        %v4466 = vmul.f32 %v4423, %v4434
        %v4467 = vmul.f32 %v4426, %v4434
        %v4468 = vld [vmem:[#allocation9] sm:$0x1]
        %v4470 = vlaneseq
        %v4471 = vshrl.u32 %v4470, 7
        %v4472 = vsub.s32 0, %v4471
        %v4473 = vrot.slane %v4468, %v4472
        %v4475 = vadd.f32 %v4436, %v4473
        %v4476 = vadd.f32 %v4437, %v4473
        %v4477 = vadd.f32 %v4438, %v4473
        %v4478 = vadd.f32 %v4439, %v4473
        %v4479 = vadd.f32 %v4440, %v4473
        %v4480 = vadd.f32 %v4441, %v4473
        %v4481 = vadd.f32 %v4442, %v4473
        %v4482 = vadd.f32 %v4443, %v4473
        %v4483 = vadd.f32 %v4444, %v4473
        %v4484 = vadd.f32 %v4445, %v4473
        %v4485 = vadd.f32 %v4446, %v4473
        %v4486 = vadd.f32 %v4447, %v4473
        %v4487 = vadd.f32 %v4448, %v4473
        %v4488 = vadd.f32 %v4449, %v4473
        %v4489 = vadd.f32 %v4450, %v4473
        %v4490 = vadd.f32 %v4451, %v4473
        %v4491 = vadd.f32 %v4452, %v4473
        %v4492 = vadd.f32 %v4453, %v4473
        %v4493 = vadd.f32 %v4454, %v4473
        %v4494 = vadd.f32 %v4455, %v4473
        %v4495 = vadd.f32 %v4456, %v4473
        %v4496 = vadd.f32 %v4457, %v4473
        %v4497 = vadd.f32 %v4458, %v4473
        %v4498 = vadd.f32 %v4459, %v4473
        %v4499 = vadd.f32 %v4460, %v4473
        %v4500 = vadd.f32 %v4461, %v4473
        %v4501 = vadd.f32 %v4462, %v4473
        %v4502 = vadd.f32 %v4463, %v4473
        %v4503 = vadd.f32 %v4464, %v4473
        %v4504 = vadd.f32 %v4465, %v4473
        %v4505 = vadd.f32 %v4466, %v4473
        %v4506 = vadd.f32 %v4467, %v4473
        %v4507 = vmax.f32 %v4475, 0.0
        %v4508 = vmax.f32 %v4476, 0.0
        %v4509 = vmax.f32 %v4477, 0.0
        %v4510 = vmax.f32 %v4478, 0.0
        %v4511 = vmax.f32 %v4479, 0.0
        %v4512 = vmax.f32 %v4480, 0.0
        %v4513 = vmax.f32 %v4481, 0.0
        %v4514 = vmax.f32 %v4482, 0.0
        %v4515 = vmax.f32 %v4483, 0.0
        %v4516 = vmax.f32 %v4484, 0.0
        %v4517 = vmax.f32 %v4485, 0.0
        %v4518 = vmax.f32 %v4486, 0.0
        %v4519 = vmax.f32 %v4487, 0.0
        %v4520 = vmax.f32 %v4488, 0.0
        %v4521 = vmax.f32 %v4489, 0.0
        %v4522 = vmax.f32 %v4490, 0.0
        %v4523 = vmax.f32 %v4491, 0.0
        %v4524 = vmax.f32 %v4492, 0.0
        %v4525 = vmax.f32 %v4493, 0.0
        %v4526 = vmax.f32 %v4494, 0.0
        %v4527 = vmax.f32 %v4495, 0.0
        %v4528 = vmax.f32 %v4496, 0.0
        %v4529 = vmax.f32 %v4497, 0.0
        %v4530 = vmax.f32 %v4498, 0.0
        %v4531 = vmax.f32 %v4499, 0.0
        %v4532 = vmax.f32 %v4500, 0.0
        %v4533 = vmax.f32 %v4501, 0.0
        %v4534 = vmax.f32 %v4502, 0.0
        %v4535 = vmax.f32 %v4503, 0.0
        %v4536 = vmax.f32 %v4504, 0.0
        %v4537 = vmax.f32 %v4505, 0.0
        %v4538 = vmax.f32 %v4506, 0.0
        %v4539 = vpack.c.bf16 %v4508, %v4507
        %v4540 = vpack.c.bf16 %v4510, %v4509
        %v4541 = vpack.c.bf16 %v4512, %v4511
        %v4542 = vpack.c.bf16 %v4514, %v4513
        %v4543 = vpack.c.bf16 %v4516, %v4515
        %v4544 = vpack.c.bf16 %v4518, %v4517
        %v4545 = vpack.c.bf16 %v4520, %v4519
        %v4546 = vpack.c.bf16 %v4522, %v4521
        %v4547 = vpack.c.bf16 %v4524, %v4523
        %v4548 = vpack.c.bf16 %v4526, %v4525
        %v4549 = vpack.c.bf16 %v4528, %v4527
        %v4550 = vpack.c.bf16 %v4530, %v4529
        %v4551 = vpack.c.bf16 %v4532, %v4531
        %v4552 = vpack.c.bf16 %v4534, %v4533
        %v4553 = vpack.c.bf16 %v4536, %v4535
        %v4554 = vpack.c.bf16 %v4538, %v4537
        %v4555 = vld [vmem:[#allocation10] sm:$0xf]
        %v4556 = vld [vmem:[#allocation10 + $0x4] sm:$0xf]
        %v4557 = vld [vmem:[#allocation10 + $0x8] sm:$0xf]
        %v4558 = vld [vmem:[#allocation10 + $0xc] sm:$0xf]
        %v4559 = vld [vmem:[#allocation10 + $0x10] sm:$0xf]
        %v4560 = vld [vmem:[#allocation10 + $0x14] sm:$0xf]
        %v4561 = vld [vmem:[#allocation10 + $0x18] sm:$0xf]
        %v4562 = vld [vmem:[#allocation10 + $0x1c] sm:$0xf]
        %v4563 = vld [vmem:[#allocation10 + $0x20] sm:$0xf]
        %v4564 = vld [vmem:[#allocation10 + $0x24] sm:$0xf]
        %v4565 = vld [vmem:[#allocation10 + $0x28] sm:$0xf]
        %v4566 = vld [vmem:[#allocation10 + $0x2c] sm:$0xf]
        %v4567 = vld [vmem:[#allocation10 + $0x30] sm:$0xf]
        %v4568 = vld [vmem:[#allocation10 + $0x34] sm:$0xf]
        %v4569 = vld [vmem:[#allocation10 + $0x38] sm:$0xf]
        %v4570 = vld [vmem:[#allocation10 + $0x3c] sm:$0xf]
        %v4587 = vunpack.c.l.b16 %v4555
        %v4588 = vunpack.c.l.b16 %v4556
        %v4589 = vunpack.c.l.b16 %v4557
        %v4590 = vunpack.c.l.b16 %v4558
        %v4591 = vunpack.c.l.b16 %v4559
        %v4592 = vunpack.c.l.b16 %v4560
        %v4593 = vunpack.c.l.b16 %v4561
        %v4594 = vunpack.c.l.b16 %v4562
        %v4595 = vunpack.c.l.b16 %v4563
        %v4596 = vunpack.c.l.b16 %v4564
        %v4597 = vunpack.c.l.b16 %v4565
        %v4598 = vunpack.c.l.b16 %v4566
        %v4599 = vunpack.c.l.b16 %v4567
        %v4600 = vunpack.c.l.b16 %v4568
        %v4601 = vunpack.c.l.b16 %v4569
        %v4602 = vunpack.c.l.b16 %v4570
        %v4603 = vpack.c.b16 %v4588, %v4587
        %v4604 = vpack.c.b16 %v4590, %v4589
        %v4605 = vpack.c.b16 %v4592, %v4591
        %v4606 = vpack.c.b16 %v4594, %v4593
        %v4607 = vpack.c.b16 %v4596, %v4595
        %v4608 = vpack.c.b16 %v4598, %v4597
        %v4609 = vpack.c.b16 %v4600, %v4599
        %v4610 = vpack.c.b16 %v4602, %v4601
        %4619 = vmatprep.subr.bf16.mxu0 0
        %4620 = vmatpush1.bf16.msra.mxu0 %v4610
        %4621 = vmatprep.subr.bf16.mxu0 0
        %4622 = vmatpush1.bf16.msra.mxu0 %v4609
        %4623 = vmatprep.subr.bf16.mxu0 0
        %4624 = vmatpush1.bf16.msra.mxu0 %v4608
        %4625 = vmatprep.subr.bf16.mxu0 0
        %4626 = vmatpush1.bf16.msra.mxu0 %v4607
        %4627 = vmatprep.subr.bf16.mxu0 0
        %4628 = vmatpush1.bf16.msra.mxu0 %v4606
        %4629 = vmatprep.subr.bf16.mxu0 0
        %4630 = vmatpush1.bf16.msra.mxu0 %v4605
        %4631 = vmatprep.subr.bf16.mxu0 0
        %4632 = vmatpush1.bf16.msra.mxu0 %v4604
        %4633 = vmatprep.subr.bf16.mxu0 0
        %4634 = vmatpush1.bf16.msra.mxu0 %v4603
        %4635 = vmatprep.subr.bf16.mxu0 0
        %4636 = vmatpush2.bf16.msra.mxu0 0
        %4637 = vmatprep.subr.bf16.mxu0 0
        %4638 = vmatpush2.bf16.msra.mxu0 0
        %4639 = vmatprep.subr.bf16.mxu0 0
        %4640 = vmatpush2.bf16.msra.mxu0 0
        %4641 = vmatprep.subr.bf16.mxu0 0
        %4642 = vmatpush2.bf16.msra.mxu0 0
        %4643 = vmatprep.subr.bf16.mxu0 0
        %4644 = vmatpush2.bf16.msra.mxu0 0
        %4645 = vmatprep.subr.bf16.mxu0 0
        %4646 = vmatpush2.bf16.msra.mxu0 0
        %4647 = vmatprep.subr.bf16.mxu0 0
        %4648 = vmatpush2.bf16.msra.mxu0 0
        %4649 = vmatprep.subr.bf16.mxu0 0
        %4650 = vmatpush2.bf16.msra.mxu0 0
        %4651 = vmatprep.mubr.bf16.mxu0 0
        %4652 = vmatmul.mubr.bf16.gmra.mxu0 %v4539
        %v4653 = vpop.f32.mrf.mxu0
        %v4654 = vadd.f32 0.0, %v4653
        %v4655 = vpop.f32.mrf.mxu0
        %v4656 = vpop.f32.mrf.mxu0
        %v4657 = vadd.f32 0.0, %v4656
        %v4658 = vpop.f32.mrf.mxu0
        %4659 = vmatprep.mubr.bf16.mxu0 0
        %4660 = vmatmul.mubr.bf16.gmra.mxu0 %v4540
        %v4661 = vpop.f32.mrf.mxu0
        %v4662 = vadd.f32 0.0, %v4661
        %v4663 = vpop.f32.mrf.mxu0
        %v4664 = vpop.f32.mrf.mxu0
        %v4665 = vadd.f32 0.0, %v4664
        %v4666 = vpop.f32.mrf.mxu0
        %4667 = vmatprep.mubr.bf16.mxu0 0
        %4668 = vmatmul.mubr.bf16.gmra.mxu0 %v4541
        %v4669 = vpop.f32.mrf.mxu0
        %v4670 = vadd.f32 0.0, %v4669
        %v4671 = vpop.f32.mrf.mxu0
        %v4672 = vpop.f32.mrf.mxu0
        %v4673 = vadd.f32 0.0, %v4672
        %v4674 = vpop.f32.mrf.mxu0
        %4675 = vmatprep.mubr.bf16.mxu0 0
        %4676 = vmatmul.mubr.bf16.gmra.mxu0 %v4542
        %v4677 = vpop.f32.mrf.mxu0
        %v4678 = vadd.f32 0.0, %v4677
        %v4679 = vpop.f32.mrf.mxu0
        %v4680 = vpop.f32.mrf.mxu0
        %v4681 = vadd.f32 0.0, %v4680
        %v4682 = vpop.f32.mrf.mxu0
        %4683 = vmatprep.mubr.bf16.mxu0 0
        %4684 = vmatmul.mubr.bf16.gmra.mxu0 %v4543
        %v4685 = vpop.f32.mrf.mxu0
        %v4686 = vadd.f32 0.0, %v4685
        %v4687 = vpop.f32.mrf.mxu0
        %v4688 = vpop.f32.mrf.mxu0
        %v4689 = vadd.f32 0.0, %v4688
        %v4690 = vpop.f32.mrf.mxu0
        %4691 = vmatprep.mubr.bf16.mxu0 0
        %4692 = vmatmul.mubr.bf16.gmra.mxu0 %v4544
        %v4693 = vpop.f32.mrf.mxu0
        %v4694 = vadd.f32 0.0, %v4693
        %v4695 = vpop.f32.mrf.mxu0
        %v4696 = vpop.f32.mrf.mxu0
        %v4697 = vadd.f32 0.0, %v4696
        %v4698 = vpop.f32.mrf.mxu0
        %4699 = vmatprep.mubr.bf16.mxu0 0
        %4700 = vmatmul.mubr.bf16.gmra.mxu0 %v4545
        %v4701 = vpop.f32.mrf.mxu0
        %v4702 = vadd.f32 0.0, %v4701
        %v4703 = vpop.f32.mrf.mxu0
        %v4704 = vpop.f32.mrf.mxu0
        %v4705 = vadd.f32 0.0, %v4704
        %v4706 = vpop.f32.mrf.mxu0
        %4707 = vmatprep.mubr.bf16.mxu0 0
        %4708 = vmatmul.mubr.bf16.gmra.mxu0 %v4546
        %v4709 = vpop.f32.mrf.mxu0
        %v4710 = vadd.f32 0.0, %v4709
        %v4711 = vpop.f32.mrf.mxu0
        %v4712 = vpop.f32.mrf.mxu0
        %v4713 = vadd.f32 0.0, %v4712
        %v4714 = vpop.f32.mrf.mxu0
        %4715 = vmatprep.mubr.bf16.mxu0 0
        %4716 = vmatmul.mubr.bf16.gmra.mxu0 %v4547
        %v4717 = vpop.f32.mrf.mxu0
        %v4718 = vadd.f32 0.0, %v4717
        %v4719 = vpop.f32.mrf.mxu0
        %v4720 = vpop.f32.mrf.mxu0
        %v4721 = vadd.f32 0.0, %v4720
        %v4722 = vpop.f32.mrf.mxu0
        %4723 = vmatprep.mubr.bf16.mxu0 0
        %4724 = vmatmul.mubr.bf16.gmra.mxu0 %v4548
        %v4725 = vpop.f32.mrf.mxu0
        %v4726 = vadd.f32 0.0, %v4725
        %v4727 = vpop.f32.mrf.mxu0
        %v4728 = vpop.f32.mrf.mxu0
        %v4729 = vadd.f32 0.0, %v4728
        %v4730 = vpop.f32.mrf.mxu0
        %4731 = vmatprep.mubr.bf16.mxu0 0
        %4732 = vmatmul.mubr.bf16.gmra.mxu0 %v4549
        %v4733 = vpop.f32.mrf.mxu0
        %v4734 = vadd.f32 0.0, %v4733
        %v4735 = vpop.f32.mrf.mxu0
        %v4736 = vpop.f32.mrf.mxu0
        %v4737 = vadd.f32 0.0, %v4736
        %v4738 = vpop.f32.mrf.mxu0
        %4739 = vmatprep.mubr.bf16.mxu0 0
        %4740 = vmatmul.mubr.bf16.gmra.mxu0 %v4550
        %v4741 = vpop.f32.mrf.mxu0
        %v4742 = vadd.f32 0.0, %v4741
        %v4743 = vpop.f32.mrf.mxu0
        %v4744 = vpop.f32.mrf.mxu0
        %v4745 = vadd.f32 0.0, %v4744
        %v4746 = vpop.f32.mrf.mxu0
        %4747 = vmatprep.mubr.bf16.mxu0 0
        %4748 = vmatmul.mubr.bf16.gmra.mxu0 %v4551
        %v4749 = vpop.f32.mrf.mxu0
        %v4750 = vadd.f32 0.0, %v4749
        %v4751 = vpop.f32.mrf.mxu0
        %v4752 = vpop.f32.mrf.mxu0
        %v4753 = vadd.f32 0.0, %v4752
        %v4754 = vpop.f32.mrf.mxu0
        %4755 = vmatprep.mubr.bf16.mxu0 0
        %4756 = vmatmul.mubr.bf16.gmra.mxu0 %v4552
        %v4757 = vpop.f32.mrf.mxu0
        %v4758 = vadd.f32 0.0, %v4757
        %v4759 = vpop.f32.mrf.mxu0
        %v4760 = vpop.f32.mrf.mxu0
        %v4761 = vadd.f32 0.0, %v4760
        %v4762 = vpop.f32.mrf.mxu0
        %4763 = vmatprep.mubr.bf16.mxu0 0
        %4764 = vmatmul.mubr.bf16.gmra.mxu0 %v4553
        %v4765 = vpop.f32.mrf.mxu0
        %v4766 = vadd.f32 0.0, %v4765
        %v4767 = vpop.f32.mrf.mxu0
        %v4768 = vpop.f32.mrf.mxu0
        %v4769 = vadd.f32 0.0, %v4768
        %v4770 = vpop.f32.mrf.mxu0
        %4771 = vmatprep.mubr.bf16.mxu0 0
        %4772 = vmatmul.mubr.bf16.gmra.mxu0 %v4554
        %v4773 = vpop.f32.mrf.mxu0
        %v4774 = vadd.f32 0.0, %v4773
        %v4775 = vpop.f32.mrf.mxu0
        %v4776 = vpop.f32.mrf.mxu0
        %v4777 = vadd.f32 0.0, %v4776
        %v4778 = vpop.f32.mrf.mxu0
        %4779 = vdwg.mxu0
        %4780 = vst [vmem:[%s284] sm:$0xff] %v4654
        %4781 = vst [vmem:[%s284 + $0x8] sm:$0xff] %v4657
        %4782 = vst [vmem:[%s284 + $0x10] sm:$0xff] %v4662
        %4783 = vst [vmem:[%s284 + $0x18] sm:$0xff] %v4665
        %4784 = vst [vmem:[%s284 + $0x20] sm:$0xff] %v4670
        %4785 = vst [vmem:[%s284 + $0x28] sm:$0xff] %v4673
        %4786 = vst [vmem:[%s284 + $0x30] sm:$0xff] %v4678
        %4787 = vst [vmem:[%s284 + $0x38] sm:$0xff] %v4681
        %4788 = vst [vmem:[%s284 + $0x40] sm:$0xff] %v4686
        %4789 = vst [vmem:[%s284 + $0x48] sm:$0xff] %v4689
        %4790 = vst [vmem:[%s284 + $0x50] sm:$0xff] %v4694
        %4791 = vst [vmem:[%s284 + $0x58] sm:$0xff] %v4697
        %4792 = vst [vmem:[%s284 + $0x60] sm:$0xff] %v4702
        %4793 = vst [vmem:[%s284 + $0x68] sm:$0xff] %v4705
        %4794 = vst [vmem:[%s284 + $0x70] sm:$0xff] %v4710
        %4795 = vst [vmem:[%s284 + $0x78] sm:$0xff] %v4713
        %4796 = vst [vmem:[%s284 + $0x80] sm:$0xff] %v4718
        %4797 = vst [vmem:[%s284 + $0x88] sm:$0xff] %v4721
        %4798 = vst [vmem:[%s284 + $0x90] sm:$0xff] %v4726
        %4799 = vst [vmem:[%s284 + $0x98] sm:$0xff] %v4729
        %4800 = vst [vmem:[%s284 + $0xa0] sm:$0xff] %v4734
        %4801 = vst [vmem:[%s284 + $0xa8] sm:$0xff] %v4737
        %4802 = vst [vmem:[%s284 + $0xb0] sm:$0xff] %v4742
        %4803 = vst [vmem:[%s284 + $0xb8] sm:$0xff] %v4745
        %4804 = vst [vmem:[%s284 + $0xc0] sm:$0xff] %v4750
        %4805 = vst [vmem:[%s284 + $0xc8] sm:$0xff] %v4753
        %4806 = vst [vmem:[%s284 + $0xd0] sm:$0xff] %v4758
        %4807 = vst [vmem:[%s284 + $0xd8] sm:$0xff] %v4761
        %4808 = vst [vmem:[%s284 + $0xe0] sm:$0xff] %v4766
        %4809 = vst [vmem:[%s284 + $0xe8] sm:$0xff] %v4769
        %4810 = vst [vmem:[%s284 + $0xf0] sm:$0xff] %v4774
        %4811 = vst [vmem:[%s284 + $0xf8] sm:$0xff] %v4777
        %s4812 = sand.u32 %s142, 1
        %s4813 = scalar_lea.sflag [#allocation6], %s4812
        %s4814 = sand.u32 %s142, 1
        %s4815 = smul.addr %s4814, 256
        %s4816 = scalar_lea.vmem [#allocation12], %s4815
        // Predicated region
        $region57: #{mhca_forward.1} parent=39 // pred_check
          %p4817 = pneg %p152
        $region58: #{mhca_forward.1} parent=39 // pred_check_branch
          %4819 = sbr.rel (%p4817) target = $region60
        $region59: #{mhca_forward.1} parent=39 // pred_region
          %s4821 = ssub.s32 4096, 4096
          %4822 = vsyncadd %s4813, %s4821
          %s4823 = smul.addr %s24, 32
          %s4824 = smul.addr %s4823, 128
          %s4825 = scalar_lea.hbm %s5, %s4824
          %s4826 = sshll.u32 %s4816, 4
          %s4827 = int_to_ptr.vmem [resolvable:$true] %s4826
          %4832 = dma.vmem_to_hbm [thread:$0]  %s4827, 4096, %s4825, %s4813, 128, 128, 8
        $region60: #{mhca_forward.1} parent=39 // pred_fallthru
          _
      $region40: #{mhca_forward.1} parent=5 // pred_fallthru
        _
      %p4833 = scmp.le.s32.totalorder 2, %s19
      // Predicated region
      $region61: #{mhca_forward.1} parent=5 // pred_check
        %p4834 = pneg %p4833
      $region62: #{mhca_forward.1} parent=5 // pred_check_branch
        %4836 = sbr.rel (%p4834) target = $region64
      $region63: #{mhca_forward.1} parent=5 // pred_region
        %s4837 = ssub.s32 %s19, 2
        // Predicated region
        $region65: #{mhca_forward.1} parent=63 // pred_check
          %p4838 = pneg %p158
        $region66: #{mhca_forward.1} parent=63 // pred_check_branch
          %4840 = sbr.rel (%p4838) target = $region68
        $region67: #{mhca_forward.1} parent=63 // pred_region
          %s4841 = sand.u32 %s143, 1
          %s4842 = scalar_lea.sflag [#allocation6], %s4841
          %s4843 = sand.u32 %s143, 1
          %s4844 = smul.addr %s4843, 256
          %s4845 = scalar_lea.vmem [#allocation12], %s4844
          %4846 = dma.done %s4842, 4096
        $region68: #{mhca_forward.1} parent=63 // pred_fallthru
          _
      $region64: #{mhca_forward.1} parent=5 // pred_fallthru
        _
    $region6: #{mhca_forward.1} parent=1 // loop_footer
      %s23 = sadd.s32 1, %s19
    $region7: #{mhca_forward.1} parent=1 // loop_footer_branch
      %18 = sbr.rel target = $region3
    $region8: #{mhca_forward.1} parent=1 // loop_exit
      _
    %4847 = vsyncpa [#allocation5], 1
    %s4848 = scalar_lea.sflag [#allocation5], 1
    %4849 = vsyncpa %s4848, 1
    %4850 = vsyncpa [#allocation8], 1
    %4851 = vsyncpa [#allocation11], 1
    %4852 = vsyncpa [#allocation6], 1
    %s4853 = scalar_lea.sflag [#allocation6], 1
    %4854 = vsyncpa %s4853, 1

</llo_original>
